<compile_context>
chip_gen: v7x
topology: tpu7x:2x2x1
jax: 0.10.0
libtpu: 0.0.40
codegen_flags: <defaults>
</compile_context>

<pallas_src>
import math
import functools

import jax
import jax.numpy as jnp
from jax.experimental import pallas as pl
from jax.experimental.pallas import tpu as pltpu


# --------------------------------------------------------------------------------------
# kernel
# --------------------------------------------------------------------------------------
def _eq_mha_kernel(
    # inputs
    x_ref, velq_ref, velt_ref, ef_ref, ed_ref, cut_ref,
    wqkv_ref, bqkv_ref, wd_ref, bd_ref, wo_ref, bo_ref, wvel_ref, bvel_ref,
    # outputs
    dx_ref, dvec_ref, attnw_ref,
    # scratch
    qkv_ref,
    *, T, E, TQ,
):
    qt = pl.program_id(1)
    mm_dtype = wqkv_ref.dtype

    # ---- per-batch fused Q|K|V projection, resident in VMEM for all query tiles ----
    @pl.when(qt == 0)
    def _():
        x = x_ref[0].astype(mm_dtype)                               # (T, E)
        qkv_ref[...] = (jnp.dot(x, wqkv_ref[...],
                                preferred_element_type=jnp.float32)
                        + bqkv_ref[...])                            # (T, 5E)

    row0 = pl.multiple_of(qt * TQ, TQ)

    q_t   = qkv_ref[pl.ds(row0, TQ), 0:E]          # (TQ, E)  scaling already folded in
    k_s   = qkv_ref[:, E:2 * E]                    # (T, E)
    v1_s  = qkv_ref[:, 2 * E:3 * E]                # (T, E)   head-permuted [v | vp1 | vp2]
    vp1_s = qkv_ref[:, 3 * E:4 * E]
    vp2_s = qkv_ref[:, 4 * E:5 * E]

    # ---- fused distance projections SiLU(Linear(edge_feature)) for this query tile ----
    ef2 = ef_ref[0].astype(mm_dtype)                                # (TQ*T, R)
    dkv = (jnp.dot(ef2, wd_ref[...], preferred_element_type=jnp.float32)
           + bd_ref[...])
    dkv = dkv * jax.nn.sigmoid(dkv)                                 # SiLU, (TQ*T, 4E)
    dk  = dkv[:, 0:E].reshape(TQ, T, E)
    dv1 = dkv[:, E:2 * E].reshape(TQ, T, E)
    dp1 = dkv[:, 2 * E:3 * E].reshape(TQ, T, E)
    dp2 = dkv[:, 3 * E:4 * E].reshape(TQ, T, E)

    # ---- per-channel attention; softmax over the source axis ----
    aw = q_t[:, None, :] * k_s[None, :, :] * dk                     # (TQ, T, E)
    m = jnp.max(aw, axis=1, keepdims=True)
    p = jnp.exp(aw - m)
    denom = jnp.sum(p, axis=1, keepdims=True)
    aw_f = p * pl.reciprocal(denom, approx=True)                    # softmax
    attnw_ref[0] = aw_f

    cut = cut_ref[0]                                                # (TQ, T, 1)
    v1 = v1_s[None, :, :] * dv1                                     # (TQ, T, E)
    attn = jnp.sum(aw_f * cut * v1, axis=1)                         # (TQ, E)

    # ---- output projection ----
    o = (jnp.dot(attn.astype(mm_dtype), wo_ref[...],
                 preferred_element_type=jnp.float32) + bo_ref[...])
    o1, o2, o3 = o[:, 0:E], o[:, E:2 * E], o[:, 2 * E:3 * E]

    # ---- velocity projection for this query tile ----
    vel_q = velq_ref[0]                                             # (TQ, 3, E)
    velp = (jnp.dot(vel_q.reshape(TQ * 3, E).astype(mm_dtype), wvel_ref[...],
                    preferred_element_type=jnp.float32)
            + bvel_ref[...]).reshape(TQ, 3, 3 * E)
    vproj1 = velp[:, :, 0:E]
    vproj2 = velp[:, :, E:2 * E]
    vproj3 = velp[:, :, 2 * E:3 * E]
    vdot = jnp.sum(vproj1 * vproj2, axis=1)                         # (TQ, E)

    dx_ref[0] = vdot * o2 + o3

    # ---- equivariant vector channel; no (TQ, T, 3, E) temporaries ----
    mask = (cut != 0.0).astype(jnp.float32)                         # (TQ, T, 1)
    m1 = (vp1_s[None, :, :] * dp1) * mask                           # (TQ, T, E)
    m2 = (vp2_s[None, :, :] * dp2) * mask
    ed = ed_ref[0]                                                  # (TQ, T, 3)
    pieces = []
    for c in range(3):                                              # static loop
        vel_c = velt_ref[0, c]                                      # (T, E) source layout
        vec_c = (jnp.sum(m1 * vel_c[None, :, :], axis=1)
                 + jnp.sum(m2 * ed[:, :, c:c + 1], axis=1))         # (TQ, E)
        pieces.append(vproj3[:, c, :] * o1 + vec_c)
    dvec_ref[0] = jnp.concatenate(pieces, axis=-1)                  # (TQ, 3E) lane-dense


# --------------------------------------------------------------------------------------
# wrapper
# --------------------------------------------------------------------------------------
def _default_vmem_limit():
    # ~75% of physical VMEM (v5e/v6e: 128 MiB, v7x: 64 MiB); conservative fallback.
    try:
        cap = pltpu.get_tpu_info().vmem_capacity_bytes
    except Exception:
        cap = None
    if not cap:
        cap = 64 * 1024 * 1024
    return int(cap * 3 // 4)


def _pick_tq(T, E, R, vmem_limit_bytes):
    """Largest multiple-of-8 divisor of T whose (TQ, T, *) working set fits VMEM."""
    if T % 8 != 0 or T <= 8:
        return T
    # rough f32 bytes per query row resident at once: double-buffered blocked operands
    # (edge_feature, edge_direction, cutoff, attn-weights out) + ~10 live (T,E) slabs.
    per_row = 4 * T * (2 * (R + 3 + 1 + E) + 10 * E)
    tq = (vmem_limit_bytes // 2) // max(per_row, 1)
    tq = int(max(8, min(tq, T)))
    tq -= tq % 8
    while tq > 8 and T % tq != 0:
        tq -= 8
    return tq if T % tq == 0 else T


def equivariant_mha_forward(params, query, velocity, edge_feature, edge_direction,
                            cutoff, *, num_heads, tq=None, mm_dtype=jnp.bfloat16):
    B, T, E = query.shape
    R = edge_feature.shape[-1]
    H = num_heads
    D = E // H
    assert D * H == E

    vmem_limit = _default_vmem_limit()
    if tq is None:
        tq = _pick_tq(T, E, R, vmem_limit)
    assert T % tq == 0 and (tq % 8 == 0 or tq == T), f"bad query tile {tq} for T={T}"
    nq = T // tq

    # ---- host-side weight prep: head-permute wv/wdv columns, fuse GEMMs, fold scaling ----
    j = jnp.arange(3 * E)
    perm = (j % E // D) * (3 * D) + (j // E) * D + (j % D)          # [v|vp1|vp2] grouping
    wv_p, bv_p = params["wv"][:, perm], params["bv"][:, perm]
    wdv_p, bdv_p = params["wdv"][:, perm], params["bdv"][:, perm]

    q_scale = 1.0 / D                       # folds head_dim**-0.5 and the later /sqrt(head_dim)
    w_qkv = jnp.concatenate([params["wq"] * q_scale, params["wk"], wv_p], axis=1).astype(mm_dtype)
    b_qkv = jnp.concatenate([params["bq"] * q_scale, params["bk"], bv_p], axis=1).astype(jnp.float32)
    w_d = jnp.concatenate([params["wdk"], wdv_p], axis=1).astype(mm_dtype)
    b_d = jnp.concatenate([params["bdk"], bdv_p], axis=1).astype(jnp.float32)
    w_o, b_o = params["wo"].astype(mm_dtype), params["bo"].astype(jnp.float32)
    w_vel, b_vel = params["wvel"].astype(mm_dtype), params["bvel"].astype(jnp.float32)

    # ---- host-side layout plumbing (free XLA reshapes/transposes) ----
    ef2 = edge_feature.reshape(B, T * T, R)             # query-row-major rows for the GEMM
    vel_t = jnp.transpose(velocity, (0, 2, 1, 3))       # (B, 3, T, E) source-axis layout
    cut3 = cutoff[..., None]                            # (B, T, T, 1)

    kernel = functools.partial(_eq_mha_kernel, T=T, E=E, TQ=tq)

    def _full_spec(shape):
        nd = len(shape)
        return pl.BlockSpec(shape, lambda b, q, _nd=nd: (0,) * _nd)

    weights = (w_qkv, b_qkv, w_d, b_d, w_o, b_o, w_vel, b_vel)
    in_specs = [
        pl.BlockSpec((1, T, E), lambda b, q: (b, 0, 0)),            # query (full, per batch)
        pl.BlockSpec((1, tq, 3, E), lambda b, q: (b, q, 0, 0)),     # velocity (query tile)
        pl.BlockSpec((1, 3, T, E), lambda b, q: (b, 0, 0, 0)),      # velocity^T (full, source)
        pl.BlockSpec((1, tq * T, R), lambda b, q: (b, q, 0)),       # edge_feature rows of tile
        pl.BlockSpec((1, tq, T, 3), lambda b, q: (b, q, 0, 0)),     # edge_direction tile
        pl.BlockSpec((1, tq, T, 1), lambda b, q: (b, q, 0, 0)),     # cutoff tile
    ] + [_full_spec(w.shape) for w in weights]

    out_shape = (
        jax.ShapeDtypeStruct((B, T, E), jnp.float32),               # dx
        jax.ShapeDtypeStruct((B, T, 3 * E), jnp.float32),           # dvec (lane-dense)
        jax.ShapeDtypeStruct((B, T, T, E), jnp.float32),            # attn weights (flat heads)
    )
    out_specs = (
        pl.BlockSpec((1, tq, E), lambda b, q: (b, q, 0)),
        pl.BlockSpec((1, tq, 3 * E), lambda b, q: (b, q, 0)),
        pl.BlockSpec((1, tq, T, E), lambda b, q: (b, q, 0, 0)),
    )

    dx, dvec_flat, attn_flat = pl.pallas_call(
        kernel,
        out_shape=out_shape,
        grid=(B, nq),
        in_specs=in_specs,
        out_specs=out_specs,
        scratch_shapes=[pltpu.VMEM((T, 5 * E), jnp.float32)],       # resident Q|K|V
        compiler_params=pltpu.CompilerParams(
            dimension_semantics=("parallel", "arbitrary"),
            vmem_limit_bytes=vmem_limit),
    )(query, velocity, vel_t, ef2, edge_direction, cut3, *weights)

    dvec = dvec_flat.reshape(B, T, 3, E)
    # torch's need_weights post-processing (pure reshape / mean glue):
    attn_w = attn_flat.reshape(B, H, T, T, D)
    attn_w = jnp.swapaxes(attn_w, 0, 1).mean(axis=0)
    return dx, dvec, attn_w


# --------------------------------------------------------------------------------------
# pure-JAX reference (torch semantics)
# --------------------------------------------------------------------------------------
def _reference_forward(params, query, velocity, edge_feature, edge_direction, cutoff,
                       *, num_heads):
    B, T, E = query.shape
    H = num_heads
    D = E // H
    scaling = D ** (-0.5)

    q = query @ params["wq"] + params["bq"][0]
    k = query @ params["wk"] + params["bk"][0]
    v = query @ params["wv"] + params["bv"][0]
    q = q * scaling

    dk = jax.nn.silu(edge_feature @ params["wdk"] + params["bdk"][0]).reshape(B, T, T, H, D)
    dv = jax.nn.silu(edge_feature @ params["wdv"] + params["bdv"][0]).reshape(B, T, T, H, 3 * D)

    q = q.reshape(B, T, 1, H, D)
    k = k.reshape(B, 1, T, H, D)
    v = v.reshape(B, 1, T, H, 3 * D)
    v = v * dv
    v1, vp1, vp2 = v[..., :D], v[..., D:2 * D], v[..., 2 * D:]

    velp = velocity @ params["wvel"] + params["bvel"][0]            # (B,T,3,3E)
    velocity_proj1, velocity_proj2, velocity_proj3 = jnp.split(velp, 3, axis=-1)
    vel5 = velocity.reshape(B, T, 3, H, D)
    velocity_dot = (velocity_proj1 * velocity_proj2).sum(axis=2)

    aw = q * k * dk
    aw = aw / math.sqrt(D)
    awf = jax.nn.softmax(aw, axis=2)
    awf = jnp.nan_to_num(awf)
    cut = cutoff[:, :, :, None, None]
    mask = (cut != 0).astype(awf.dtype)
    attn = (awf * cut * v1 * mask).sum(axis=2).reshape(B, T, E)
    o = attn @ params["wo"] + params["bo"][0]
    o1, o2, o3 = jnp.split(o, 3, axis=-1)

    vec1 = vel5[:, None] * vp1[:, :, :, None]
    vec2 = vp2[:, :, :, None] * edge_direction[:, :, :, :, None, None]
    vec = ((vec1 + vec2).reshape(B, T, T, 3, E) * (cutoff[:, :, :, None, None] != 0)).sum(axis=2)

    dx = velocity_dot * o2 + o3
    dvec = velocity_proj3 * o1[:, :, None, :] + vec

    attn_w = awf.reshape(B, H, T, T, D)
    attn_w = jnp.swapaxes(attn_w, 0, 1).mean(axis=0)
    return dx, dvec, attn_w


# --------------------------------------------------------------------------------------
# deterministic parameter init (torch reset_parameters equivalent)
# --------------------------------------------------------------------------------------
def init_params(key, E, R):
    def xavier(k, shape, gain=1.0):
        fan_in, fan_out = shape
        a = gain * math.sqrt(6.0 / (fan_in + fan_out))
        return jax.random.uniform(k, shape, jnp.float32, -a, a)

    ks = jax.random.split(key, 12)
    g = 1.0 / math.sqrt(2.0)
    return {
        "wq": xavier(ks[0], (E, E), g),
        "bq": jax.random.normal(ks[1], (1, E), jnp.float32) * 0.02,
        "wk": xavier(ks[2], (E, E), g),
        "bk": jax.random.normal(ks[3], (1, E), jnp.float32) * 0.02,
        "wv": xavier(ks[4], (E, 3 * E), g),
        "bv": jax.random.normal(ks[5], (1, 3 * E), jnp.float32) * 0.02,
        "wo": xavier(ks[6], (E, 3 * E)),
        "bo": jnp.zeros((1, 3 * E), jnp.float32),
        "wvel": xavier(ks[7], (E, 3 * E)),
        "bvel": jnp.zeros((1, 3 * E), jnp.float32),
        "wdk": xavier(ks[8], (R, E)),
        "bdk": jnp.zeros((1, E), jnp.float32),
        "wdv": xavier(ks[9], (R, 3 * E)),
        "bdv": jnp.zeros((1, 3 * E), jnp.float32),
    }


# TODO(synk): optional attn_mask / key_padding_mask / node_mask branches, dropout>0 and
# before_softmax/need_head_weights paths of the PyTorch module are not implemented.

if __name__ == "__main__":
    B, T, E, H, R = 2, 16, 32, 4, 32       # embed_dim=32, num_heads=4, num_rbf=32
    key = jax.random.PRNGKey(0)
    kp, k1, k2, k3, k4, k5 = jax.random.split(key, 6)

    params = init_params(kp, E, R)
    query = jax.random.normal(k1, (B, T, E), jnp.float32)
    velocity = jax.random.normal(k2, (B, T, 3, E), jnp.float32)
    edge_feature = jax.random.normal(k3, (B, T, T, R), jnp.float32)
    edge_direction = jax.random.normal(k4, (B, T, T, 3), jnp.float32)
    u = jax.random.uniform(k5, (B, T, T), jnp.float32)
    cutoff = jnp.where(u > 0.25, u, 0.0)   # exercise the (cutoff != 0) masks

    # tq=8 -> grid (B, 2): exercises the query-tiling + resident-QKV-scratch path.
    dx, dvec, attn_w = equivariant_mha_forward(
        params, query, velocity, edge_feature, edge_direction, cutoff,
        num_heads=H, tq=8)
    jax.block_until_ready((dx, dvec, attn_w))

    dx_r, dvec_r, attn_r = _reference_forward(
        params, query, velocity, edge_feature, edge_direction, cutoff, num_heads=H)

    D = E // H
    assert dx.shape == (B, T, E) and dvec.shape == (B, T, 3, E) and attn_w.shape == (B, T, T, D)
    # MXU operands are bf16 (f32 accumulation), so allow a few 1e-2 absolute slack.
    assert jnp.allclose(dx, dx_r, rtol=2e-2, atol=5e-2)
    assert jnp.allclose(dvec, dvec_r, rtol=2e-2, atol=5e-2)
    assert jnp.allclose(attn_w, attn_r, rtol=2e-2, atol=5e-2)

    print("KERNEL_OK")
</pallas_src>

<mosaic_0001>
module attributes {stable_mosaic.version = 11 : i64} {
  func.func @_eq_mha_kernel(%arg0: i32, %arg1: i32, %arg2: memref<1x16x32xf32, #tpu.memory_space<vmem>>, %arg3: memref<1x8x3x32xf32, #tpu.memory_space<vmem>>, %arg4: memref<1x3x16x32xf32, #tpu.memory_space<vmem>>, %arg5: memref<1x128x32xf32, #tpu.memory_space<vmem>>, %arg6: memref<1x8x16x3xf32, #tpu.memory_space<vmem>>, %arg7: memref<1x8x16x1xf32, #tpu.memory_space<vmem>>, %arg8: memref<32x160xbf16, #tpu.memory_space<vmem>>, %arg9: memref<1x160xf32, #tpu.memory_space<vmem>>, %arg10: memref<32x128xbf16, #tpu.memory_space<vmem>>, %arg11: memref<1x128xf32, #tpu.memory_space<vmem>>, %arg12: memref<32x96xbf16, #tpu.memory_space<vmem>>, %arg13: memref<1x96xf32, #tpu.memory_space<vmem>>, %arg14: memref<32x96xbf16, #tpu.memory_space<vmem>>, %arg15: memref<1x96xf32, #tpu.memory_space<vmem>>, %arg16: memref<1x8x32xf32, #tpu.memory_space<vmem>>, %arg17: memref<1x8x96xf32, #tpu.memory_space<vmem>>, %arg18: memref<1x8x16x32xf32, #tpu.memory_space<vmem>>, %arg19: memref<16x160xf32, #tpu.memory_space<vmem>>) attributes {dimension_semantics = [#tpu.dimension_semantics<parallel>, #tpu.dimension_semantics<arbitrary>], iteration_bounds = array<i64: 2, 2>, scalar_prefetch = 0 : i64, scratch_operands = 1 : i64, tpu.core_type = #tpu.core_type<tc>, window_params = [{transform_indices = @transform_0, window_bounds = array<i64: 1, 16, 32>}, {transform_indices = @transform_1, window_bounds = array<i64: 1, 8, 3, 32>}, {transform_indices = @transform_2, window_bounds = array<i64: 1, 3, 16, 32>}, {transform_indices = @transform_3, window_bounds = array<i64: 1, 128, 32>}, {transform_indices = @transform_4, window_bounds = array<i64: 1, 8, 16, 3>}, {transform_indices = @transform_5, window_bounds = array<i64: 1, 8, 16, 1>}, {pipeline_mode = #tpu.pipeline_mode<synchronous>, transform_indices = @transform_6, window_bounds = array<i64: 32, 160>}, {pipeline_mode = #tpu.pipeline_mode<synchronous>, transform_indices = @transform_7, window_bounds = array<i64: 1, 160>}, {pipeline_mode = #tpu.pipeline_mode<synchronous>, transform_indices = @transform_8, window_bounds = array<i64: 32, 128>}, {pipeline_mode = #tpu.pipeline_mode<synchronous>, transform_indices = @transform_9, window_bounds = array<i64: 1, 128>}, {pipeline_mode = #tpu.pipeline_mode<synchronous>, transform_indices = @transform_10, window_bounds = array<i64: 32, 96>}, {pipeline_mode = #tpu.pipeline_mode<synchronous>, transform_indices = @transform_11, window_bounds = array<i64: 1, 96>}, {pipeline_mode = #tpu.pipeline_mode<synchronous>, transform_indices = @transform_12, window_bounds = array<i64: 32, 96>}, {pipeline_mode = #tpu.pipeline_mode<synchronous>, transform_indices = @transform_13, window_bounds = array<i64: 1, 96>}, {transform_indices = @transform_14, window_bounds = array<i64: 1, 8, 32>}, {transform_indices = @transform_15, window_bounds = array<i64: 1, 8, 96>}, {transform_indices = @transform_16, window_bounds = array<i64: 1, 8, 16, 32>}]} {
    %c0_i32 = arith.constant 0 : i32
    %0 = arith.cmpi eq, %arg1, %c0_i32 : i32
    %1 = arith.extui %0 : i1 to i32
    %c0_i32_0 = arith.constant 0 : i32
    %2 = arith.cmpi ne, %1, %c0_i32_0 : i32
    scf.if %2 {
      %c0_66 = arith.constant 0 : index
      %c0_67 = arith.constant 0 : index
      %c0_68 = arith.constant 0 : index
      %155 = vector.load %arg2[%c0_66, %c0_67, %c0_68] : memref<1x16x32xf32, #tpu.memory_space<vmem>>, vector<1x16x32xf32>
      %156 = vector.shape_cast %155 : vector<1x16x32xf32> to vector<16x32xf32>
      %157 = arith.truncf %156 : vector<16x32xf32> to vector<16x32xbf16>
      %c0_69 = arith.constant 0 : index
      %c0_70 = arith.constant 0 : index
      %158 = vector.load %arg8[%c0_69, %c0_70] : memref<32x160xbf16, #tpu.memory_space<vmem>>, vector<32x160xbf16>
      %cst_71 = arith.constant dense<0.000000e+00> : vector<16x160xf32>
      %159 = tpu.matmul %157, %158, %cst_71 {dimension_numbers = #tpu.dot_dimension_numbers<[1], [0], [0], [1], [0, 0, 1, 1], [], []>} : vector<16x32xbf16>, vector<32x160xbf16>, vector<16x160xf32> -> vector<16x160xf32>
      %c0_72 = arith.constant 0 : index
      %c0_73 = arith.constant 0 : index
      %160 = vector.load %arg9[%c0_72, %c0_73] : memref<1x160xf32, #tpu.memory_space<vmem>>, vector<1x160xf32>
      %161 = vector.broadcast %160 : vector<1x160xf32> to vector<16x160xf32>
      %162 = arith.addf %159, %161 : vector<16x160xf32>
      %c0_74 = arith.constant 0 : index
      %c0_75 = arith.constant 0 : index
      %163 = vector.load %arg19[%c0_74, %c0_75] : memref<16x160xf32, #tpu.memory_space<vmem>>, vector<16x160xf32>
      tpu.vector_store %arg19[%c0_74, %c0_75], %162 {strides = array<i32>} : memref<16x160xf32, #tpu.memory_space<vmem>>, vector<16x160xf32>,
    } else {
    }
    %c8_i32 = arith.constant 8 : i32
    %3 = arith.muli %arg1, %c8_i32 : i32
    %4 = tpu.assume_multiple %3, 8 : i32
    %5 = arith.index_cast %4 : i32 to index
    %c0 = arith.constant 0 : index
    %6 = vector.load %arg19[%5, %c0] : memref<16x160xf32, #tpu.memory_space<vmem>>, vector<8x32xf32>
    %c0_1 = arith.constant 0 : index
    %c32 = arith.constant 32 : index
    %7 = vector.load %arg19[%c0_1, %c32] : memref<16x160xf32, #tpu.memory_space<vmem>>, vector<16x32xf32>
    %c0_2 = arith.constant 0 : index
    %c64 = arith.constant 64 : index
    %8 = vector.load %arg19[%c0_2, %c64] : memref<16x160xf32, #tpu.memory_space<vmem>>, vector<16x32xf32>
    %c0_3 = arith.constant 0 : index
    %c96 = arith.constant 96 : index
    %9 = vector.load %arg19[%c0_3, %c96] : memref<16x160xf32, #tpu.memory_space<vmem>>, vector<16x32xf32>
    %c0_4 = arith.constant 0 : index
    %c128 = arith.constant 128 : index
    %10 = vector.load %arg19[%c0_4, %c128] : memref<16x160xf32, #tpu.memory_space<vmem>>, vector<16x32xf32>
    %c0_5 = arith.constant 0 : index
    %c0_6 = arith.constant 0 : index
    %c0_7 = arith.constant 0 : index
    %11 = vector.load %arg5[%c0_5, %c0_6, %c0_7] : memref<1x128x32xf32, #tpu.memory_space<vmem>>, vector<1x128x32xf32>
    %12 = vector.shape_cast %11 : vector<1x128x32xf32> to vector<128x32xf32>
    %13 = arith.truncf %12 : vector<128x32xf32> to vector<128x32xbf16>
    %c0_8 = arith.constant 0 : index
    %c0_9 = arith.constant 0 : index
    %14 = vector.load %arg10[%c0_8, %c0_9] : memref<32x128xbf16, #tpu.memory_space<vmem>>, vector<32x128xbf16>
    %cst = arith.constant dense<0.000000e+00> : vector<128x128xf32>
    %15 = tpu.matmul %13, %14, %cst {dimension_numbers = #tpu.dot_dimension_numbers<[1], [0], [0], [1], [0, 0, 1, 1], [], []>} : vector<128x32xbf16>, vector<32x128xbf16>, vector<128x128xf32> -> vector<128x128xf32>
    %c0_10 = arith.constant 0 : index
    %c0_11 = arith.constant 0 : index
    %16 = vector.load %arg11[%c0_10, %c0_11] : memref<1x128xf32, #tpu.memory_space<vmem>>, vector<1x128xf32>
    %17 = vector.broadcast %16 : vector<1x128xf32> to vector<128x128xf32>
    %18 = arith.addf %15, %17 : vector<128x128xf32>
    %19 = arith.negf %18 : vector<128x128xf32>
    %20 = math.exp %19 : vector<128x128xf32>
    %cst_12 = arith.constant 1.000000e+00 : f32
    %21 = vector.broadcast %cst_12 : f32 to vector<128x128xf32>
    %22 = arith.addf %21, %20 : vector<128x128xf32>
    %23 = arith.divf %21, %22 : vector<128x128xf32>
    %24 = arith.mulf %18, %23 : vector<128x128xf32>
    %25 = vector.extract_strided_slice %24 {offsets = [0, 0], sizes = [128, 32], strides = [1, 1]} : vector<128x128xf32> to vector<128x32xf32>
    %26 = vector.shape_cast %25 : vector<128x32xf32> to vector<8x16x32xf32>
    %27 = vector.extract_strided_slice %24 {offsets = [0, 32], sizes = [128, 32], strides = [1, 1]} : vector<128x128xf32> to vector<128x32xf32>
    %28 = vector.shape_cast %27 : vector<128x32xf32> to vector<8x16x32xf32>
    %29 = vector.extract_strided_slice %24 {offsets = [0, 64], sizes = [128, 32], strides = [1, 1]} : vector<128x128xf32> to vector<128x32xf32>
    %30 = vector.shape_cast %29 : vector<128x32xf32> to vector<8x16x32xf32>
    %31 = vector.extract_strided_slice %24 {offsets = [0, 96], sizes = [128, 32], strides = [1, 1]} : vector<128x128xf32> to vector<128x32xf32>
    %32 = vector.shape_cast %31 : vector<128x32xf32> to vector<8x16x32xf32>
    %33 = vector.shape_cast %6 : vector<8x32xf32> to vector<8x1x32xf32>
    %34 = vector.shape_cast %7 : vector<16x32xf32> to vector<1x16x32xf32>
    %35 = vector.broadcast %33 : vector<8x1x32xf32> to vector<8x16x32xf32>
    %36 = vector.broadcast %34 : vector<1x16x32xf32> to vector<8x16x32xf32>
    %37 = arith.mulf %35, %36 : vector<8x16x32xf32>
    %38 = arith.mulf %37, %26 : vector<8x16x32xf32>
    %cst_13 = arith.constant dense<0xFF800000> : vector<8x32xf32>
    %39 = vector.multi_reduction <maximumf>, %38, %cst_13 [1] : vector<8x16x32xf32> to vector<8x32xf32>
    %40 = vector.shape_cast %39 : vector<8x32xf32> to vector<8x1x32xf32>
    %41 = vector.broadcast %40 : vector<8x1x32xf32> to vector<8x16x32xf32>
    %42 = arith.subf %38, %41 : vector<8x16x32xf32>
    %43 = math.exp %42 : vector<8x16x32xf32>
    %cst_14 = arith.constant dense<0.000000e+00> : vector<8x32xf32>
    %44 = vector.multi_reduction <add>, %43, %cst_14 [1] : vector<8x16x32xf32> to vector<8x32xf32>
    %45 = vector.shape_cast %44 : vector<8x32xf32> to vector<8x1x32xf32>
    %46 = tpu.reciprocal %45 {approx = true} : vector<8x1x32xf32> -> vector<8x1x32xf32>
    %47 = vector.broadcast %46 : vector<8x1x32xf32> to vector<8x16x32xf32>
    %48 = arith.mulf %43, %47 : vector<8x16x32xf32>
    %c0_15 = arith.constant 0 : index
    %c0_16 = arith.constant 0 : index
    %c0_17 = arith.constant 0 : index
    %c0_18 = arith.constant 0 : index
    %49 = vector.load %arg18[%c0_15, %c0_16, %c0_17, %c0_18] : memref<1x8x16x32xf32, #tpu.memory_space<vmem>>, vector<1x8x16x32xf32>
    %50 = vector.shape_cast %49 : vector<1x8x16x32xf32> to vector<8x16x32xf32>
    %51 = vector.shape_cast %48 : vector<8x16x32xf32> to vector<1x8x16x32xf32>
    tpu.vector_store %arg18[%c0_15, %c0_16, %c0_17, %c0_18], %51 {strides = array<i32>} : memref<1x8x16x32xf32, #tpu.memory_space<vmem>>, vector<1x8x16x32xf32>,
    %c0_19 = arith.constant 0 : index
    %c0_20 = arith.constant 0 : index
    %c0_21 = arith.constant 0 : index
    %c0_22 = arith.constant 0 : index
    %52 = vector.load %arg7[%c0_19, %c0_20, %c0_21, %c0_22] : memref<1x8x16x1xf32, #tpu.memory_space<vmem>>, vector<1x8x16x1xf32>
    %53 = vector.shape_cast %52 : vector<1x8x16x1xf32> to vector<8x16x1xf32>
    %54 = vector.shape_cast %8 : vector<16x32xf32> to vector<1x16x32xf32>
    %55 = vector.broadcast %54 : vector<1x16x32xf32> to vector<8x16x32xf32>
    %56 = arith.mulf %55, %28 : vector<8x16x32xf32>
    %57 = vector.broadcast %53 : vector<8x16x1xf32> to vector<8x16x32xf32>
    %58 = arith.mulf %48, %57 : vector<8x16x32xf32>
    %59 = arith.mulf %58, %56 : vector<8x16x32xf32>
    %cst_23 = arith.constant dense<0.000000e+00> : vector<8x32xf32>
    %60 = vector.multi_reduction <add>, %59, %cst_23 [1] : vector<8x16x32xf32> to vector<8x32xf32>
    %61 = arith.truncf %60 : vector<8x32xf32> to vector<8x32xbf16>
    %c0_24 = arith.constant 0 : index
    %c0_25 = arith.constant 0 : index
    %62 = vector.load %arg12[%c0_24, %c0_25] : memref<32x96xbf16, #tpu.memory_space<vmem>>, vector<32x96xbf16>
    %cst_26 = arith.constant dense<0.000000e+00> : vector<8x96xf32>
    %63 = tpu.matmul %61, %62, %cst_26 {dimension_numbers = #tpu.dot_dimension_numbers<[1], [0], [0], [1], [0, 0, 1, 1], [], []>} : vector<8x32xbf16>, vector<32x96xbf16>, vector<8x96xf32> -> vector<8x96xf32>
    %c0_27 = arith.constant 0 : index
    %c0_28 = arith.constant 0 : index
    %64 = vector.load %arg13[%c0_27, %c0_28] : memref<1x96xf32, #tpu.memory_space<vmem>>, vector<1x96xf32>
    %65 = vector.broadcast %64 : vector<1x96xf32> to vector<8x96xf32>
    %66 = arith.addf %63, %65 : vector<8x96xf32>
    %67 = vector.extract_strided_slice %66 {offsets = [0, 0], sizes = [8, 32], strides = [1, 1]} : vector<8x96xf32> to vector<8x32xf32>
    %68 = vector.extract_strided_slice %66 {offsets = [0, 32], sizes = [8, 32], strides = [1, 1]} : vector<8x96xf32> to vector<8x32xf32>
    %69 = vector.extract_strided_slice %66 {offsets = [0, 64], sizes = [8, 32], strides = [1, 1]} : vector<8x96xf32> to vector<8x32xf32>
    %c0_29 = arith.constant 0 : index
    %c0_30 = arith.constant 0 : index
    %c0_31 = arith.constant 0 : index
    %c0_32 = arith.constant 0 : index
    %70 = vector.load %arg3[%c0_29, %c0_30, %c0_31, %c0_32] : memref<1x8x3x32xf32, #tpu.memory_space<vmem>>, vector<1x8x3x32xf32>
    %71 = vector.shape_cast %70 : vector<1x8x3x32xf32> to vector<8x3x32xf32>
    %72 = vector.shape_cast %71 : vector<8x3x32xf32> to vector<24x32xf32>
    %73 = arith.truncf %72 : vector<24x32xf32> to vector<24x32xbf16>
    %c0_33 = arith.constant 0 : index
    %c0_34 = arith.constant 0 : index
    %74 = vector.load %arg14[%c0_33, %c0_34] : memref<32x96xbf16, #tpu.memory_space<vmem>>, vector<32x96xbf16>
    %cst_35 = arith.constant dense<0.000000e+00> : vector<24x96xf32>
    %75 = tpu.matmul %73, %74, %cst_35 {dimension_numbers = #tpu.dot_dimension_numbers<[1], [0], [0], [1], [0, 0, 1, 1], [], []>} : vector<24x32xbf16>, vector<32x96xbf16>, vector<24x96xf32> -> vector<24x96xf32>
    %c0_36 = arith.constant 0 : index
    %c0_37 = arith.constant 0 : index
    %76 = vector.load %arg15[%c0_36, %c0_37] : memref<1x96xf32, #tpu.memory_space<vmem>>, vector<1x96xf32>
    %77 = vector.broadcast %76 : vector<1x96xf32> to vector<24x96xf32>
    %78 = arith.addf %75, %77 : vector<24x96xf32>
    %79 = vector.shape_cast %78 : vector<24x96xf32> to vector<8x3x96xf32>
    %80 = vector.extract_strided_slice %79 {offsets = [0, 0, 0], sizes = [8, 3, 32], strides = [1, 1, 1]} : vector<8x3x96xf32> to vector<8x3x32xf32>
    %81 = vector.extract_strided_slice %79 {offsets = [0, 0, 32], sizes = [8, 3, 32], strides = [1, 1, 1]} : vector<8x3x96xf32> to vector<8x3x32xf32>
    %82 = vector.extract_strided_slice %79 {offsets = [0, 0, 64], sizes = [8, 3, 32], strides = [1, 1, 1]} : vector<8x3x96xf32> to vector<8x3x32xf32>
    %83 = arith.mulf %80, %81 : vector<8x3x32xf32>
    %cst_38 = arith.constant dense<0.000000e+00> : vector<8x32xf32>
    %84 = vector.multi_reduction <add>, %83, %cst_38 [1] : vector<8x3x32xf32> to vector<8x32xf32>
    %85 = arith.mulf %84, %68 : vector<8x32xf32>
    %86 = arith.addf %85, %69 : vector<8x32xf32>
    %c0_39 = arith.constant 0 : index
    %c0_40 = arith.constant 0 : index
    %c0_41 = arith.constant 0 : index
    %87 = vector.load %arg16[%c0_39, %c0_40, %c0_41] : memref<1x8x32xf32, #tpu.memory_space<vmem>>, vector<1x8x32xf32>
    %88 = vector.shape_cast %87 : vector<1x8x32xf32> to vector<8x32xf32>
    %89 = vector.shape_cast %86 : vector<8x32xf32> to vector<1x8x32xf32>
    tpu.vector_store %arg16[%c0_39, %c0_40, %c0_41], %89 {strides = array<i32>} : memref<1x8x32xf32, #tpu.memory_space<vmem>>, vector<1x8x32xf32>,
    %cst_42 = arith.constant 0.000000e+00 : f32
    %90 = vector.broadcast %cst_42 : f32 to vector<8x16x1xf32>
    %91 = arith.cmpf one, %53, %90 : vector<8x16x1xf32>
    %92 = arith.extui %91 : vector<8x16x1xi1> to vector<8x16x1xi32>
    %93 = arith.sitofp %92 : vector<8x16x1xi32> to vector<8x16x1xf32>
    %94 = vector.shape_cast %9 : vector<16x32xf32> to vector<1x16x32xf32>
    %95 = vector.broadcast %94 : vector<1x16x32xf32> to vector<8x16x32xf32>
    %96 = arith.mulf %95, %30 : vector<8x16x32xf32>
    %97 = vector.broadcast %93 : vector<8x16x1xf32> to vector<8x16x32xf32>
    %98 = arith.mulf %96, %97 : vector<8x16x32xf32>
    %99 = vector.shape_cast %10 : vector<16x32xf32> to vector<1x16x32xf32>
    %100 = vector.broadcast %99 : vector<1x16x32xf32> to vector<8x16x32xf32>
    %101 = arith.mulf %100, %32 : vector<8x16x32xf32>
    %102 = vector.broadcast %93 : vector<8x16x1xf32> to vector<8x16x32xf32>
    %103 = arith.mulf %101, %102 : vector<8x16x32xf32>
    %c0_43 = arith.constant 0 : index
    %c0_44 = arith.constant 0 : index
    %c0_45 = arith.constant 0 : index
    %c0_46 = arith.constant 0 : index
    %104 = vector.load %arg6[%c0_43, %c0_44, %c0_45, %c0_46] : memref<1x8x16x3xf32, #tpu.memory_space<vmem>>, vector<1x8x16x3xf32>
    %105 = vector.shape_cast %104 : vector<1x8x16x3xf32> to vector<8x16x3xf32>
    %c0_47 = arith.constant 0 : index
    %c0_48 = arith.constant 0 : index
    %c0_49 = arith.constant 0 : index
    %c0_50 = arith.constant 0 : index
    %106 = vector.load %arg4[%c0_47, %c0_48, %c0_49, %c0_50] : memref<1x3x16x32xf32, #tpu.memory_space<vmem>>, vector<1x1x16x32xf32>
    %107 = vector.shape_cast %106 : vector<1x1x16x32xf32> to vector<16x32xf32>
    %108 = vector.shape_cast %107 : vector<16x32xf32> to vector<1x16x32xf32>
    %109 = vector.broadcast %108 : vector<1x16x32xf32> to vector<8x16x32xf32>
    %110 = arith.mulf %98, %109 : vector<8x16x32xf32>
    %cst_51 = arith.constant dense<0.000000e+00> : vector<8x32xf32>
    %111 = vector.multi_reduction <add>, %110, %cst_51 [1] : vector<8x16x32xf32> to vector<8x32xf32>
    %112 = vector.extract_strided_slice %105 {offsets = [0, 0, 0], sizes = [8, 16, 1], strides = [1, 1, 1]} : vector<8x16x3xf32> to vector<8x16x1xf32>
    %113 = vector.broadcast %112 : vector<8x16x1xf32> to vector<8x16x32xf32>
    %114 = arith.mulf %103, %113 : vector<8x16x32xf32>
    %cst_52 = arith.constant dense<0.000000e+00> : vector<8x32xf32>
    %115 = vector.multi_reduction <add>, %114, %cst_52 [1] : vector<8x16x32xf32> to vector<8x32xf32>
    %116 = arith.addf %111, %115 : vector<8x32xf32>
    %117 = vector.extract_strided_slice %82 {offsets = [0, 0, 0], sizes = [8, 1, 32], strides = [1, 1, 1]} : vector<8x3x32xf32> to vector<8x1x32xf32>
    %118 = vector.shape_cast %117 : vector<8x1x32xf32> to vector<8x32xf32>
    %119 = arith.mulf %118, %67 : vector<8x32xf32>
    %120 = arith.addf %119, %116 : vector<8x32xf32>
    %c0_53 = arith.constant 0 : index
    %c1 = arith.constant 1 : index
    %c0_54 = arith.constant 0 : index
    %c0_55 = arith.constant 0 : index
    %121 = vector.load %arg4[%c0_53, %c1, %c0_54, %c0_55] : memref<1x3x16x32xf32, #tpu.memory_space<vmem>>, vector<1x1x16x32xf32>
    %122 = vector.shape_cast %121 : vector<1x1x16x32xf32> to vector<16x32xf32>
    %123 = vector.shape_cast %122 : vector<16x32xf32> to vector<1x16x32xf32>
    %124 = vector.broadcast %123 : vector<1x16x32xf32> to vector<8x16x32xf32>
    %125 = arith.mulf %98, %124 : vector<8x16x32xf32>
    %cst_56 = arith.constant dense<0.000000e+00> : vector<8x32xf32>
    %126 = vector.multi_reduction <add>, %125, %cst_56 [1] : vector<8x16x32xf32> to vector<8x32xf32>
    %127 = vector.extract_strided_slice %105 {offsets = [0, 0, 1], sizes = [8, 16, 1], strides = [1, 1, 1]} : vector<8x16x3xf32> to vector<8x16x1xf32>
    %128 = vector.broadcast %127 : vector<8x16x1xf32> to vector<8x16x32xf32>
    %129 = arith.mulf %103, %128 : vector<8x16x32xf32>
    %cst_57 = arith.constant dense<0.000000e+00> : vector<8x32xf32>
    %130 = vector.multi_reduction <add>, %129, %cst_57 [1] : vector<8x16x32xf32> to vector<8x32xf32>
    %131 = arith.addf %126, %130 : vector<8x32xf32>
    %132 = vector.extract_strided_slice %82 {offsets = [0, 1, 0], sizes = [8, 1, 32], strides = [1, 1, 1]} : vector<8x3x32xf32> to vector<8x1x32xf32>
    %133 = vector.shape_cast %132 : vector<8x1x32xf32> to vector<8x32xf32>
    %134 = arith.mulf %133, %67 : vector<8x32xf32>
    %135 = arith.addf %134, %131 : vector<8x32xf32>
    %c0_58 = arith.constant 0 : index
    %c2 = arith.constant 2 : index
    %c0_59 = arith.constant 0 : index
    %c0_60 = arith.constant 0 : index
    %136 = vector.load %arg4[%c0_58, %c2, %c0_59, %c0_60] : memref<1x3x16x32xf32, #tpu.memory_space<vmem>>, vector<1x1x16x32xf32>
    %137 = vector.shape_cast %136 : vector<1x1x16x32xf32> to vector<16x32xf32>
    %138 = vector.shape_cast %137 : vector<16x32xf32> to vector<1x16x32xf32>
    %139 = vector.broadcast %138 : vector<1x16x32xf32> to vector<8x16x32xf32>
    %140 = arith.mulf %98, %139 : vector<8x16x32xf32>
    %cst_61 = arith.constant dense<0.000000e+00> : vector<8x32xf32>
    %141 = vector.multi_reduction <add>, %140, %cst_61 [1] : vector<8x16x32xf32> to vector<8x32xf32>
    %142 = vector.extract_strided_slice %105 {offsets = [0, 0, 2], sizes = [8, 16, 1], strides = [1, 1, 1]} : vector<8x16x3xf32> to vector<8x16x1xf32>
    %143 = vector.broadcast %142 : vector<8x16x1xf32> to vector<8x16x32xf32>
    %144 = arith.mulf %103, %143 : vector<8x16x32xf32>
    %cst_62 = arith.constant dense<0.000000e+00> : vector<8x32xf32>
    %145 = vector.multi_reduction <add>, %144, %cst_62 [1] : vector<8x16x32xf32> to vector<8x32xf32>
    %146 = arith.addf %141, %145 : vector<8x32xf32>
    %147 = vector.extract_strided_slice %82 {offsets = [0, 2, 0], sizes = [8, 1, 32], strides = [1, 1, 1]} : vector<8x3x32xf32> to vector<8x1x32xf32>
    %148 = vector.shape_cast %147 : vector<8x1x32xf32> to vector<8x32xf32>
    %149 = arith.mulf %148, %67 : vector<8x32xf32>
    %150 = arith.addf %149, %146 : vector<8x32xf32>
    %151 = tpu.concatenate %120, %135, %150 in 1 : vector<8x32xf32>, vector<8x32xf32>, vector<8x32xf32> -> vector<8x96xf32>
    %c0_63 = arith.constant 0 : index
    %c0_64 = arith.constant 0 : index
    %c0_65 = arith.constant 0 : index
    %152 = vector.load %arg17[%c0_63, %c0_64, %c0_65] : memref<1x8x96xf32, #tpu.memory_space<vmem>>, vector<1x8x96xf32>
    %153 = vector.shape_cast %152 : vector<1x8x96xf32> to vector<8x96xf32>
    %154 = vector.shape_cast %151 : vector<8x96xf32> to vector<1x8x96xf32>
    tpu.vector_store %arg17[%c0_63, %c0_64, %c0_65], %154 {strides = array<i32>} : memref<1x8x96xf32, #tpu.memory_space<vmem>>, vector<1x8x96xf32>,
    return
  }
  func.func @transform_0(%arg0: i32, %arg1: i32) -> (i32, i32, i32) {
    %c0_i32 = arith.constant 0 : i32
    %c0_i32_0 = arith.constant 0 : i32
    %c0_i32_1 = arith.constant 0 : i32
    return %arg0, %c0_i32, %c0_i32_0 : i32, i32, i32
  }
  func.func @transform_1(%arg0: i32, %arg1: i32) -> (i32, i32, i32, i32) {
    %c0_i32 = arith.constant 0 : i32
    %c0_i32_0 = arith.constant 0 : i32
    %c0_i32_1 = arith.constant 0 : i32
    return %arg0, %arg1, %c0_i32, %c0_i32_0 : i32, i32, i32, i32
  }
  func.func @transform_2(%arg0: i32, %arg1: i32) -> (i32, i32, i32, i32) {
    %c0_i32 = arith.constant 0 : i32
    %c0_i32_0 = arith.constant 0 : i32
    %c0_i32_1 = arith.constant 0 : i32
    %c0_i32_2 = arith.constant 0 : i32
    return %arg0, %c0_i32, %c0_i32_0, %c0_i32_1 : i32, i32, i32, i32
  }
  func.func @transform_3(%arg0: i32, %arg1: i32) -> (i32, i32, i32) {
    %c0_i32 = arith.constant 0 : i32
    %c0_i32_0 = arith.constant 0 : i32
    return %arg0, %arg1, %c0_i32 : i32, i32, i32
  }
  func.func @transform_4(%arg0: i32, %arg1: i32) -> (i32, i32, i32, i32) {
    %c0_i32 = arith.constant 0 : i32
    %c0_i32_0 = arith.constant 0 : i32
    %c0_i32_1 = arith.constant 0 : i32
    return %arg0, %arg1, %c0_i32, %c0_i32_0 : i32, i32, i32, i32
  }
  func.func @transform_5(%arg0: i32, %arg1: i32) -> (i32, i32, i32, i32) {
    %c0_i32 = arith.constant 0 : i32
    %c0_i32_0 = arith.constant 0 : i32
    %c0_i32_1 = arith.constant 0 : i32
    return %arg0, %arg1, %c0_i32, %c0_i32_0 : i32, i32, i32, i32
  }
  func.func @transform_6(%arg0: i32, %arg1: i32) -> (i32, i32) {
    %c0_i32 = arith.constant 0 : i32
    %c0_i32_0 = arith.constant 0 : i32
    %c0_i32_1 = arith.constant 0 : i32
    return %c0_i32, %c0_i32_0 : i32, i32
  }
  func.func @transform_7(%arg0: i32, %arg1: i32) -> (i32, i32) {
    %c0_i32 = arith.constant 0 : i32
    %c0_i32_0 = arith.constant 0 : i32
    %c0_i32_1 = arith.constant 0 : i32
    return %c0_i32, %c0_i32_0 : i32, i32
  }
  func.func @transform_8(%arg0: i32, %arg1: i32) -> (i32, i32) {
    %c0_i32 = arith.constant 0 : i32
    %c0_i32_0 = arith.constant 0 : i32
    %c0_i32_1 = arith.constant 0 : i32
    return %c0_i32, %c0_i32_0 : i32, i32
  }
  func.func @transform_9(%arg0: i32, %arg1: i32) -> (i32, i32) {
    %c0_i32 = arith.constant 0 : i32
    %c0_i32_0 = arith.constant 0 : i32
    %c0_i32_1 = arith.constant 0 : i32
    return %c0_i32, %c0_i32_0 : i32, i32
  }
  func.func @transform_10(%arg0: i32, %arg1: i32) -> (i32, i32) {
    %c0_i32 = arith.constant 0 : i32
    %c0_i32_0 = arith.constant 0 : i32
    %c0_i32_1 = arith.constant 0 : i32
    return %c0_i32, %c0_i32_0 : i32, i32
  }
  func.func @transform_11(%arg0: i32, %arg1: i32) -> (i32, i32) {
    %c0_i32 = arith.constant 0 : i32
    %c0_i32_0 = arith.constant 0 : i32
    %c0_i32_1 = arith.constant 0 : i32
    return %c0_i32, %c0_i32_0 : i32, i32
  }
  func.func @transform_12(%arg0: i32, %arg1: i32) -> (i32, i32) {
    %c0_i32 = arith.constant 0 : i32
    %c0_i32_0 = arith.constant 0 : i32
    %c0_i32_1 = arith.constant 0 : i32
    return %c0_i32, %c0_i32_0 : i32, i32
  }
  func.func @transform_13(%arg0: i32, %arg1: i32) -> (i32, i32) {
    %c0_i32 = arith.constant 0 : i32
    %c0_i32_0 = arith.constant 0 : i32
    %c0_i32_1 = arith.constant 0 : i32
    return %c0_i32, %c0_i32_0 : i32, i32
  }
  func.func @transform_14(%arg0: i32, %arg1: i32) -> (i32, i32, i32) {
    %c0_i32 = arith.constant 0 : i32
    %c0_i32_0 = arith.constant 0 : i32
    return %arg0, %arg1, %c0_i32 : i32, i32, i32
  }
  func.func @transform_15(%arg0: i32, %arg1: i32) -> (i32, i32, i32) {
    %c0_i32 = arith.constant 0 : i32
    %c0_i32_0 = arith.constant 0 : i32
    return %arg0, %arg1, %c0_i32 : i32, i32, i32
  }
  func.func @transform_16(%arg0: i32, %arg1: i32) -> (i32, i32, i32, i32) {
    %c0_i32 = arith.constant 0 : i32
    %c0_i32_0 = arith.constant 0 : i32
    %c0_i32_1 = arith.constant 0 : i32
    return %arg0, %arg1, %c0_i32, %c0_i32_0 : i32, i32, i32, i32
  }
}

</mosaic_0001>

<llo_original>
// kernel: tpu_custom_call.1
$region0: #{tpu_custom_call.1}
  #allocation0 [shape = 'u32[]', space=smem, size = 0x4, offset = 0x4, fixed_abs, tag = 'smem constant byte address 0x4 - core index']
  #allocation1 [shape = 'u32[144,128]{1,0:T(1,128)}', space=vmem, size = 0x12000, scoped, tag = 'internal scratch']
  #allocation2 [shape = 'f32[16,160]{1,0:T(8,128)}', space=vmem, size = 0x4000, scoped, tag = 'scratch operand']
  %s0 = inlined_call_operand.vmem [shape: f32[2,16,32], index: 0, kind: input, shape index: {}]
  %s1 = inlined_call_operand.vmem [shape: f32[2,16,3,32], index: 1, kind: input, shape index: {}]
  %s2 = inlined_call_operand.vmem [shape: f32[2,3,16,32], index: 2, kind: input, shape index: {}]
  %s3 = inlined_call_operand.vmem [shape: f32[2,256,32], index: 3, kind: input, shape index: {}]
  %s4 = inlined_call_operand.vmem [shape: f32[2,16,16,3], index: 4, kind: input, shape index: {}]
  %s5 = inlined_call_operand.vmem [shape: f32[2,16,16,1], index: 5, kind: input, shape index: {}]
  %s6 = inlined_call_operand.vmem [shape: bf16[32,160], index: 6, kind: input, shape index: {}]
  %s7 = inlined_call_operand.vmem [shape: f32[1,160], index: 7, kind: input, shape index: {}]
  %s8 = inlined_call_operand.vmem [shape: bf16[32,128], index: 8, kind: input, shape index: {}]
  %s9 = inlined_call_operand.vmem [shape: f32[1,128], index: 9, kind: input, shape index: {}]
  %s10 = inlined_call_operand.vmem [shape: bf16[32,96], index: 10, kind: input, shape index: {}]
  %s11 = inlined_call_operand.vmem [shape: f32[1,96], index: 11, kind: input, shape index: {}]
  %s12 = inlined_call_operand.vmem [shape: bf16[32,96], index: 12, kind: input, shape index: {}]
  %s13 = inlined_call_operand.vmem [shape: f32[1,96], index: 13, kind: input, shape index: {}]
  %s14 = inlined_call_operand.hbm [shape: f32[2,16,32], index: 14, kind: output, shape index: {0}]
  %s15 = inlined_call_operand.hbm [shape: f32[2,16,96], index: 15, kind: output, shape index: {1}]
  %s16 = inlined_call_operand.hbm [shape: f32[2,16,16,32], index: 16, kind: output, shape index: {2}]
  %17 = xla_tuple %s14, %s15, %s16
  %s18 = sld [smem:[#allocation0]]
  $region109: #{tpu_custom_call.1} parent=0
    _
  %s20 = ssub.s32 1, %s18
  %s21 = scalar_select 0, %s20, %s18
  $region1: #{tpu_custom_call.1} parent=0
    #allocation3 [shape = 'u8[8192]{0}', space=vmem, size = 0x2000, scoped, tag = 'output window, operand 0']
    #allocation4 [shape = 's32[2]{0}', space=sflag, size = 0x8, scoped, tag = 'scoped memory for tpu_custom_call.1']
    #allocation5 [shape = 'u8[8192]{0}', space=vmem, size = 0x2000, scoped, tag = 'output window, operand 1']
    #allocation6 [shape = 's32[2]{0}', space=sflag, size = 0x8, scoped, tag = 'scoped memory for tpu_custom_call.1']
    #allocation7 [shape = 'u8[131072]{0}', space=vmem, size = 0x20000, scoped, tag = 'output window, operand 2']
    %22 = vsyncpa [#allocation4], 0
    %s23 = scalar_lea.sflag [#allocation4], 1
    %24 = vsyncpa %s23, 0
    %25 = vsyncpa [#allocation6], 0
    %s26 = scalar_lea.sflag [#allocation6], 1
    %27 = vsyncpa %s26, 0
    loop: start=0, step=1, limit=6
    $region2: #{tpu_custom_call.1} parent=1 // loop_pre_header
      _
    $region3: #{tpu_custom_call.1} parent=1 // loop_header
      %s29 = sphi 0, %s33
      %p30 = scmp.ge.s32.totalorder %s29, 6
      %s36 = sphi 0, %s48
      %s37 = sphi 0, %s44
      %s38 = sphi 0, %s36
      %s39 = sphi 0, %s37
      %s40 = sphi 0, %s38
      %s41 = sphi 0, %s39
      %s51 = sphi 0, %s53
      %s54 = sphi 0, %s51
      %s55 = sphi 0, %s54
      %s71 = sphi 0, %s55
      %s79 = sphi 0, %s81
      %s82 = sphi 0, %s79
      %s83 = sphi 0, %s82
      %s99 = sphi 0, %s83
      %s105 = sphi 0, %s107
      %s108 = sphi 0, %s105
      %s109 = sphi 0, %s108
      %s125 = sphi 0, %s109
      %s133 = sphi 0, %s135
      %s136 = sphi 0, %s133
      %s137 = sphi 0, %s136
      %s153 = sphi 0, %s137
      %s161 = sphi 0, %s163
      %s164 = sphi 0, %s161
      %s165 = sphi 0, %s164
      %s181 = sphi 0, %s165
      %s189 = sphi 0, %s191
      %s192 = sphi 0, %s189
      %s193 = sphi 0, %s192
      %s209 = sphi 0, %s193
      %s213 = sphi 0, %s213
      %s215 = sphi 0, %s213
      %s216 = sphi 0, %s215
      %s230 = sphi 0, %s216
      %s234 = sphi 0, %s234
      %s236 = sphi 0, %s234
      %s237 = sphi 0, %s236
      %s251 = sphi 0, %s237
      %s255 = sphi 0, %s255
      %s257 = sphi 0, %s255
      %s258 = sphi 0, %s257
      %s272 = sphi 0, %s258
      %s276 = sphi 0, %s276
      %s278 = sphi 0, %s276
      %s279 = sphi 0, %s278
      %s293 = sphi 0, %s279
      %s297 = sphi 0, %s297
      %s299 = sphi 0, %s297
      %s300 = sphi 0, %s299
      %s314 = sphi 0, %s300
      %s318 = sphi 0, %s318
      %s320 = sphi 0, %s318
      %s321 = sphi 0, %s320
      %s335 = sphi 0, %s321
      %s339 = sphi 0, %s339
      %s341 = sphi 0, %s339
      %s342 = sphi 0, %s341
      %s356 = sphi 0, %s342
      %s360 = sphi 0, %s360
      %s362 = sphi 0, %s360
      %s363 = sphi 0, %s362
      %s377 = sphi 0, %s363
      %s385 = sphi 0, %s387
      %s388 = sphi 0, %s385
      %s389 = sphi 0, %s388
      %s405 = sphi 0, %s389
      %s413 = sphi 0, %s415
      %s416 = sphi 0, %s413
      %s417 = sphi 0, %s416
      %s433 = sphi 0, %s417
      %s441 = sphi 0, %s443
      %s444 = sphi 0, %s441
      %s445 = sphi 0, %s444
      %s461 = sphi 0, %s445
    $region4: #{tpu_custom_call.1} parent=1 // loop_header_branch
      %32 = sbr.rel (%p30) target = $region8
    $region5: #{tpu_custom_call.1} parent=1 // loop_body
      %s34 = ssub.s32 %s29, 1
      %s35 = ssub.s32 %s29, 2
      %s42 = sadd.s32 1, %s37
      %p43 = scmp.ge.s32.totalorder %s42, 2
      %s44 = scalar_select %p43, 0, %s42
      %s45 = sadd.s32 1, %s36
      %s46 = scalar_select %p43, %s45, %s36
      %p47 = scmp.ge.s32.totalorder %s46, 2
      %s48 = scalar_select %p47, 0, %s46
      %s49 = ssub.s32 %s36, %s48
      %p50 = scmp.eq.s32.totalorder %s49, 0
      %s52 = sadd.s32 %s51, 1
      %s53 = scalar_select %p50, %s51, %s52
      %p56 = pneg %p50
      %p57 = scmp.eq.s32.totalorder %s29, 3
      %p58 = por %p56, %p57
      %p59 = scmp.ne.s32.totalorder %s51, %s54
      %p60 = scmp.eq.s32.totalorder %s29, 0
      %p61 = por %p59, %p60
      %p62 = scmp.ne.s32.totalorder %s51, %s54
      %p63 = scmp.eq.s32.totalorder %s34, 3
      %p64 = por %p62, %p63
      %p65 = scmp.ne.s32.totalorder %s54, %s55
      %p66 = scmp.eq.s32.totalorder %s34, 0
      %p67 = por %p65, %p66
      %p68 = scmp.ne.s32.totalorder %s54, %s55
      %p69 = scmp.eq.s32.totalorder %s35, 3
      %p70 = por %p68, %p69
      %p72 = scmp.ne.s32.totalorder %s55, %s71
      %p73 = scmp.eq.s32.totalorder %s35, 0
      %p74 = por %p72, %p73
      %s75 = ssub.s32 %s36, %s48
      %s76 = ssub.s32 %s37, %s44
      %s77 = sor.u32 %s75, %s76
      %p78 = scmp.eq.s32.totalorder %s77, 0
      %s80 = sadd.s32 %s79, 1
      %s81 = scalar_select %p78, %s79, %s80
      %p84 = pneg %p78
      %p85 = scmp.eq.s32.totalorder %s29, 3
      %p86 = por %p84, %p85
      %p87 = scmp.ne.s32.totalorder %s79, %s82
      %p88 = scmp.eq.s32.totalorder %s29, 0
      %p89 = por %p87, %p88
      %p90 = scmp.ne.s32.totalorder %s79, %s82
      %p91 = scmp.eq.s32.totalorder %s34, 3
      %p92 = por %p90, %p91
      %p93 = scmp.ne.s32.totalorder %s82, %s83
      %p94 = scmp.eq.s32.totalorder %s34, 0
      %p95 = por %p93, %p94
      %p96 = scmp.ne.s32.totalorder %s82, %s83
      %p97 = scmp.eq.s32.totalorder %s35, 3
      %p98 = por %p96, %p97
      %p100 = scmp.ne.s32.totalorder %s83, %s99
      %p101 = scmp.eq.s32.totalorder %s35, 0
      %p102 = por %p100, %p101
      %s103 = ssub.s32 %s36, %s48
      %p104 = scmp.eq.s32.totalorder %s103, 0
      %s106 = sadd.s32 %s105, 1
      %s107 = scalar_select %p104, %s105, %s106
      %p110 = pneg %p104
      %p111 = scmp.eq.s32.totalorder %s29, 3
      %p112 = por %p110, %p111
      %p113 = scmp.ne.s32.totalorder %s105, %s108
      %p114 = scmp.eq.s32.totalorder %s29, 0
      %p115 = por %p113, %p114
      %p116 = scmp.ne.s32.totalorder %s105, %s108
      %p117 = scmp.eq.s32.totalorder %s34, 3
      %p118 = por %p116, %p117
      %p119 = scmp.ne.s32.totalorder %s108, %s109
      %p120 = scmp.eq.s32.totalorder %s34, 0
      %p121 = por %p119, %p120
      %p122 = scmp.ne.s32.totalorder %s108, %s109
      %p123 = scmp.eq.s32.totalorder %s35, 3
      %p124 = por %p122, %p123
      %p126 = scmp.ne.s32.totalorder %s109, %s125
      %p127 = scmp.eq.s32.totalorder %s35, 0
      %p128 = por %p126, %p127
      %s129 = ssub.s32 %s36, %s48
      %s130 = ssub.s32 %s37, %s44
      %s131 = sor.u32 %s129, %s130
      %p132 = scmp.eq.s32.totalorder %s131, 0
      %s134 = sadd.s32 %s133, 1
      %s135 = scalar_select %p132, %s133, %s134
      %p138 = pneg %p132
      %p139 = scmp.eq.s32.totalorder %s29, 3
      %p140 = por %p138, %p139
      %p141 = scmp.ne.s32.totalorder %s133, %s136
      %p142 = scmp.eq.s32.totalorder %s29, 0
      %p143 = por %p141, %p142
      %p144 = scmp.ne.s32.totalorder %s133, %s136
      %p145 = scmp.eq.s32.totalorder %s34, 3
      %p146 = por %p144, %p145
      %p147 = scmp.ne.s32.totalorder %s136, %s137
      %p148 = scmp.eq.s32.totalorder %s34, 0
      %p149 = por %p147, %p148
      %p150 = scmp.ne.s32.totalorder %s136, %s137
      %p151 = scmp.eq.s32.totalorder %s35, 3
      %p152 = por %p150, %p151
      %p154 = scmp.ne.s32.totalorder %s137, %s153
      %p155 = scmp.eq.s32.totalorder %s35, 0
      %p156 = por %p154, %p155
      %s157 = ssub.s32 %s36, %s48
      %s158 = ssub.s32 %s37, %s44
      %s159 = sor.u32 %s157, %s158
      %p160 = scmp.eq.s32.totalorder %s159, 0
      %s162 = sadd.s32 %s161, 1
      %s163 = scalar_select %p160, %s161, %s162
      %p166 = pneg %p160
      %p167 = scmp.eq.s32.totalorder %s29, 3
      %p168 = por %p166, %p167
      %p169 = scmp.ne.s32.totalorder %s161, %s164
      %p170 = scmp.eq.s32.totalorder %s29, 0
      %p171 = por %p169, %p170
      %p172 = scmp.ne.s32.totalorder %s161, %s164
      %p173 = scmp.eq.s32.totalorder %s34, 3
      %p174 = por %p172, %p173
      %p175 = scmp.ne.s32.totalorder %s164, %s165
      %p176 = scmp.eq.s32.totalorder %s34, 0
      %p177 = por %p175, %p176
      %p178 = scmp.ne.s32.totalorder %s164, %s165
      %p179 = scmp.eq.s32.totalorder %s35, 3
      %p180 = por %p178, %p179
      %p182 = scmp.ne.s32.totalorder %s165, %s181
      %p183 = scmp.eq.s32.totalorder %s35, 0
      %p184 = por %p182, %p183
      %s185 = ssub.s32 %s36, %s48
      %s186 = ssub.s32 %s37, %s44
      %s187 = sor.u32 %s185, %s186
      %p188 = scmp.eq.s32.totalorder %s187, 0
      %s190 = sadd.s32 %s189, 1
      %s191 = scalar_select %p188, %s189, %s190
      %p194 = pneg %p188
      %p195 = scmp.eq.s32.totalorder %s29, 3
      %p196 = por %p194, %p195
      %p197 = scmp.ne.s32.totalorder %s189, %s192
      %p198 = scmp.eq.s32.totalorder %s29, 0
      %p199 = por %p197, %p198
      %p200 = scmp.ne.s32.totalorder %s189, %s192
      %p201 = scmp.eq.s32.totalorder %s34, 3
      %p202 = por %p200, %p201
      %p203 = scmp.ne.s32.totalorder %s192, %s193
      %p204 = scmp.eq.s32.totalorder %s34, 0
      %p205 = por %p203, %p204
      %p206 = scmp.ne.s32.totalorder %s192, %s193
      %p207 = scmp.eq.s32.totalorder %s35, 3
      %p208 = por %p206, %p207
      %p210 = scmp.ne.s32.totalorder %s193, %s209
      %p211 = scmp.eq.s32.totalorder %s35, 0
      %p212 = por %p210, %p211
      %s214 = sadd.s32 %s213, 1
      %p217 = scmp.eq.s32.totalorder %s29, 3
      %p218 = scmp.ne.s32.totalorder %s213, %s215
      %p219 = scmp.eq.s32.totalorder %s29, 0
      %p220 = por %p218, %p219
      %p221 = scmp.ne.s32.totalorder %s213, %s215
      %p222 = scmp.eq.s32.totalorder %s34, 3
      %p223 = por %p221, %p222
      %p224 = scmp.ne.s32.totalorder %s215, %s216
      %p225 = scmp.eq.s32.totalorder %s34, 0
      %p226 = por %p224, %p225
      %p227 = scmp.ne.s32.totalorder %s215, %s216
      %p228 = scmp.eq.s32.totalorder %s35, 3
      %p229 = por %p227, %p228
      %p231 = scmp.ne.s32.totalorder %s216, %s230
      %p232 = scmp.eq.s32.totalorder %s35, 0
      %p233 = por %p231, %p232
      %s235 = sadd.s32 %s234, 1
      %p238 = scmp.eq.s32.totalorder %s29, 3
      %p239 = scmp.ne.s32.totalorder %s234, %s236
      %p240 = scmp.eq.s32.totalorder %s29, 0
      %p241 = por %p239, %p240
      %p242 = scmp.ne.s32.totalorder %s234, %s236
      %p243 = scmp.eq.s32.totalorder %s34, 3
      %p244 = por %p242, %p243
      %p245 = scmp.ne.s32.totalorder %s236, %s237
      %p246 = scmp.eq.s32.totalorder %s34, 0
      %p247 = por %p245, %p246
      %p248 = scmp.ne.s32.totalorder %s236, %s237
      %p249 = scmp.eq.s32.totalorder %s35, 3
      %p250 = por %p248, %p249
      %p252 = scmp.ne.s32.totalorder %s237, %s251
      %p253 = scmp.eq.s32.totalorder %s35, 0
      %p254 = por %p252, %p253
      %s256 = sadd.s32 %s255, 1
      %p259 = scmp.eq.s32.totalorder %s29, 3
      %p260 = scmp.ne.s32.totalorder %s255, %s257
      %p261 = scmp.eq.s32.totalorder %s29, 0
      %p262 = por %p260, %p261
      %p263 = scmp.ne.s32.totalorder %s255, %s257
      %p264 = scmp.eq.s32.totalorder %s34, 3
      %p265 = por %p263, %p264
      %p266 = scmp.ne.s32.totalorder %s257, %s258
      %p267 = scmp.eq.s32.totalorder %s34, 0
      %p268 = por %p266, %p267
      %p269 = scmp.ne.s32.totalorder %s257, %s258
      %p270 = scmp.eq.s32.totalorder %s35, 3
      %p271 = por %p269, %p270
      %p273 = scmp.ne.s32.totalorder %s258, %s272
      %p274 = scmp.eq.s32.totalorder %s35, 0
      %p275 = por %p273, %p274
      %s277 = sadd.s32 %s276, 1
      %p280 = scmp.eq.s32.totalorder %s29, 3
      %p281 = scmp.ne.s32.totalorder %s276, %s278
      %p282 = scmp.eq.s32.totalorder %s29, 0
      %p283 = por %p281, %p282
      %p284 = scmp.ne.s32.totalorder %s276, %s278
      %p285 = scmp.eq.s32.totalorder %s34, 3
      %p286 = por %p284, %p285
      %p287 = scmp.ne.s32.totalorder %s278, %s279
      %p288 = scmp.eq.s32.totalorder %s34, 0
      %p289 = por %p287, %p288
      %p290 = scmp.ne.s32.totalorder %s278, %s279
      %p291 = scmp.eq.s32.totalorder %s35, 3
      %p292 = por %p290, %p291
      %p294 = scmp.ne.s32.totalorder %s279, %s293
      %p295 = scmp.eq.s32.totalorder %s35, 0
      %p296 = por %p294, %p295
      %s298 = sadd.s32 %s297, 1
      %p301 = scmp.eq.s32.totalorder %s29, 3
      %p302 = scmp.ne.s32.totalorder %s297, %s299
      %p303 = scmp.eq.s32.totalorder %s29, 0
      %p304 = por %p302, %p303
      %p305 = scmp.ne.s32.totalorder %s297, %s299
      %p306 = scmp.eq.s32.totalorder %s34, 3
      %p307 = por %p305, %p306
      %p308 = scmp.ne.s32.totalorder %s299, %s300
      %p309 = scmp.eq.s32.totalorder %s34, 0
      %p310 = por %p308, %p309
      %p311 = scmp.ne.s32.totalorder %s299, %s300
      %p312 = scmp.eq.s32.totalorder %s35, 3
      %p313 = por %p311, %p312
      %p315 = scmp.ne.s32.totalorder %s300, %s314
      %p316 = scmp.eq.s32.totalorder %s35, 0
      %p317 = por %p315, %p316
      %s319 = sadd.s32 %s318, 1
      %p322 = scmp.eq.s32.totalorder %s29, 3
      %p323 = scmp.ne.s32.totalorder %s318, %s320
      %p324 = scmp.eq.s32.totalorder %s29, 0
      %p325 = por %p323, %p324
      %p326 = scmp.ne.s32.totalorder %s318, %s320
      %p327 = scmp.eq.s32.totalorder %s34, 3
      %p328 = por %p326, %p327
      %p329 = scmp.ne.s32.totalorder %s320, %s321
      %p330 = scmp.eq.s32.totalorder %s34, 0
      %p331 = por %p329, %p330
      %p332 = scmp.ne.s32.totalorder %s320, %s321
      %p333 = scmp.eq.s32.totalorder %s35, 3
      %p334 = por %p332, %p333
      %p336 = scmp.ne.s32.totalorder %s321, %s335
      %p337 = scmp.eq.s32.totalorder %s35, 0
      %p338 = por %p336, %p337
      %s340 = sadd.s32 %s339, 1
      %p343 = scmp.eq.s32.totalorder %s29, 3
      %p344 = scmp.ne.s32.totalorder %s339, %s341
      %p345 = scmp.eq.s32.totalorder %s29, 0
      %p346 = por %p344, %p345
      %p347 = scmp.ne.s32.totalorder %s339, %s341
      %p348 = scmp.eq.s32.totalorder %s34, 3
      %p349 = por %p347, %p348
      %p350 = scmp.ne.s32.totalorder %s341, %s342
      %p351 = scmp.eq.s32.totalorder %s34, 0
      %p352 = por %p350, %p351
      %p353 = scmp.ne.s32.totalorder %s341, %s342
      %p354 = scmp.eq.s32.totalorder %s35, 3
      %p355 = por %p353, %p354
      %p357 = scmp.ne.s32.totalorder %s342, %s356
      %p358 = scmp.eq.s32.totalorder %s35, 0
      %p359 = por %p357, %p358
      %s361 = sadd.s32 %s360, 1
      %p364 = scmp.eq.s32.totalorder %s29, 3
      %p365 = scmp.ne.s32.totalorder %s360, %s362
      %p366 = scmp.eq.s32.totalorder %s29, 0
      %p367 = por %p365, %p366
      %p368 = scmp.ne.s32.totalorder %s360, %s362
      %p369 = scmp.eq.s32.totalorder %s34, 3
      %p370 = por %p368, %p369
      %p371 = scmp.ne.s32.totalorder %s362, %s363
      %p372 = scmp.eq.s32.totalorder %s34, 0
      %p373 = por %p371, %p372
      %p374 = scmp.ne.s32.totalorder %s362, %s363
      %p375 = scmp.eq.s32.totalorder %s35, 3
      %p376 = por %p374, %p375
      %p378 = scmp.ne.s32.totalorder %s363, %s377
      %p379 = scmp.eq.s32.totalorder %s35, 0
      %p380 = por %p378, %p379
      %s381 = ssub.s32 %s36, %s48
      %s382 = ssub.s32 %s37, %s44
      %s383 = sor.u32 %s381, %s382
      %p384 = scmp.eq.s32.totalorder %s383, 0
      %s386 = sadd.s32 %s385, 1
      %s387 = scalar_select %p384, %s385, %s386
      %p390 = pneg %p384
      %p391 = scmp.eq.s32.totalorder %s29, 3
      %p392 = por %p390, %p391
      %p393 = scmp.ne.s32.totalorder %s385, %s388
      %p394 = scmp.eq.s32.totalorder %s29, 0
      %p395 = por %p393, %p394
      %p396 = scmp.ne.s32.totalorder %s385, %s388
      %p397 = scmp.eq.s32.totalorder %s34, 3
      %p398 = por %p396, %p397
      %p399 = scmp.ne.s32.totalorder %s388, %s389
      %p400 = scmp.eq.s32.totalorder %s34, 0
      %p401 = por %p399, %p400
      %p402 = scmp.ne.s32.totalorder %s388, %s389
      %p403 = scmp.eq.s32.totalorder %s35, 3
      %p404 = por %p402, %p403
      %p406 = scmp.ne.s32.totalorder %s389, %s405
      %p407 = scmp.eq.s32.totalorder %s35, 0
      %p408 = por %p406, %p407
      %s409 = ssub.s32 %s36, %s48
      %s410 = ssub.s32 %s37, %s44
      %s411 = sor.u32 %s409, %s410
      %p412 = scmp.eq.s32.totalorder %s411, 0
      %s414 = sadd.s32 %s413, 1
      %s415 = scalar_select %p412, %s413, %s414
      %p418 = pneg %p412
      %p419 = scmp.eq.s32.totalorder %s29, 3
      %p420 = por %p418, %p419
      %p421 = scmp.ne.s32.totalorder %s413, %s416
      %p422 = scmp.eq.s32.totalorder %s29, 0
      %p423 = por %p421, %p422
      %p424 = scmp.ne.s32.totalorder %s413, %s416
      %p425 = scmp.eq.s32.totalorder %s34, 3
      %p426 = por %p424, %p425
      %p427 = scmp.ne.s32.totalorder %s416, %s417
      %p428 = scmp.eq.s32.totalorder %s34, 0
      %p429 = por %p427, %p428
      %p430 = scmp.ne.s32.totalorder %s416, %s417
      %p431 = scmp.eq.s32.totalorder %s35, 3
      %p432 = por %p430, %p431
      %p434 = scmp.ne.s32.totalorder %s417, %s433
      %p435 = scmp.eq.s32.totalorder %s35, 0
      %p436 = por %p434, %p435
      %s437 = ssub.s32 %s36, %s48
      %s438 = ssub.s32 %s37, %s44
      %s439 = sor.u32 %s437, %s438
      %p440 = scmp.eq.s32.totalorder %s439, 0
      %s442 = sadd.s32 %s441, 1
      %s443 = scalar_select %p440, %s441, %s442
      %p446 = pneg %p440
      %p447 = scmp.eq.s32.totalorder %s29, 3
      %p448 = por %p446, %p447
      %p449 = scmp.ne.s32.totalorder %s441, %s444
      %p450 = scmp.eq.s32.totalorder %s29, 0
      %p451 = por %p449, %p450
      %p452 = scmp.ne.s32.totalorder %s441, %s444
      %p453 = scmp.eq.s32.totalorder %s34, 3
      %p454 = por %p452, %p453
      %p455 = scmp.ne.s32.totalorder %s444, %s445
      %p456 = scmp.eq.s32.totalorder %s34, 0
      %p457 = por %p455, %p456
      %p458 = scmp.ne.s32.totalorder %s444, %s445
      %p459 = scmp.eq.s32.totalorder %s35, 3
      %p460 = por %p458, %p459
      %p462 = scmp.ne.s32.totalorder %s445, %s461
      %p463 = scmp.eq.s32.totalorder %s35, 0
      %p464 = por %p462, %p463
      %p465 = scmp.le.s32.totalorder 1, %s29
      %p466 = scmp.lt.s32.totalorder %s29, 5
      %p467 = pnand %p465, %p466
      %p468 = pneg %p467
      // Predicated region
      $region9: #{tpu_custom_call.1} parent=5 // pred_check
        _
      $region10: #{tpu_custom_call.1} parent=5 // pred_check_branch
        %470 = sbr.rel (%p467) target = $region12
      $region11: #{tpu_custom_call.1} parent=5 // pred_region
        %s471 = ssub.s32 %s29, 1
        // Predicated region
        $region13: #{tpu_custom_call.1} parent=11 // pred_check
          %p472 = pneg %p226
        $region14: #{tpu_custom_call.1} parent=11 // pred_check_branch
          %474 = sbr.rel (%p472) target = $region16
        $region15: #{tpu_custom_call.1} parent=11 // pred_region
          _
        $region16: #{tpu_custom_call.1} parent=11 // pred_fallthru
          _
        // Predicated region
        $region17: #{tpu_custom_call.1} parent=11 // pred_check
          %p475 = pneg %p247
        $region18: #{tpu_custom_call.1} parent=11 // pred_check_branch
          %477 = sbr.rel (%p475) target = $region20
        $region19: #{tpu_custom_call.1} parent=11 // pred_region
          _
        $region20: #{tpu_custom_call.1} parent=11 // pred_fallthru
          _
        // Predicated region
        $region21: #{tpu_custom_call.1} parent=11 // pred_check
          %p478 = pneg %p268
        $region22: #{tpu_custom_call.1} parent=11 // pred_check_branch
          %480 = sbr.rel (%p478) target = $region24
        $region23: #{tpu_custom_call.1} parent=11 // pred_region
          _
        $region24: #{tpu_custom_call.1} parent=11 // pred_fallthru
          _
        // Predicated region
        $region25: #{tpu_custom_call.1} parent=11 // pred_check
          %p481 = pneg %p289
        $region26: #{tpu_custom_call.1} parent=11 // pred_check_branch
          %483 = sbr.rel (%p481) target = $region28
        $region27: #{tpu_custom_call.1} parent=11 // pred_region
          _
        $region28: #{tpu_custom_call.1} parent=11 // pred_fallthru
          _
        // Predicated region
        $region29: #{tpu_custom_call.1} parent=11 // pred_check
          %p484 = pneg %p310
        $region30: #{tpu_custom_call.1} parent=11 // pred_check_branch
          %486 = sbr.rel (%p484) target = $region32
        $region31: #{tpu_custom_call.1} parent=11 // pred_region
          _
        $region32: #{tpu_custom_call.1} parent=11 // pred_fallthru
          _
        // Predicated region
        $region33: #{tpu_custom_call.1} parent=11 // pred_check
          %p487 = pneg %p331
        $region34: #{tpu_custom_call.1} parent=11 // pred_check_branch
          %489 = sbr.rel (%p487) target = $region36
        $region35: #{tpu_custom_call.1} parent=11 // pred_region
          _
        $region36: #{tpu_custom_call.1} parent=11 // pred_fallthru
          _
        // Predicated region
        $region37: #{tpu_custom_call.1} parent=11 // pred_check
          %p490 = pneg %p352
        $region38: #{tpu_custom_call.1} parent=11 // pred_check_branch
          %492 = sbr.rel (%p490) target = $region40
        $region39: #{tpu_custom_call.1} parent=11 // pred_region
          _
        $region40: #{tpu_custom_call.1} parent=11 // pred_fallthru
          _
        // Predicated region
        $region41: #{tpu_custom_call.1} parent=11 // pred_check
          %p493 = pneg %p373
        $region42: #{tpu_custom_call.1} parent=11 // pred_check_branch
          %495 = sbr.rel (%p493) target = $region44
        $region43: #{tpu_custom_call.1} parent=11 // pred_region
          _
        $region44: #{tpu_custom_call.1} parent=11 // pred_fallthru
          _
      $region12: #{tpu_custom_call.1} parent=5 // pred_fallthru
        _
      %p496 = scmp.lt.s32.totalorder %s29, 4
      // Predicated region
      $region45: #{tpu_custom_call.1} parent=5 // pred_check
        %p497 = pneg %p496
      $region46: #{tpu_custom_call.1} parent=5 // pred_check_branch
        %499 = sbr.rel (%p497) target = $region48
      $region47: #{tpu_custom_call.1} parent=5 // pred_region
        // Predicated region
        $region49: #{tpu_custom_call.1} parent=47 // pred_check
          %p500 = pneg %p61
        $region50: #{tpu_custom_call.1} parent=47 // pred_check_branch
          %502 = sbr.rel (%p500) target = $region52
        $region51: #{tpu_custom_call.1} parent=47 // pred_region
          %p503 = scmp.lt.s32.totalorder %s36, 1
          %s504 = scalar_select %p503, %s36, 1
          %s505 = smul.addr %s504, 2
          %s506 = smul.addr %s505, 8
          %s507 = scalar_lea.vmem %s0, %s506
        $region52: #{tpu_custom_call.1} parent=47 // pred_fallthru
          _
        // Predicated region
        $region53: #{tpu_custom_call.1} parent=47 // pred_check
          %p508 = pneg %p89
        $region54: #{tpu_custom_call.1} parent=47 // pred_check_branch
          %510 = sbr.rel (%p508) target = $region56
        $region55: #{tpu_custom_call.1} parent=47 // pred_region
          %s511 = smul.u32 8, %s37
          %p512 = scmp.lt.s32.totalorder %s36, 1
          %s513 = scalar_select %p512, %s36, 1
          %p514 = scmp.lt.s32.totalorder %s511, 15
          %s515 = scalar_select %p514, %s511, 15
          %s516 = smul.addr %s513, 16
          %s517 = sadd.s32 %s515, %s516
          %s518 = smul.addr %s517, 4
          %s519 = scalar_lea.vmem %s1, %s518
          %s520 = smul.u32 8, %s37
        $region56: #{tpu_custom_call.1} parent=47 // pred_fallthru
          _
        // Predicated region
        $region57: #{tpu_custom_call.1} parent=47 // pred_check
          %p521 = pneg %p115
        $region58: #{tpu_custom_call.1} parent=47 // pred_check_branch
          %523 = sbr.rel (%p521) target = $region60
        $region59: #{tpu_custom_call.1} parent=47 // pred_region
          %p524 = scmp.lt.s32.totalorder %s36, 1
          %s525 = scalar_select %p524, %s36, 1
          %s526 = smul.addr %s525, 6
          %s527 = smul.addr %s526, 8
          %s528 = scalar_lea.vmem %s2, %s527
        $region60: #{tpu_custom_call.1} parent=47 // pred_fallthru
          _
        // Predicated region
        $region61: #{tpu_custom_call.1} parent=47 // pred_check
          %p529 = pneg %p143
        $region62: #{tpu_custom_call.1} parent=47 // pred_check_branch
          %531 = sbr.rel (%p529) target = $region64
        $region63: #{tpu_custom_call.1} parent=47 // pred_region
          %s532 = smul.u32 16, %s37
          %p533 = scmp.lt.s32.totalorder %s36, 1
          %s534 = scalar_select %p533, %s36, 1
          %p535 = scmp.lt.s32.totalorder %s532, 31
          %s536 = scalar_select %p535, %s532, 31
          %s537 = smul.addr %s534, 32
          %s538 = sadd.s32 %s536, %s537
          %s539 = smul.addr %s538, 8
          %s540 = scalar_lea.vmem %s3, %s539
          %s541 = smul.u32 16, %s37
        $region64: #{tpu_custom_call.1} parent=47 // pred_fallthru
          _
        // Predicated region
        $region65: #{tpu_custom_call.1} parent=47 // pred_check
          %p542 = pneg %p171
        $region66: #{tpu_custom_call.1} parent=47 // pred_check_branch
          %544 = sbr.rel (%p542) target = $region68
        $region67: #{tpu_custom_call.1} parent=47 // pred_region
          %s545 = smul.u32 8, %s37
          %p546 = scmp.lt.s32.totalorder %s36, 1
          %s547 = scalar_select %p546, %s36, 1
          %p548 = scmp.lt.s32.totalorder %s545, 15
          %s549 = scalar_select %p548, %s545, 15
          %s550 = smul.addr %s549, 2
          %s551 = smul.addr %s547, 32
          %s552 = sadd.s32 %s550, %s551
          %s553 = smul.addr %s552, 8
          %s554 = scalar_lea.vmem %s4, %s553
          %s555 = smul.u32 8, %s37
        $region68: #{tpu_custom_call.1} parent=47 // pred_fallthru
          _
        // Predicated region
        $region69: #{tpu_custom_call.1} parent=47 // pred_check
          %p556 = pneg %p199
        $region70: #{tpu_custom_call.1} parent=47 // pred_check_branch
          %558 = sbr.rel (%p556) target = $region72
        $region71: #{tpu_custom_call.1} parent=47 // pred_region
          %s559 = smul.u32 8, %s37
          %p560 = scmp.lt.s32.totalorder %s36, 1
          %s561 = scalar_select %p560, %s36, 1
          %p562 = scmp.lt.s32.totalorder %s559, 15
          %s563 = scalar_select %p562, %s559, 15
          %s564 = smul.addr %s563, 2
          %s565 = smul.addr %s561, 32
          %s566 = sadd.s32 %s564, %s565
          %s567 = smul.addr %s566, 8
          %s568 = scalar_lea.vmem %s5, %s567
          %s569 = smul.u32 8, %s37
        $region72: #{tpu_custom_call.1} parent=47 // pred_fallthru
          _
      $region48: #{tpu_custom_call.1} parent=5 // pred_fallthru
        _
      %p570 = scmp.le.s32.totalorder 1, %s29
      %p571 = scmp.lt.s32.totalorder %s29, 5
      %p572 = pnand %p570, %p571
      %p573 = pneg %p572
      // Predicated region
      $region73: #{tpu_custom_call.1} parent=5 // pred_check
        _
      $region74: #{tpu_custom_call.1} parent=5 // pred_check_branch
        %575 = sbr.rel (%p572) target = $region76
      $region75: #{tpu_custom_call.1} parent=5 // pred_region
        %s576 = ssub.s32 %s29, 1
        %p577 = scmp.lt.s32.totalorder %s38, 1
        %s578 = scalar_select %p577, %s38, 1
        %s579 = smul.addr %s578, 2
        %s580 = smul.addr %s579, 8
        %s581 = scalar_lea.vmem %s0, %s580
        %p582 = pneg %p67
        %p583 = pneg %p64
        %s584 = smul.u32 8, %s39
        %p585 = scmp.lt.s32.totalorder %s38, 1
        %s586 = scalar_select %p585, %s38, 1
        %p587 = scmp.lt.s32.totalorder %s584, 15
        %s588 = scalar_select %p587, %s584, 15
        %s589 = smul.addr %s586, 16
        %s590 = sadd.s32 %s588, %s589
        %s591 = smul.addr %s590, 4
        %s592 = scalar_lea.vmem %s1, %s591
        %p593 = pneg %p95
        %p594 = pneg %p92
        %p595 = scmp.lt.s32.totalorder %s38, 1
        %s596 = scalar_select %p595, %s38, 1
        %s597 = smul.addr %s596, 6
        %s598 = smul.addr %s597, 8
        %s599 = scalar_lea.vmem %s2, %s598
        %p600 = pneg %p121
        %p601 = pneg %p118
        %s602 = smul.u32 16, %s39
        %p603 = scmp.lt.s32.totalorder %s38, 1
        %s604 = scalar_select %p603, %s38, 1
        %p605 = scmp.lt.s32.totalorder %s602, 31
        %s606 = scalar_select %p605, %s602, 31
        %s607 = smul.addr %s604, 32
        %s608 = sadd.s32 %s606, %s607
        %s609 = smul.addr %s608, 8
        %s610 = scalar_lea.vmem %s3, %s609
        %p611 = pneg %p149
        %p612 = pneg %p146
        %s613 = smul.u32 8, %s39
        %p614 = scmp.lt.s32.totalorder %s38, 1
        %s615 = scalar_select %p614, %s38, 1
        %p616 = scmp.lt.s32.totalorder %s613, 15
        %s617 = scalar_select %p616, %s613, 15
        %s618 = smul.addr %s617, 2
        %s619 = smul.addr %s615, 32
        %s620 = sadd.s32 %s618, %s619
        %s621 = smul.addr %s620, 8
        %s622 = scalar_lea.vmem %s4, %s621
        %p623 = pneg %p177
        %p624 = pneg %p174
        %s625 = smul.u32 8, %s39
        %p626 = scmp.lt.s32.totalorder %s38, 1
        %s627 = scalar_select %p626, %s38, 1
        %p628 = scmp.lt.s32.totalorder %s625, 15
        %s629 = scalar_select %p628, %s625, 15
        %s630 = smul.addr %s629, 2
        %s631 = smul.addr %s627, 32
        %s632 = sadd.s32 %s630, %s631
        %s633 = smul.addr %s632, 8
        %s634 = scalar_lea.vmem %s5, %s633
        %p635 = pneg %p205
        %p636 = pneg %p202
        %p637 = pneg %p226
        %p638 = pneg %p223
        %p639 = pneg %p247
        %p640 = pneg %p244
        %p641 = pneg %p268
        %p642 = pneg %p265
        %p643 = pneg %p289
        %p644 = pneg %p286
        %p645 = pneg %p310
        %p646 = pneg %p307
        %p647 = pneg %p331
        %p648 = pneg %p328
        %p649 = pneg %p352
        %p650 = pneg %p349
        %p651 = pneg %p373
        %p652 = pneg %p370
        %p653 = pneg %p401
        %p654 = pneg %p398
        %s655 = sand.u32 %s388, 1
        %s656 = scalar_lea.sflag [#allocation4], %s655
        %s657 = sand.u32 %s388, 1
        %s658 = smul.addr %s657, 8
        %s659 = scalar_lea.vmem [#allocation3], %s658
        %p660 = pneg %p429
        %p661 = pneg %p426
        %s662 = sand.u32 %s34, 1
        %s663 = scalar_lea.sflag [#allocation6], %s662
        %s664 = sand.u32 %s416, 1
        %s665 = smul.addr %s664, 8
        %s666 = scalar_lea.vmem [#allocation5], %s665
        %p667 = pneg %p457
        %p668 = pneg %p454
        %s669 = sand.u32 %s34, 1
        %s670 = scalar_lea.sflag [#allocation6], %s669
        %s671 = sand.u32 %s444, 1
        %s672 = smul.addr %s671, 128
        %s673 = scalar_lea.vmem [#allocation7], %s672
        %p674 = scmp.lt.s32.totalorder %s38, 1
        %s675 = scalar_select %p674, %s38, 1
        %s676 = smul.addr %s675, 2
        %s677 = smul.addr %s676, 8
        %s678 = scalar_lea.vmem %s0, %s677
        %s679 = smul.u32 8, %s39
        %p680 = scmp.lt.s32.totalorder %s38, 1
        %s681 = scalar_select %p680, %s38, 1
        %p682 = scmp.lt.s32.totalorder %s679, 15
        %s683 = scalar_select %p682, %s679, 15
        %s684 = smul.addr %s681, 16
        %s685 = sadd.s32 %s683, %s684
        %s686 = smul.addr %s685, 4
        %s687 = scalar_lea.vmem %s1, %s686
        %s688 = smul.u32 8, %s39
        %p689 = scmp.lt.s32.totalorder %s38, 1
        %s690 = scalar_select %p689, %s38, 1
        %s691 = smul.addr %s690, 6
        %s692 = smul.addr %s691, 8
        %s693 = scalar_lea.vmem %s2, %s692
        %s694 = smul.u32 16, %s39
        %p695 = scmp.lt.s32.totalorder %s38, 1
        %s696 = scalar_select %p695, %s38, 1
        %p697 = scmp.lt.s32.totalorder %s694, 31
        %s698 = scalar_select %p697, %s694, 31
        %s699 = smul.addr %s696, 32
        %s700 = sadd.s32 %s698, %s699
        %s701 = smul.addr %s700, 8
        %s702 = scalar_lea.vmem %s3, %s701
        %s703 = smul.u32 16, %s39
        %s704 = smul.u32 8, %s39
        %p705 = scmp.lt.s32.totalorder %s38, 1
        %s706 = scalar_select %p705, %s38, 1
        %p707 = scmp.lt.s32.totalorder %s704, 15
        %s708 = scalar_select %p707, %s704, 15
        %s709 = smul.addr %s708, 2
        %s710 = smul.addr %s706, 32
        %s711 = sadd.s32 %s709, %s710
        %s712 = smul.addr %s711, 8
        %s713 = scalar_lea.vmem %s4, %s712
        %s714 = smul.u32 8, %s39
        %s715 = smul.u32 8, %s39
        %p716 = scmp.lt.s32.totalorder %s38, 1
        %s717 = scalar_select %p716, %s38, 1
        %p718 = scmp.lt.s32.totalorder %s715, 15
        %s719 = scalar_select %p718, %s715, 15
        %s720 = smul.addr %s719, 2
        %s721 = smul.addr %s717, 32
        %s722 = sadd.s32 %s720, %s721
        %s723 = smul.addr %s722, 8
        %s724 = scalar_lea.vmem %s5, %s723
        %s725 = smul.u32 8, %s39
        %s726 = smul.u32 8, %s39
        %p728 = scmp.eq.s32.totalorder %s39, 0
        // Predicated region
        $region77: #{tpu_custom_call.1} parent=75 // pred_check
          %p729 = pneg %p728
        $region78: #{tpu_custom_call.1} parent=75 // pred_check_branch
          %731 = sbr.rel (%p729) target = $region80
        $region79: #{tpu_custom_call.1} parent=75 // pred_region
          %v732 = vld [vmem:[%s678] sm:$0xff]
          %v733 = vld [vmem:[%s678 + $0x8] sm:$0xff]
          %v734 = vpack.c.bf16 %v733, %v732
          %v735 = vld [vmem:[%s6] sm:$0xff]
          %v736 = vld [vmem:[%s6 + $0x8] sm:$0xff]
          %v737 = vld [vmem:[%s6 + $0x10] sm:$0xff]
          %v738 = vld [vmem:[%s6 + $0x18] sm:$0xff]
          %v739 = vld [vmem:[%s7] sm:$0x3]
          %v741 = vlaneseq
          %v742 = vshrl.u32 %v741, 7
          %v743 = vsub.s32 0, %v742
          %v744 = vrot.slane %v739, %v743
          %v745 = vlaneseq
          %v746 = vshrl.u32 %v745, 7
          %v747 = vsub.s32 1, %v746
          %v748 = vrot.slane %v739, %v747
          %v755 = vunpack.c.l.b16 %v735
          %v756 = vunpack.c.h.b16 %v735
          %v757 = vunpack.c.l.b16 %v736
          %v758 = vunpack.c.h.b16 %v736
          %v759 = vunpack.c.l.b16 %v737
          %v760 = vunpack.c.h.b16 %v737
          %v761 = vunpack.c.l.b16 %v738
          %v762 = vunpack.c.h.b16 %v738
          %v763 = vpack.c.b16 %v757, %v755
          %v764 = vpack.c.b16 %v758, %v756
          %v765 = vpack.c.b16 %v761, %v759
          %v766 = vpack.c.b16 %v762, %v760
          %vm771 = vcmask 261120
          %v773 = vsel %vm771, %v734, 0
          %775 = vmatprep.subr.bf16.mxu0 %v764
          %776 = vmatpush1.bf16.msra.mxu0 %v763
          %777 = vmatprep.subr.bf16.mxu0 %v766
          %778 = vmatpush1.bf16.msra.mxu0 %v765
          %779 = vmatprep.subr.bf16.mxu0 0
          %780 = vmatpush1.bf16.msra.mxu0 0
          %781 = vmatprep.subr.bf16.mxu0 0
          %782 = vmatpush1.bf16.msra.mxu0 0
          %783 = vmatprep.subr.bf16.mxu0 0
          %784 = vmatpush1.bf16.msra.mxu0 0
          %785 = vmatprep.subr.bf16.mxu0 0
          %786 = vmatpush1.bf16.msra.mxu0 0
          %787 = vmatprep.subr.bf16.mxu0 0
          %788 = vmatpush1.bf16.msra.mxu0 0
          %789 = vmatprep.subr.bf16.mxu0 0
          %790 = vmatpush1.bf16.msra.mxu0 0
          %791 = vmatprep.subr.bf16.mxu0 0
          %792 = vmatpush1.bf16.msra.mxu0 0
          %793 = vmatprep.subr.bf16.mxu0 0
          %794 = vmatpush1.bf16.msra.mxu0 0
          %795 = vmatprep.subr.bf16.mxu0 0
          %796 = vmatpush1.bf16.msra.mxu0 0
          %797 = vmatprep.subr.bf16.mxu0 0
          %798 = vmatpush1.bf16.msra.mxu0 0
          %799 = vmatprep.subr.bf16.mxu0 0
          %800 = vmatpush1.bf16.msra.mxu0 0
          %801 = vmatprep.subr.bf16.mxu0 0
          %802 = vmatpush1.bf16.msra.mxu0 0
          %803 = vmatprep.subr.bf16.mxu0 0
          %804 = vmatpush1.bf16.msra.mxu0 0
          %805 = vmatprep.subr.bf16.mxu0 0
          %806 = vmatpush1.bf16.msra.mxu0 0
          %807 = vmatprep.mubr.bf16.mxu0 0
          %808 = vmatmul.mubr.bf16.gmra.mrb[0].mxu0 %v773
          %v809 = vpop.f32.mrb[0].mxu0
          %v810 = vadd.f32 %v744, %v809
          %v811 = vpop.f32.mrb[0].mxu0
          %v812 = vadd.f32 %v748, %v811
          %v813 = vpop.f32.mrb[0].mxu0
          %v814 = vadd.f32 %v744, %v813
          %v815 = vpop.f32.mrb[0].mxu0
          %v816 = vadd.f32 %v748, %v815
          %817 = vdwg.mxu0
          %818 = vst [vmem:[#allocation2] sm:$0xff] %v810
          %819 = vst.msk [vmem:[#allocation2 + $0x8] sm:$0xff] %vm771, %v812
          %820 = vst [vmem:[#allocation2 + $0x10] sm:$0xff] %v814
          %821 = vst.msk [vmem:[#allocation2 + $0x18] sm:$0xff] %vm771, %v816
        $region80: #{tpu_custom_call.1} parent=75 // pred_fallthru
          _
        %s822 = smul.u32 %s39, 8
        %s823 = sshra.s32 %s822, 3
        %s824 = sand.u32 %s822, 7
        %s825 = smul.u32 %s823, 2
        %s826 = smul.addr %s825, 8
        %s827 = scalar_lea.vmem [#allocation2], %s826
        %v828 = vld [vmem:[%s827] sm:$0xff]
        %v829 = vld [vmem:[#allocation2] sm:$0xff]
        %v830 = vld [vmem:[#allocation2 + $0x10] sm:$0xff]
        %v831 = vld [vmem:[#allocation2 + $0x8] sm:$0xff]
        %v832 = vld [vmem:[#allocation2 + $0x18] sm:$0xff]
        %v833 = vld [vmem:[%s702] sm:$0xff]
        %v834 = vld [vmem:[%s702 + $0x8] sm:$0xff]
        %v835 = vld [vmem:[%s702 + $0x10] sm:$0xff]
        %v836 = vld [vmem:[%s702 + $0x18] sm:$0xff]
        %v837 = vld [vmem:[%s702 + $0x20] sm:$0xff]
        %v838 = vld [vmem:[%s702 + $0x28] sm:$0xff]
        %v839 = vld [vmem:[%s702 + $0x30] sm:$0xff]
        %v840 = vld [vmem:[%s702 + $0x38] sm:$0xff]
        %v841 = vld [vmem:[%s702 + $0x40] sm:$0xff]
        %v842 = vld [vmem:[%s702 + $0x48] sm:$0xff]
        %v843 = vld [vmem:[%s702 + $0x50] sm:$0xff]
        %v844 = vld [vmem:[%s702 + $0x58] sm:$0xff]
        %v845 = vld [vmem:[%s702 + $0x60] sm:$0xff]
        %v846 = vld [vmem:[%s702 + $0x68] sm:$0xff]
        %v847 = vld [vmem:[%s702 + $0x70] sm:$0xff]
        %v848 = vld [vmem:[%s702 + $0x78] sm:$0xff]
        %v849 = vpack.c.bf16 %v834, %v833
        %v850 = vpack.c.bf16 %v836, %v835
        %v851 = vpack.c.bf16 %v838, %v837
        %v852 = vpack.c.bf16 %v840, %v839
        %v853 = vpack.c.bf16 %v842, %v841
        %v854 = vpack.c.bf16 %v844, %v843
        %v855 = vpack.c.bf16 %v846, %v845
        %v856 = vpack.c.bf16 %v848, %v847
        %v857 = vld [vmem:[%s8] sm:$0xf]
        %v858 = vld [vmem:[%s8 + $0x4] sm:$0xf]
        %v859 = vld [vmem:[%s8 + $0x8] sm:$0xf]
        %v860 = vld [vmem:[%s8 + $0xc] sm:$0xf]
        %v861 = vld [vmem:[%s9] sm:$0x1]
        %v863 = vlaneseq
        %v864 = vshrl.u32 %v863, 7
        %v865 = vsub.s32 0, %v864
        %v866 = vrot.slane %v861, %v865
        %v872 = vunpack.c.l.b16 %v857
        %v873 = vunpack.c.l.b16 %v858
        %v874 = vunpack.c.l.b16 %v859
        %v875 = vunpack.c.l.b16 %v860
        %v876 = vpack.c.b16 %v873, %v872
        %v877 = vpack.c.b16 %v875, %v874
        %vm880 = vcmask 261120
        %v882 = vsel %vm880, %v849, 0
        %v885 = vsel %vm880, %v850, 0
        %v888 = vsel %vm880, %v851, 0
        %v891 = vsel %vm880, %v852, 0
        %v894 = vsel %vm880, %v853, 0
        %v897 = vsel %vm880, %v854, 0
        %v900 = vsel %vm880, %v855, 0
        %v903 = vsel %vm880, %v856, 0
        %905 = vmatprep.subr.bf16.mxu0 0
        %906 = vmatpush1.bf16.msra.mxu0 %v876
        %907 = vmatprep.subr.bf16.mxu0 0
        %908 = vmatpush1.bf16.msra.mxu0 %v877
        %909 = vmatprep.subr.bf16.mxu0 0
        %910 = vmatpush1.bf16.msra.mxu0 0
        %911 = vmatprep.subr.bf16.mxu0 0
        %912 = vmatpush1.bf16.msra.mxu0 0
        %913 = vmatprep.subr.bf16.mxu0 0
        %914 = vmatpush1.bf16.msra.mxu0 0
        %915 = vmatprep.subr.bf16.mxu0 0
        %916 = vmatpush1.bf16.msra.mxu0 0
        %917 = vmatprep.subr.bf16.mxu0 0
        %918 = vmatpush1.bf16.msra.mxu0 0
        %919 = vmatprep.subr.bf16.mxu0 0
        %920 = vmatpush1.bf16.msra.mxu0 0
        %921 = vmatprep.subr.bf16.mxu0 0
        %922 = vmatpush1.bf16.msra.mxu0 0
        %923 = vmatprep.subr.bf16.mxu0 0
        %924 = vmatpush1.bf16.msra.mxu0 0
        %925 = vmatprep.subr.bf16.mxu0 0
        %926 = vmatpush1.bf16.msra.mxu0 0
        %927 = vmatprep.subr.bf16.mxu0 0
        %928 = vmatpush1.bf16.msra.mxu0 0
        %929 = vmatprep.subr.bf16.mxu0 0
        %930 = vmatpush1.bf16.msra.mxu0 0
        %931 = vmatprep.subr.bf16.mxu0 0
        %932 = vmatpush1.bf16.msra.mxu0 0
        %933 = vmatprep.subr.bf16.mxu0 0
        %934 = vmatpush1.bf16.msra.mxu0 0
        %935 = vmatprep.subr.bf16.mxu0 0
        %936 = vmatpush1.bf16.msra.mxu0 0
        %937 = vmatprep.mubr.bf16.mxu0 0
        %938 = vmatmul.mubr.bf16.gmra.mrb[0].mxu0 %v882
        %v939 = vpop.f32.mrb[0].mxu0
        %v940 = vadd.f32 %v866, %v939
        %v941 = vpop.f32.mrb[0].mxu0
        %v942 = vpop.f32.mrb[0].mxu0
        %v943 = vadd.f32 %v866, %v942
        %v944 = vpop.f32.mrb[0].mxu0
        %945 = vmatprep.mubr.bf16.mxu0 0
        %946 = vmatmul.mubr.bf16.gmra.mrb[0].mxu0 %v885
        %v947 = vpop.f32.mrb[0].mxu0
        %v948 = vadd.f32 %v866, %v947
        %v949 = vpop.f32.mrb[0].mxu0
        %v950 = vpop.f32.mrb[0].mxu0
        %v951 = vadd.f32 %v866, %v950
        %v952 = vpop.f32.mrb[0].mxu0
        %953 = vmatprep.mubr.bf16.mxu0 0
        %954 = vmatmul.mubr.bf16.gmra.mrb[0].mxu0 %v888
        %v955 = vpop.f32.mrb[0].mxu0
        %v956 = vadd.f32 %v866, %v955
        %v957 = vpop.f32.mrb[0].mxu0
        %v958 = vpop.f32.mrb[0].mxu0
        %v959 = vadd.f32 %v866, %v958
        %v960 = vpop.f32.mrb[0].mxu0
        %961 = vmatprep.mubr.bf16.mxu0 0
        %962 = vmatmul.mubr.bf16.gmra.mrb[0].mxu0 %v891
        %v963 = vpop.f32.mrb[0].mxu0
        %v964 = vadd.f32 %v866, %v963
        %v965 = vpop.f32.mrb[0].mxu0
        %v966 = vpop.f32.mrb[0].mxu0
        %v967 = vadd.f32 %v866, %v966
        %v968 = vpop.f32.mrb[0].mxu0
        %969 = vmatprep.mubr.bf16.mxu0 0
        %970 = vmatmul.mubr.bf16.gmra.mrb[0].mxu0 %v894
        %v971 = vpop.f32.mrb[0].mxu0
        %v972 = vadd.f32 %v866, %v971
        %v973 = vpop.f32.mrb[0].mxu0
        %v974 = vpop.f32.mrb[0].mxu0
        %v975 = vadd.f32 %v866, %v974
        %v976 = vpop.f32.mrb[0].mxu0
        %977 = vmatprep.mubr.bf16.mxu0 0
        %978 = vmatmul.mubr.bf16.gmra.mrb[0].mxu0 %v897
        %v979 = vpop.f32.mrb[0].mxu0
        %v980 = vadd.f32 %v866, %v979
        %v981 = vpop.f32.mrb[0].mxu0
        %v982 = vpop.f32.mrb[0].mxu0
        %v983 = vadd.f32 %v866, %v982
        %v984 = vpop.f32.mrb[0].mxu0
        %985 = vmatprep.mubr.bf16.mxu0 0
        %986 = vmatmul.mubr.bf16.gmra.mrb[0].mxu0 %v900
        %v987 = vpop.f32.mrb[0].mxu0
        %v988 = vadd.f32 %v866, %v987
        %v989 = vpop.f32.mrb[0].mxu0
        %v990 = vpop.f32.mrb[0].mxu0
        %v991 = vadd.f32 %v866, %v990
        %v992 = vpop.f32.mrb[0].mxu0
        %993 = vmatprep.mubr.bf16.mxu0 0
        %994 = vmatmul.mubr.bf16.gmra.mrb[0].mxu0 %v903
        %v995 = vpop.f32.mrb[0].mxu0
        %v996 = vadd.f32 %v866, %v995
        %v997 = vpop.f32.mrb[0].mxu0
        %v998 = vpop.f32.mrb[0].mxu0
        %v999 = vadd.f32 %v866, %v998
        %v1000 = vpop.f32.mrb[0].mxu0
        %1001 = vdwg.mxu0
        %v1002 = vxor.u32 %v940, 2147483648
        %v1003 = vxor.u32 %v943, 2147483648
        %v1004 = vxor.u32 %v948, 2147483648
        %v1005 = vxor.u32 %v951, 2147483648
        %v1006 = vxor.u32 %v956, 2147483648
        %v1007 = vxor.u32 %v959, 2147483648
        %v1008 = vxor.u32 %v964, 2147483648
        %v1009 = vxor.u32 %v967, 2147483648
        %v1010 = vxor.u32 %v972, 2147483648
        %v1011 = vxor.u32 %v975, 2147483648
        %v1012 = vxor.u32 %v980, 2147483648
        %v1013 = vxor.u32 %v983, 2147483648
        %v1014 = vxor.u32 %v988, 2147483648
        %v1015 = vxor.u32 %v991, 2147483648
        %v1016 = vxor.u32 %v996, 2147483648
        %v1017 = vxor.u32 %v999, 2147483648
        %v1018 = vmul.f32 %v1002, 1.442695
        %v1019 = vpow.pop %v1018
        %v1020 = vmul.f32 %v1003, 1.442695
        %v1021 = vpow.pop %v1020
        %v1022 = vmul.f32 %v1004, 1.442695
        %v1023 = vpow.pop %v1022
        %v1024 = vmul.f32 %v1005, 1.442695
        %v1025 = vpow.pop %v1024
        %v1026 = vmul.f32 %v1006, 1.442695
        %v1027 = vpow.pop %v1026
        %v1028 = vmul.f32 %v1007, 1.442695
        %v1029 = vpow.pop %v1028
        %v1030 = vmul.f32 %v1008, 1.442695
        %v1031 = vpow.pop %v1030
        %v1032 = vmul.f32 %v1009, 1.442695
        %v1033 = vpow.pop %v1032
        %v1034 = vmul.f32 %v1010, 1.442695
        %v1035 = vpow.pop %v1034
        %v1036 = vmul.f32 %v1011, 1.442695
        %v1037 = vpow.pop %v1036
        %v1038 = vmul.f32 %v1012, 1.442695
        %v1039 = vpow.pop %v1038
        %v1040 = vmul.f32 %v1013, 1.442695
        %v1041 = vpow.pop %v1040
        %v1042 = vmul.f32 %v1014, 1.442695
        %v1043 = vpow.pop %v1042
        %v1044 = vmul.f32 %v1015, 1.442695
        %v1045 = vpow.pop %v1044
        %v1046 = vmul.f32 %v1016, 1.442695
        %v1047 = vpow.pop %v1046
        %v1048 = vmul.f32 %v1017, 1.442695
        %v1049 = vpow.pop %v1048
        %v1050 = vadd.f32 %v1019, 1.0
        %v1051 = vadd.f32 %v1021, 1.0
        %v1052 = vadd.f32 %v1023, 1.0
        %v1053 = vadd.f32 %v1025, 1.0
        %v1054 = vadd.f32 %v1027, 1.0
        %v1055 = vadd.f32 %v1029, 1.0
        %v1056 = vadd.f32 %v1031, 1.0
        %v1057 = vadd.f32 %v1033, 1.0
        %v1058 = vadd.f32 %v1035, 1.0
        %v1059 = vadd.f32 %v1037, 1.0
        %v1060 = vadd.f32 %v1039, 1.0
        %v1061 = vadd.f32 %v1041, 1.0
        %v1062 = vadd.f32 %v1043, 1.0
        %v1063 = vadd.f32 %v1045, 1.0
        %v1064 = vadd.f32 %v1047, 1.0
        %v1065 = vadd.f32 %v1049, 1.0
        %v1066 = vrcp.pop %v1050
        %v1067 = vmul.f32 1.0, %v1066
        %v1068 = vrcp.pop %v1051
        %v1069 = vmul.f32 1.0, %v1068
        %v1070 = vrcp.pop %v1052
        %v1071 = vmul.f32 1.0, %v1070
        %v1072 = vrcp.pop %v1053
        %v1073 = vmul.f32 1.0, %v1072
        %v1074 = vrcp.pop %v1054
        %v1075 = vmul.f32 1.0, %v1074
        %v1076 = vrcp.pop %v1055
        %v1077 = vmul.f32 1.0, %v1076
        %v1078 = vrcp.pop %v1056
        %v1079 = vmul.f32 1.0, %v1078
        %v1080 = vrcp.pop %v1057
        %v1081 = vmul.f32 1.0, %v1080
        %v1082 = vrcp.pop %v1058
        %v1083 = vmul.f32 1.0, %v1082
        %v1084 = vrcp.pop %v1059
        %v1085 = vmul.f32 1.0, %v1084
        %v1086 = vrcp.pop %v1060
        %v1087 = vmul.f32 1.0, %v1086
        %v1088 = vrcp.pop %v1061
        %v1089 = vmul.f32 1.0, %v1088
        %v1090 = vrcp.pop %v1062
        %v1091 = vmul.f32 1.0, %v1090
        %v1092 = vrcp.pop %v1063
        %v1093 = vmul.f32 1.0, %v1092
        %v1094 = vrcp.pop %v1064
        %v1095 = vmul.f32 1.0, %v1094
        %v1096 = vrcp.pop %v1065
        %v1097 = vmul.f32 1.0, %v1096
        %v1098 = vmul.f32 %v940, %v1067
        %v1099 = vmul.f32 %v943, %v1069
        %v1100 = vmul.f32 %v948, %v1071
        %v1101 = vmul.f32 %v951, %v1073
        %v1102 = vmul.f32 %v956, %v1075
        %v1103 = vmul.f32 %v959, %v1077
        %v1104 = vmul.f32 %v964, %v1079
        %v1105 = vmul.f32 %v967, %v1081
        %v1106 = vmul.f32 %v972, %v1083
        %v1107 = vmul.f32 %v975, %v1085
        %v1108 = vmul.f32 %v980, %v1087
        %v1109 = vmul.f32 %v983, %v1089
        %v1110 = vmul.f32 %v988, %v1091
        %v1111 = vmul.f32 %v991, %v1093
        %v1112 = vmul.f32 %v996, %v1095
        %v1113 = vmul.f32 %v999, %v1097
        %v1115 = vcombine.high %v828, %v828
        %v1117 = vunpack.c.l.s4 1966171168
        %v1118 = vunpack.c.0.s8 %v1117
        %v1119 = vlaneseq
        %v1120 = vshrl.u32 %v1119, 7
        %v1121 = vsub.s32 %v1118, %v1120
        %v1122 = vrot.slane %v828, %v1121
        %v1124 = vunpack.c.l.s4 1966171168
        %v1125 = vunpack.c.0.s8 %v1124
        %v1126 = vlaneseq
        %v1127 = vshrl.u32 %v1126, 7
        %v1128 = vsub.s32 %v1125, %v1127
        %v1129 = vrot.slane %v1115, %v1128
        %v1130 = vcombine.high %v1122, %v1122
        %v1131 = vcombine.high %v1129, %v1129
        %v1133 = vunpack.c.l.s4 1966171168
        %v1134 = vunpack.c.0.s8 %v1133
        %v1135 = vlaneseq
        %v1136 = vshrl.u32 %v1135, 7
        %v1137 = vsub.s32 %v1134, %v1136
        %v1138 = vrot.slane %v1122, %v1137
        %v1140 = vunpack.c.l.s4 1966171168
        %v1141 = vunpack.c.0.s8 %v1140
        %v1142 = vlaneseq
        %v1143 = vshrl.u32 %v1142, 7
        %v1144 = vsub.s32 %v1141, %v1143
        %v1145 = vrot.slane %v1129, %v1144
        %v1147 = vunpack.c.l.s4 1966171168
        %v1148 = vunpack.c.0.s8 %v1147
        %v1149 = vlaneseq
        %v1150 = vshrl.u32 %v1149, 7
        %v1151 = vsub.s32 %v1148, %v1150
        %v1152 = vrot.slane %v1130, %v1151
        %v1154 = vunpack.c.l.s4 1966171168
        %v1155 = vunpack.c.0.s8 %v1154
        %v1156 = vlaneseq
        %v1157 = vshrl.u32 %v1156, 7
        %v1158 = vsub.s32 %v1155, %v1157
        %v1159 = vrot.slane %v1131, %v1158
        %v1160 = vcombine.high %v1138, %v1138
        %v1161 = vcombine.high %v1145, %v1145
        %v1162 = vcombine.high %v1152, %v1152
        %v1163 = vcombine.high %v1159, %v1159
        %v1164 = vlaneseq
        %v1165 = vshrl.u32 %v1164, 7
        %v1166 = vsub.s32 0, %v1165
        %v1167 = vrot.slane %v1138, %v1166
        %v1168 = vlaneseq
        %v1169 = vshrl.u32 %v1168, 7
        %v1170 = vsub.s32 0, %v1169
        %v1171 = vrot.slane %v1152, %v1170
        %v1172 = vlaneseq
        %v1173 = vshrl.u32 %v1172, 7
        %v1174 = vsub.s32 0, %v1173
        %v1175 = vrot.slane %v1160, %v1174
        %v1176 = vlaneseq
        %v1177 = vshrl.u32 %v1176, 7
        %v1178 = vsub.s32 0, %v1177
        %v1179 = vrot.slane %v1162, %v1178
        %v1180 = vlaneseq
        %v1181 = vshrl.u32 %v1180, 7
        %v1182 = vsub.s32 0, %v1181
        %v1183 = vrot.slane %v1145, %v1182
        %v1184 = vlaneseq
        %v1185 = vshrl.u32 %v1184, 7
        %v1186 = vsub.s32 0, %v1185
        %v1187 = vrot.slane %v1159, %v1186
        %v1188 = vlaneseq
        %v1189 = vshrl.u32 %v1188, 7
        %v1190 = vsub.s32 0, %v1189
        %v1191 = vrot.slane %v1161, %v1190
        %v1192 = vlaneseq
        %v1193 = vshrl.u32 %v1192, 7
        %v1194 = vsub.s32 0, %v1193
        %v1195 = vrot.slane %v1163, %v1194
        %1206 = vrot.lane.b32.xlu0 %v829, 96
        %v1207 = vpop.permute.xlu0 %1206
        %1208 = vrot.lane.b32.xlu0 %v830, 96
        %v1209 = vpop.permute.xlu0 %1208
        %v1212 = vmul.f32 %v1167, %v1207
        %v1213 = vmul.f32 %v1167, %v1209
        %v1214 = vmul.f32 %v1171, %v1207
        %v1215 = vmul.f32 %v1171, %v1209
        %v1216 = vmul.f32 %v1175, %v1207
        %v1217 = vmul.f32 %v1175, %v1209
        %v1218 = vmul.f32 %v1179, %v1207
        %v1219 = vmul.f32 %v1179, %v1209
        %v1220 = vmul.f32 %v1183, %v1207
        %v1221 = vmul.f32 %v1183, %v1209
        %v1222 = vmul.f32 %v1187, %v1207
        %v1223 = vmul.f32 %v1187, %v1209
        %v1224 = vmul.f32 %v1191, %v1207
        %v1225 = vmul.f32 %v1191, %v1209
        %v1226 = vmul.f32 %v1195, %v1207
        %v1227 = vmul.f32 %v1195, %v1209
        %v1228 = vmul.f32 %v1212, %v1098
        %v1229 = vmul.f32 %v1213, %v1099
        %v1230 = vmul.f32 %v1214, %v1100
        %v1231 = vmul.f32 %v1215, %v1101
        %v1232 = vmul.f32 %v1216, %v1102
        %v1233 = vmul.f32 %v1217, %v1103
        %v1234 = vmul.f32 %v1218, %v1104
        %v1235 = vmul.f32 %v1219, %v1105
        %v1236 = vmul.f32 %v1220, %v1106
        %v1237 = vmul.f32 %v1221, %v1107
        %v1238 = vmul.f32 %v1222, %v1108
        %v1239 = vmul.f32 %v1223, %v1109
        %v1240 = vmul.f32 %v1224, %v1110
        %v1241 = vmul.f32 %v1225, %v1111
        %v1242 = vmul.f32 %v1226, %v1112
        %v1243 = vmul.f32 %v1227, %v1113
        %v1244 = vsel %vm880, %v1228, -inf
        %v1245 = vsel %vm880, %v1229, -inf
        %v1246 = vmax.f32 %v1244, %v1245
        %v1247 = vrot.slane %v1246, 4
        %v1248 = vmax.f32 %v1246, %v1247
        %v1249 = vrot.slane %v1248, 2
        %v1250 = vmax.f32 %v1248, %v1249
        %v1251 = vrot.slane %v1250, 1
        %v1252 = vmax.f32 %v1250, %v1251
        %v1253 = vsel %vm880, %v1230, -inf
        %v1254 = vsel %vm880, %v1231, -inf
        %v1255 = vmax.f32 %v1253, %v1254
        %v1256 = vrot.slane %v1255, 4
        %v1257 = vmax.f32 %v1255, %v1256
        %v1258 = vrot.slane %v1257, 2
        %v1259 = vmax.f32 %v1257, %v1258
        %v1260 = vrot.slane %v1259, 1
        %v1261 = vmax.f32 %v1259, %v1260
        %v1262 = vsel %vm880, %v1232, -inf
        %v1263 = vsel %vm880, %v1233, -inf
        %v1264 = vmax.f32 %v1262, %v1263
        %v1265 = vrot.slane %v1264, 4
        %v1266 = vmax.f32 %v1264, %v1265
        %v1267 = vrot.slane %v1266, 2
        %v1268 = vmax.f32 %v1266, %v1267
        %v1269 = vrot.slane %v1268, 1
        %v1270 = vmax.f32 %v1268, %v1269
        %v1271 = vsel %vm880, %v1234, -inf
        %v1272 = vsel %vm880, %v1235, -inf
        %v1273 = vmax.f32 %v1271, %v1272
        %v1274 = vrot.slane %v1273, 4
        %v1275 = vmax.f32 %v1273, %v1274
        %v1276 = vrot.slane %v1275, 2
        %v1277 = vmax.f32 %v1275, %v1276
        %v1278 = vrot.slane %v1277, 1
        %v1279 = vmax.f32 %v1277, %v1278
        %v1280 = vsel %vm880, %v1236, -inf
        %v1281 = vsel %vm880, %v1237, -inf
        %v1282 = vmax.f32 %v1280, %v1281
        %v1283 = vrot.slane %v1282, 4
        %v1284 = vmax.f32 %v1282, %v1283
        %v1285 = vrot.slane %v1284, 2
        %v1286 = vmax.f32 %v1284, %v1285
        %v1287 = vrot.slane %v1286, 1
        %v1288 = vmax.f32 %v1286, %v1287
        %v1289 = vsel %vm880, %v1238, -inf
        %v1290 = vsel %vm880, %v1239, -inf
        %v1291 = vmax.f32 %v1289, %v1290
        %v1292 = vrot.slane %v1291, 4
        %v1293 = vmax.f32 %v1291, %v1292
        %v1294 = vrot.slane %v1293, 2
        %v1295 = vmax.f32 %v1293, %v1294
        %v1296 = vrot.slane %v1295, 1
        %v1297 = vmax.f32 %v1295, %v1296
        %v1298 = vsel %vm880, %v1240, -inf
        %v1299 = vsel %vm880, %v1241, -inf
        %v1300 = vmax.f32 %v1298, %v1299
        %v1301 = vrot.slane %v1300, 4
        %v1302 = vmax.f32 %v1300, %v1301
        %v1303 = vrot.slane %v1302, 2
        %v1304 = vmax.f32 %v1302, %v1303
        %v1305 = vrot.slane %v1304, 1
        %v1306 = vmax.f32 %v1304, %v1305
        %v1307 = vsel %vm880, %v1242, -inf
        %v1308 = vsel %vm880, %v1243, -inf
        %v1309 = vmax.f32 %v1307, %v1308
        %v1310 = vrot.slane %v1309, 4
        %v1311 = vmax.f32 %v1309, %v1310
        %v1312 = vrot.slane %v1311, 2
        %v1313 = vmax.f32 %v1311, %v1312
        %v1314 = vrot.slane %v1313, 1
        %v1315 = vmax.f32 %v1313, %v1314
        %v1316 = vsub.f32 %v1228, %v1252
        %v1317 = vsub.f32 %v1229, %v1252
        %v1318 = vsub.f32 %v1230, %v1261
        %v1319 = vsub.f32 %v1231, %v1261
        %v1320 = vsub.f32 %v1232, %v1270
        %v1321 = vsub.f32 %v1233, %v1270
        %v1322 = vsub.f32 %v1234, %v1279
        %v1323 = vsub.f32 %v1235, %v1279
        %v1324 = vsub.f32 %v1236, %v1288
        %v1325 = vsub.f32 %v1237, %v1288
        %v1326 = vsub.f32 %v1238, %v1297
        %v1327 = vsub.f32 %v1239, %v1297
        %v1328 = vsub.f32 %v1240, %v1306
        %v1329 = vsub.f32 %v1241, %v1306
        %v1330 = vsub.f32 %v1242, %v1315
        %v1331 = vsub.f32 %v1243, %v1315
        %v1332 = vmul.f32 %v1316, 1.442695
        %v1333 = vpow.pop %v1332
        %v1334 = vmul.f32 %v1317, 1.442695
        %v1335 = vpow.pop %v1334
        %v1336 = vmul.f32 %v1318, 1.442695
        %v1337 = vpow.pop %v1336
        %v1338 = vmul.f32 %v1319, 1.442695
        %v1339 = vpow.pop %v1338
        %v1340 = vmul.f32 %v1320, 1.442695
        %v1341 = vpow.pop %v1340
        %v1342 = vmul.f32 %v1321, 1.442695
        %v1343 = vpow.pop %v1342
        %v1344 = vmul.f32 %v1322, 1.442695
        %v1345 = vpow.pop %v1344
        %v1346 = vmul.f32 %v1323, 1.442695
        %v1347 = vpow.pop %v1346
        %v1348 = vmul.f32 %v1324, 1.442695
        %v1349 = vpow.pop %v1348
        %v1350 = vmul.f32 %v1325, 1.442695
        %v1351 = vpow.pop %v1350
        %v1352 = vmul.f32 %v1326, 1.442695
        %v1353 = vpow.pop %v1352
        %v1354 = vmul.f32 %v1327, 1.442695
        %v1355 = vpow.pop %v1354
        %v1356 = vmul.f32 %v1328, 1.442695
        %v1357 = vpow.pop %v1356
        %v1358 = vmul.f32 %v1329, 1.442695
        %v1359 = vpow.pop %v1358
        %v1360 = vmul.f32 %v1330, 1.442695
        %v1361 = vpow.pop %v1360
        %v1362 = vmul.f32 %v1331, 1.442695
        %v1363 = vpow.pop %v1362
        %v1364 = vsel %vm880, %v1333, 0.0
        %v1365 = vsel %vm880, %v1335, 0.0
        %v1366 = vadd.f32 %v1364, %v1365
        %v1367 = vrot.slane %v1366, 4
        %v1368 = vadd.f32 %v1366, %v1367
        %v1369 = vrot.slane %v1368, 2
        %v1370 = vadd.f32 %v1368, %v1369
        %v1371 = vrot.slane %v1370, 1
        %v1372 = vadd.f32 %v1370, %v1371
        %v1373 = vsel %vm880, %v1337, 0.0
        %v1374 = vsel %vm880, %v1339, 0.0
        %v1375 = vadd.f32 %v1373, %v1374
        %v1376 = vrot.slane %v1375, 4
        %v1377 = vadd.f32 %v1375, %v1376
        %v1378 = vrot.slane %v1377, 2
        %v1379 = vadd.f32 %v1377, %v1378
        %v1380 = vrot.slane %v1379, 1
        %v1381 = vadd.f32 %v1379, %v1380
        %v1382 = vsel %vm880, %v1341, 0.0
        %v1383 = vsel %vm880, %v1343, 0.0
        %v1384 = vadd.f32 %v1382, %v1383
        %v1385 = vrot.slane %v1384, 4
        %v1386 = vadd.f32 %v1384, %v1385
        %v1387 = vrot.slane %v1386, 2
        %v1388 = vadd.f32 %v1386, %v1387
        %v1389 = vrot.slane %v1388, 1
        %v1390 = vadd.f32 %v1388, %v1389
        %v1391 = vsel %vm880, %v1345, 0.0
        %v1392 = vsel %vm880, %v1347, 0.0
        %v1393 = vadd.f32 %v1391, %v1392
        %v1394 = vrot.slane %v1393, 4
        %v1395 = vadd.f32 %v1393, %v1394
        %v1396 = vrot.slane %v1395, 2
        %v1397 = vadd.f32 %v1395, %v1396
        %v1398 = vrot.slane %v1397, 1
        %v1399 = vadd.f32 %v1397, %v1398
        %v1400 = vsel %vm880, %v1349, 0.0
        %v1401 = vsel %vm880, %v1351, 0.0
        %v1402 = vadd.f32 %v1400, %v1401
        %v1403 = vrot.slane %v1402, 4
        %v1404 = vadd.f32 %v1402, %v1403
        %v1405 = vrot.slane %v1404, 2
        %v1406 = vadd.f32 %v1404, %v1405
        %v1407 = vrot.slane %v1406, 1
        %v1408 = vadd.f32 %v1406, %v1407
        %v1409 = vsel %vm880, %v1353, 0.0
        %v1410 = vsel %vm880, %v1355, 0.0
        %v1411 = vadd.f32 %v1409, %v1410
        %v1412 = vrot.slane %v1411, 4
        %v1413 = vadd.f32 %v1411, %v1412
        %v1414 = vrot.slane %v1413, 2
        %v1415 = vadd.f32 %v1413, %v1414
        %v1416 = vrot.slane %v1415, 1
        %v1417 = vadd.f32 %v1415, %v1416
        %v1418 = vsel %vm880, %v1357, 0.0
        %v1419 = vsel %vm880, %v1359, 0.0
        %v1420 = vadd.f32 %v1418, %v1419
        %v1421 = vrot.slane %v1420, 4
        %v1422 = vadd.f32 %v1420, %v1421
        %v1423 = vrot.slane %v1422, 2
        %v1424 = vadd.f32 %v1422, %v1423
        %v1425 = vrot.slane %v1424, 1
        %v1426 = vadd.f32 %v1424, %v1425
        %v1427 = vsel %vm880, %v1361, 0.0
        %v1428 = vsel %vm880, %v1363, 0.0
        %v1429 = vadd.f32 %v1427, %v1428
        %v1430 = vrot.slane %v1429, 4
        %v1431 = vadd.f32 %v1429, %v1430
        %v1432 = vrot.slane %v1431, 2
        %v1433 = vadd.f32 %v1431, %v1432
        %v1434 = vrot.slane %v1433, 1
        %v1435 = vadd.f32 %v1433, %v1434
        %v1436 = vrcp.pop %v1372
        %v1437 = vrcp.pop %v1381
        %v1438 = vrcp.pop %v1390
        %v1439 = vrcp.pop %v1399
        %v1440 = vrcp.pop %v1408
        %v1441 = vrcp.pop %v1417
        %v1442 = vrcp.pop %v1426
        %v1443 = vrcp.pop %v1435
        %v1444 = vmul.f32 %v1333, %v1436
        %v1445 = vmul.f32 %v1335, %v1436
        %v1446 = vmul.f32 %v1337, %v1437
        %v1447 = vmul.f32 %v1339, %v1437
        %v1448 = vmul.f32 %v1341, %v1438
        %v1449 = vmul.f32 %v1343, %v1438
        %v1450 = vmul.f32 %v1345, %v1439
        %v1451 = vmul.f32 %v1347, %v1439
        %v1452 = vmul.f32 %v1349, %v1440
        %v1453 = vmul.f32 %v1351, %v1440
        %v1454 = vmul.f32 %v1353, %v1441
        %v1455 = vmul.f32 %v1355, %v1441
        %v1456 = vmul.f32 %v1357, %v1442
        %v1457 = vmul.f32 %v1359, %v1442
        %v1458 = vmul.f32 %v1361, %v1443
        %v1459 = vmul.f32 %v1363, %v1443
        %1460 = vst.msk [vmem:[%s673] sm:$0xff] %vm880, %v1444
        %1461 = vst.msk [vmem:[%s673 + $0x8] sm:$0xff] %vm880, %v1445
        %1462 = vst.msk [vmem:[%s673 + $0x10] sm:$0xff] %vm880, %v1446
        %1463 = vst.msk [vmem:[%s673 + $0x18] sm:$0xff] %vm880, %v1447
        %1464 = vst.msk [vmem:[%s673 + $0x20] sm:$0xff] %vm880, %v1448
        %1465 = vst.msk [vmem:[%s673 + $0x28] sm:$0xff] %vm880, %v1449
        %1466 = vst.msk [vmem:[%s673 + $0x30] sm:$0xff] %vm880, %v1450
        %1467 = vst.msk [vmem:[%s673 + $0x38] sm:$0xff] %vm880, %v1451
        %1468 = vst.msk [vmem:[%s673 + $0x40] sm:$0xff] %vm880, %v1452
        %1469 = vst.msk [vmem:[%s673 + $0x48] sm:$0xff] %vm880, %v1453
        %1470 = vst.msk [vmem:[%s673 + $0x50] sm:$0xff] %vm880, %v1454
        %1471 = vst.msk [vmem:[%s673 + $0x58] sm:$0xff] %vm880, %v1455
        %1472 = vst.msk [vmem:[%s673 + $0x60] sm:$0xff] %vm880, %v1456
        %1473 = vst.msk [vmem:[%s673 + $0x68] sm:$0xff] %vm880, %v1457
        %1474 = vst.msk [vmem:[%s673 + $0x70] sm:$0xff] %vm880, %v1458
        %1475 = vst.msk [vmem:[%s673 + $0x78] sm:$0xff] %vm880, %v1459
        %v1476 = vld [vmem:[%s724] sm:$0xff]
        %v1477 = vld [vmem:[%s724 + $0x8] sm:$0xff]
        %v1478 = vld [vmem:[%s724 + $0x10] sm:$0xff]
        %v1479 = vld [vmem:[%s724 + $0x18] sm:$0xff]
        %v1480 = vld [vmem:[%s724 + $0x20] sm:$0xff]
        %v1481 = vld [vmem:[%s724 + $0x28] sm:$0xff]
        %v1482 = vld [vmem:[%s724 + $0x30] sm:$0xff]
        %v1483 = vld [vmem:[%s724 + $0x38] sm:$0xff]
        %v1484 = vld [vmem:[%s724 + $0x40] sm:$0xff]
        %v1485 = vld [vmem:[%s724 + $0x48] sm:$0xff]
        %v1486 = vld [vmem:[%s724 + $0x50] sm:$0xff]
        %v1487 = vld [vmem:[%s724 + $0x58] sm:$0xff]
        %v1488 = vld [vmem:[%s724 + $0x60] sm:$0xff]
        %v1489 = vld [vmem:[%s724 + $0x68] sm:$0xff]
        %v1490 = vld [vmem:[%s724 + $0x70] sm:$0xff]
        %v1491 = vld [vmem:[%s724 + $0x78] sm:$0xff]
        %1508 = vrot.lane.b32.xlu0 %v1098, 32
        %v1509 = vpop.permute.xlu0 %1508
        %1510 = vrot.lane.b32.xlu0 %v1099, 32
        %v1511 = vpop.permute.xlu0 %1510
        %1512 = vrot.lane.b32.xlu0 %v1100, 32
        %v1513 = vpop.permute.xlu0 %1512
        %1514 = vrot.lane.b32.xlu0 %v1101, 32
        %v1515 = vpop.permute.xlu0 %1514
        %1516 = vrot.lane.b32.xlu0 %v1102, 32
        %v1517 = vpop.permute.xlu0 %1516
        %1518 = vrot.lane.b32.xlu0 %v1103, 32
        %v1519 = vpop.permute.xlu0 %1518
        %1520 = vrot.lane.b32.xlu0 %v1104, 32
        %v1521 = vpop.permute.xlu0 %1520
        %1522 = vrot.lane.b32.xlu0 %v1105, 32
        %v1523 = vpop.permute.xlu0 %1522
        %1524 = vrot.lane.b32.xlu0 %v1106, 32
        %v1525 = vpop.permute.xlu0 %1524
        %1526 = vrot.lane.b32.xlu0 %v1107, 32
        %v1527 = vpop.permute.xlu0 %1526
        %1528 = vrot.lane.b32.xlu0 %v1108, 32
        %v1529 = vpop.permute.xlu0 %1528
        %1530 = vrot.lane.b32.xlu0 %v1109, 32
        %v1531 = vpop.permute.xlu0 %1530
        %1532 = vrot.lane.b32.xlu0 %v1110, 32
        %v1533 = vpop.permute.xlu0 %1532
        %1534 = vrot.lane.b32.xlu0 %v1111, 32
        %v1535 = vpop.permute.xlu0 %1534
        %1536 = vrot.lane.b32.xlu0 %v1112, 32
        %v1537 = vpop.permute.xlu0 %1536
        %1538 = vrot.lane.b32.xlu0 %v1113, 32
        %v1539 = vpop.permute.xlu0 %1538
        %v1556 = vmul.f32 %v829, %v1509
        %v1557 = vmul.f32 %v830, %v1511
        %v1558 = vmul.f32 %v829, %v1513
        %v1559 = vmul.f32 %v830, %v1515
        %v1560 = vmul.f32 %v829, %v1517
        %v1561 = vmul.f32 %v830, %v1519
        %v1562 = vmul.f32 %v829, %v1521
        %v1563 = vmul.f32 %v830, %v1523
        %v1564 = vmul.f32 %v829, %v1525
        %v1565 = vmul.f32 %v830, %v1527
        %v1566 = vmul.f32 %v829, %v1529
        %v1567 = vmul.f32 %v830, %v1531
        %v1568 = vmul.f32 %v829, %v1533
        %v1569 = vmul.f32 %v830, %v1535
        %v1570 = vmul.f32 %v829, %v1537
        %v1571 = vmul.f32 %v830, %v1539
        %1573 = vset.pattern.permute.xlu0 0
        %1574 = vperm.xlu0 %1573, %v1476
        %v1575 = vpop.permute.xlu0 %1574
        %1578 = vset.pattern.permute.xlu0 0
        %1579 = vperm.xlu0 %1578, %v1477
        %v1580 = vpop.permute.xlu0 %1579
        %1583 = vset.pattern.permute.xlu0 0
        %1584 = vperm.xlu0 %1583, %v1478
        %v1585 = vpop.permute.xlu0 %1584
        %1588 = vset.pattern.permute.xlu0 0
        %1589 = vperm.xlu0 %1588, %v1479
        %v1590 = vpop.permute.xlu0 %1589
        %1593 = vset.pattern.permute.xlu0 0
        %1594 = vperm.xlu0 %1593, %v1480
        %v1595 = vpop.permute.xlu0 %1594
        %1598 = vset.pattern.permute.xlu0 0
        %1599 = vperm.xlu0 %1598, %v1481
        %v1600 = vpop.permute.xlu0 %1599
        %1603 = vset.pattern.permute.xlu0 0
        %1604 = vperm.xlu0 %1603, %v1482
        %v1605 = vpop.permute.xlu0 %1604
        %1608 = vset.pattern.permute.xlu0 0
        %1609 = vperm.xlu0 %1608, %v1483
        %v1610 = vpop.permute.xlu0 %1609
        %1613 = vset.pattern.permute.xlu0 0
        %1614 = vperm.xlu0 %1613, %v1484
        %v1615 = vpop.permute.xlu0 %1614
        %1618 = vset.pattern.permute.xlu0 0
        %1619 = vperm.xlu0 %1618, %v1485
        %v1620 = vpop.permute.xlu0 %1619
        %1623 = vset.pattern.permute.xlu0 0
        %1624 = vperm.xlu0 %1623, %v1486
        %v1625 = vpop.permute.xlu0 %1624
        %1628 = vset.pattern.permute.xlu0 0
        %1629 = vperm.xlu0 %1628, %v1487
        %v1630 = vpop.permute.xlu0 %1629
        %1633 = vset.pattern.permute.xlu0 0
        %1634 = vperm.xlu0 %1633, %v1488
        %v1635 = vpop.permute.xlu0 %1634
        %1638 = vset.pattern.permute.xlu0 0
        %1639 = vperm.xlu0 %1638, %v1489
        %v1640 = vpop.permute.xlu0 %1639
        %1643 = vset.pattern.permute.xlu0 0
        %1644 = vperm.xlu0 %1643, %v1490
        %v1645 = vpop.permute.xlu0 %1644
        %1648 = vset.pattern.permute.xlu0 0
        %1649 = vperm.xlu0 %1648, %v1491
        %v1650 = vpop.permute.xlu0 %1649
        %v1652 = vmul.f32 %v1444, %v1575
        %v1653 = vmul.f32 %v1445, %v1580
        %v1654 = vmul.f32 %v1446, %v1585
        %v1655 = vmul.f32 %v1447, %v1590
        %v1656 = vmul.f32 %v1448, %v1595
        %v1657 = vmul.f32 %v1449, %v1600
        %v1658 = vmul.f32 %v1450, %v1605
        %v1659 = vmul.f32 %v1451, %v1610
        %v1660 = vmul.f32 %v1452, %v1615
        %v1661 = vmul.f32 %v1453, %v1620
        %v1662 = vmul.f32 %v1454, %v1625
        %v1663 = vmul.f32 %v1455, %v1630
        %v1664 = vmul.f32 %v1456, %v1635
        %v1665 = vmul.f32 %v1457, %v1640
        %v1666 = vmul.f32 %v1458, %v1645
        %v1667 = vmul.f32 %v1459, %v1650
        %1684 = vrot.lane.b32.xlu0 %v1556, 64
        %v1685 = vpop.permute.xlu0 %1684
        %1686 = vrot.lane.b32.xlu0 %v1557, 64
        %v1687 = vpop.permute.xlu0 %1686
        %1688 = vrot.lane.b32.xlu0 %v1558, 64
        %v1689 = vpop.permute.xlu0 %1688
        %1690 = vrot.lane.b32.xlu0 %v1559, 64
        %v1691 = vpop.permute.xlu0 %1690
        %1692 = vrot.lane.b32.xlu0 %v1560, 64
        %v1693 = vpop.permute.xlu0 %1692
        %1694 = vrot.lane.b32.xlu0 %v1561, 64
        %v1695 = vpop.permute.xlu0 %1694
        %1696 = vrot.lane.b32.xlu0 %v1562, 64
        %v1697 = vpop.permute.xlu0 %1696
        %1698 = vrot.lane.b32.xlu0 %v1563, 64
        %v1699 = vpop.permute.xlu0 %1698
        %1700 = vrot.lane.b32.xlu0 %v1564, 64
        %v1701 = vpop.permute.xlu0 %1700
        %1702 = vrot.lane.b32.xlu0 %v1565, 64
        %v1703 = vpop.permute.xlu0 %1702
        %1704 = vrot.lane.b32.xlu0 %v1566, 64
        %v1705 = vpop.permute.xlu0 %1704
        %1706 = vrot.lane.b32.xlu0 %v1567, 64
        %v1707 = vpop.permute.xlu0 %1706
        %1708 = vrot.lane.b32.xlu0 %v1568, 64
        %v1709 = vpop.permute.xlu0 %1708
        %1710 = vrot.lane.b32.xlu0 %v1569, 64
        %v1711 = vpop.permute.xlu0 %1710
        %1712 = vrot.lane.b32.xlu0 %v1570, 64
        %v1713 = vpop.permute.xlu0 %1712
        %1714 = vrot.lane.b32.xlu0 %v1571, 64
        %v1715 = vpop.permute.xlu0 %1714
        %v1732 = vmul.f32 %v1652, %v1685
        %v1733 = vmul.f32 %v1653, %v1687
        %v1734 = vmul.f32 %v1654, %v1689
        %v1735 = vmul.f32 %v1655, %v1691
        %v1736 = vmul.f32 %v1656, %v1693
        %v1737 = vmul.f32 %v1657, %v1695
        %v1738 = vmul.f32 %v1658, %v1697
        %v1739 = vmul.f32 %v1659, %v1699
        %v1740 = vmul.f32 %v1660, %v1701
        %v1741 = vmul.f32 %v1661, %v1703
        %v1742 = vmul.f32 %v1662, %v1705
        %v1743 = vmul.f32 %v1663, %v1707
        %v1744 = vmul.f32 %v1664, %v1709
        %v1745 = vmul.f32 %v1665, %v1711
        %v1746 = vmul.f32 %v1666, %v1713
        %v1747 = vmul.f32 %v1667, %v1715
        %v1748 = vsel %vm880, %v1732, 0.0
        %v1749 = vsel %vm880, %v1733, 0.0
        %v1750 = vadd.f32 %v1748, %v1749
        %v1751 = vrot.slane %v1750, 4
        %v1752 = vadd.f32 %v1750, %v1751
        %v1753 = vrot.slane %v1752, 2
        %v1754 = vadd.f32 %v1752, %v1753
        %v1755 = vrot.slane %v1754, 1
        %v1756 = vadd.f32 %v1754, %v1755
        %v1757 = vsel %vm880, %v1734, 0.0
        %v1758 = vsel %vm880, %v1735, 0.0
        %v1759 = vadd.f32 %v1757, %v1758
        %v1760 = vrot.slane %v1759, 4
        %v1761 = vadd.f32 %v1759, %v1760
        %v1762 = vrot.slane %v1761, 2
        %v1763 = vadd.f32 %v1761, %v1762
        %v1764 = vrot.slane %v1763, 1
        %v1765 = vadd.f32 %v1763, %v1764
        %v1766 = vsel %vm880, %v1736, 0.0
        %v1767 = vsel %vm880, %v1737, 0.0
        %v1768 = vadd.f32 %v1766, %v1767
        %v1769 = vrot.slane %v1768, 4
        %v1770 = vadd.f32 %v1768, %v1769
        %v1771 = vrot.slane %v1770, 2
        %v1772 = vadd.f32 %v1770, %v1771
        %v1773 = vrot.slane %v1772, 1
        %v1774 = vadd.f32 %v1772, %v1773
        %v1775 = vsel %vm880, %v1738, 0.0
        %v1776 = vsel %vm880, %v1739, 0.0
        %v1777 = vadd.f32 %v1775, %v1776
        %v1778 = vrot.slane %v1777, 4
        %v1779 = vadd.f32 %v1777, %v1778
        %v1780 = vrot.slane %v1779, 2
        %v1781 = vadd.f32 %v1779, %v1780
        %v1782 = vrot.slane %v1781, 1
        %v1783 = vadd.f32 %v1781, %v1782
        %v1784 = vsel %vm880, %v1740, 0.0
        %v1785 = vsel %vm880, %v1741, 0.0
        %v1786 = vadd.f32 %v1784, %v1785
        %v1787 = vrot.slane %v1786, 4
        %v1788 = vadd.f32 %v1786, %v1787
        %v1789 = vrot.slane %v1788, 2
        %v1790 = vadd.f32 %v1788, %v1789
        %v1791 = vrot.slane %v1790, 1
        %v1792 = vadd.f32 %v1790, %v1791
        %v1793 = vsel %vm880, %v1742, 0.0
        %v1794 = vsel %vm880, %v1743, 0.0
        %v1795 = vadd.f32 %v1793, %v1794
        %v1796 = vrot.slane %v1795, 4
        %v1797 = vadd.f32 %v1795, %v1796
        %v1798 = vrot.slane %v1797, 2
        %v1799 = vadd.f32 %v1797, %v1798
        %v1800 = vrot.slane %v1799, 1
        %v1801 = vadd.f32 %v1799, %v1800
        %v1802 = vsel %vm880, %v1744, 0.0
        %v1803 = vsel %vm880, %v1745, 0.0
        %v1804 = vadd.f32 %v1802, %v1803
        %v1805 = vrot.slane %v1804, 4
        %v1806 = vadd.f32 %v1804, %v1805
        %v1807 = vrot.slane %v1806, 2
        %v1808 = vadd.f32 %v1806, %v1807
        %v1809 = vrot.slane %v1808, 1
        %v1810 = vadd.f32 %v1808, %v1809
        %v1811 = vsel %vm880, %v1746, 0.0
        %v1812 = vsel %vm880, %v1747, 0.0
        %v1813 = vadd.f32 %v1811, %v1812
        %v1814 = vrot.slane %v1813, 4
        %v1815 = vadd.f32 %v1813, %v1814
        %v1816 = vrot.slane %v1815, 2
        %v1817 = vadd.f32 %v1815, %v1816
        %v1818 = vrot.slane %v1817, 1
        %v1819 = vadd.f32 %v1817, %v1818
        %v1820 = vpack.c.bf16 %v1756, %v1756
        %v1821 = vpack.c.bf16 %v1765, %v1765
        %v1822 = vpack.c.bf16 %v1774, %v1774
        %v1823 = vpack.c.bf16 %v1783, %v1783
        %v1824 = vpack.c.bf16 %v1792, %v1792
        %v1825 = vpack.c.bf16 %v1801, %v1801
        %v1826 = vpack.c.bf16 %v1810, %v1810
        %v1827 = vpack.c.bf16 %v1819, %v1819
        %v1828 = vld [vmem:[%s10] sm:$0xf]
        %v1829 = vld [vmem:[%s10 + $0x4] sm:$0xf]
        %v1830 = vld [vmem:[%s10 + $0x8] sm:$0xf]
        %v1831 = vld [vmem:[%s10 + $0xc] sm:$0xf]
        %v1832 = vld [vmem:[%s11] sm:$0x1]
        %v1834 = vlaneseq
        %v1835 = vshrl.u32 %v1834, 7
        %v1836 = vsub.s32 0, %v1835
        %v1837 = vrot.slane %v1832, %v1836
        %v1847 = vunpack.c.l.b16 %v1820
        %v1848 = vunpack.c.l.b16 %v1821
        %v1849 = vunpack.c.l.b16 %v1822
        %v1850 = vunpack.c.l.b16 %v1823
        %v1851 = vunpack.c.l.b16 %v1824
        %v1852 = vunpack.c.l.b16 %v1825
        %v1853 = vunpack.c.l.b16 %v1826
        %v1854 = vunpack.c.l.b16 %v1827
        %vm1855 = vcmask 1041409
        %v1856 = vsel %vm1855, %v1848, %v1847
        %vm1857 = vcmask 1042434
        %v1858 = vsel %vm1857, %v1849, %v1856
        %vm1859 = vcmask 1043459
        %v1860 = vsel %vm1859, %v1850, %v1858
        %vm1861 = vcmask 1044484
        %v1862 = vsel %vm1861, %v1851, %v1860
        %vm1863 = vcmask 1045509
        %v1864 = vsel %vm1863, %v1852, %v1862
        %vm1865 = vcmask 1046534
        %v1866 = vsel %vm1865, %v1853, %v1864
        %vm1867 = vcmask 1047559
        %v1868 = vsel %vm1867, %v1854, %v1866
        %v1869 = vpack.c.b16 %v1868, %v1868
        %v1874 = vunpack.c.l.b16 %v1828
        %v1875 = vunpack.c.l.b16 %v1829
        %v1876 = vunpack.c.l.b16 %v1830
        %v1877 = vunpack.c.l.b16 %v1831
        %v1878 = vpack.c.b16 %v1875, %v1874
        %v1879 = vpack.c.b16 %v1877, %v1876
        %v1883 = vsel %vm880, %v1869, 0
        %1885 = vmatprep.subr.bf16.mxu0 0
        %1886 = vmatpush1.bf16.msra.mxu0 %v1878
        %1887 = vmatprep.subr.bf16.mxu0 0
        %1888 = vmatpush1.bf16.msra.mxu0 %v1879
        %1889 = vmatprep.subr.bf16.mxu0 0
        %1890 = vmatpush1.bf16.msra.mxu0 0
        %1891 = vmatprep.subr.bf16.mxu0 0
        %1892 = vmatpush1.bf16.msra.mxu0 0
        %1893 = vmatprep.subr.bf16.mxu0 0
        %1894 = vmatpush1.bf16.msra.mxu0 0
        %1895 = vmatprep.subr.bf16.mxu0 0
        %1896 = vmatpush1.bf16.msra.mxu0 0
        %1897 = vmatprep.subr.bf16.mxu0 0
        %1898 = vmatpush1.bf16.msra.mxu0 0
        %1899 = vmatprep.subr.bf16.mxu0 0
        %1900 = vmatpush1.bf16.msra.mxu0 0
        %1901 = vmatprep.subr.bf16.mxu0 0
        %1902 = vmatpush1.bf16.msra.mxu0 0
        %1903 = vmatprep.subr.bf16.mxu0 0
        %1904 = vmatpush1.bf16.msra.mxu0 0
        %1905 = vmatprep.subr.bf16.mxu0 0
        %1906 = vmatpush1.bf16.msra.mxu0 0
        %1907 = vmatprep.subr.bf16.mxu0 0
        %1908 = vmatpush1.bf16.msra.mxu0 0
        %1909 = vmatprep.subr.bf16.mxu0 0
        %1910 = vmatpush1.bf16.msra.mxu0 0
        %1911 = vmatprep.subr.bf16.mxu0 0
        %1912 = vmatpush1.bf16.msra.mxu0 0
        %1913 = vmatprep.subr.bf16.mxu0 0
        %1914 = vmatpush1.bf16.msra.mxu0 0
        %1915 = vmatprep.subr.bf16.mxu0 0
        %1916 = vmatpush1.bf16.msra.mxu0 0
        %1917 = vmatprep.mubr.bf16.mxu0 0
        %1918 = vmatmul.mubr.bf16.gmra.mrb[0].mxu0 %v1883
        %v1919 = vpop.f32.mrb[0].mxu0
        %v1920 = vadd.f32 %v1837, %v1919
        %v1921 = vpop.f32.mrb[0].mxu0
        %v1922 = vpop.f32.mrb[0].mxu0
        %v1923 = vpop.f32.mrb[0].mxu0
        %1924 = vdwg.mxu0
        %v1925 = vld [vmem:[%s687] sm:$0x7]
        %v1926 = vld [vmem:[%s687 + $0x4] sm:$0x7]
        %v1927 = vld [vmem:[%s687 + $0x8] sm:$0x7]
        %v1928 = vld [vmem:[%s687 + $0xc] sm:$0x7]
        %v1929 = vld [vmem:[%s687 + $0x10] sm:$0x7]
        %v1930 = vld [vmem:[%s687 + $0x14] sm:$0x7]
        %v1931 = vld [vmem:[%s687 + $0x18] sm:$0x7]
        %v1932 = vld [vmem:[%s687 + $0x1c] sm:$0x7]
        %v1942 = vunpack.c.l.s4 1966171168
        %v1943 = vunpack.c.0.s8 %v1942
        %v1944 = vlaneseq
        %v1945 = vshrl.u32 %v1944, 7
        %v1946 = vsub.s32 %v1943, %v1945
        %v1947 = vrot.slane %v1925, %v1946
        %v1948 = vcombine.high %v1947, %v1947
        %v1950 = vunpack.c.l.s4 1966171168
        %v1951 = vunpack.c.0.s8 %v1950
        %v1952 = vlaneseq
        %v1953 = vshrl.u32 %v1952, 7
        %v1954 = vsub.s32 %v1951, %v1953
        %v1955 = vrot.slane %v1947, %v1954
        %v1957 = vunpack.c.l.s4 1966171168
        %v1958 = vunpack.c.0.s8 %v1957
        %v1959 = vlaneseq
        %v1960 = vshrl.u32 %v1959, 7
        %v1961 = vsub.s32 %v1958, %v1960
        %v1962 = vrot.slane %v1948, %v1961
        %v1963 = vcombine.high %v1955, %v1955
        %v1965 = vunpack.c.l.s4 1966171168
        %v1966 = vunpack.c.0.s8 %v1965
        %v1967 = vlaneseq
        %v1968 = vshrl.u32 %v1967, 7
        %v1969 = vsub.s32 %v1966, %v1968
        %v1970 = vrot.slane %v1926, %v1969
        %v1971 = vcombine.high %v1970, %v1970
        %v1973 = vunpack.c.l.s4 1966171168
        %v1974 = vunpack.c.0.s8 %v1973
        %v1975 = vlaneseq
        %v1976 = vshrl.u32 %v1975, 7
        %v1977 = vsub.s32 %v1974, %v1976
        %v1978 = vrot.slane %v1970, %v1977
        %v1980 = vunpack.c.l.s4 1966171168
        %v1981 = vunpack.c.0.s8 %v1980
        %v1982 = vlaneseq
        %v1983 = vshrl.u32 %v1982, 7
        %v1984 = vsub.s32 %v1981, %v1983
        %v1985 = vrot.slane %v1971, %v1984
        %v1986 = vcombine.high %v1978, %v1978
        %v1988 = vunpack.c.l.s4 1966171168
        %v1989 = vunpack.c.0.s8 %v1988
        %v1990 = vlaneseq
        %v1991 = vshrl.u32 %v1990, 7
        %v1992 = vsub.s32 %v1989, %v1991
        %v1993 = vrot.slane %v1927, %v1992
        %v1994 = vcombine.high %v1993, %v1993
        %v1996 = vunpack.c.l.s4 1966171168
        %v1997 = vunpack.c.0.s8 %v1996
        %v1998 = vlaneseq
        %v1999 = vshrl.u32 %v1998, 7
        %v2000 = vsub.s32 %v1997, %v1999
        %v2001 = vrot.slane %v1993, %v2000
        %v2003 = vunpack.c.l.s4 1966171168
        %v2004 = vunpack.c.0.s8 %v2003
        %v2005 = vlaneseq
        %v2006 = vshrl.u32 %v2005, 7
        %v2007 = vsub.s32 %v2004, %v2006
        %v2008 = vrot.slane %v1994, %v2007
        %v2009 = vcombine.high %v2001, %v2001
        %v2011 = vunpack.c.l.s4 1966171168
        %v2012 = vunpack.c.0.s8 %v2011
        %v2013 = vlaneseq
        %v2014 = vshrl.u32 %v2013, 7
        %v2015 = vsub.s32 %v2012, %v2014
        %v2016 = vrot.slane %v1928, %v2015
        %v2017 = vcombine.high %v2016, %v2016
        %v2019 = vunpack.c.l.s4 1966171168
        %v2020 = vunpack.c.0.s8 %v2019
        %v2021 = vlaneseq
        %v2022 = vshrl.u32 %v2021, 7
        %v2023 = vsub.s32 %v2020, %v2022
        %v2024 = vrot.slane %v2016, %v2023
        %v2026 = vunpack.c.l.s4 1966171168
        %v2027 = vunpack.c.0.s8 %v2026
        %v2028 = vlaneseq
        %v2029 = vshrl.u32 %v2028, 7
        %v2030 = vsub.s32 %v2027, %v2029
        %v2031 = vrot.slane %v2017, %v2030
        %v2032 = vcombine.high %v2024, %v2024
        %v2034 = vunpack.c.l.s4 1966171168
        %v2035 = vunpack.c.0.s8 %v2034
        %v2036 = vlaneseq
        %v2037 = vshrl.u32 %v2036, 7
        %v2038 = vsub.s32 %v2035, %v2037
        %v2039 = vrot.slane %v1929, %v2038
        %v2040 = vcombine.high %v2039, %v2039
        %v2042 = vunpack.c.l.s4 1966171168
        %v2043 = vunpack.c.0.s8 %v2042
        %v2044 = vlaneseq
        %v2045 = vshrl.u32 %v2044, 7
        %v2046 = vsub.s32 %v2043, %v2045
        %v2047 = vrot.slane %v2039, %v2046
        %v2049 = vunpack.c.l.s4 1966171168
        %v2050 = vunpack.c.0.s8 %v2049
        %v2051 = vlaneseq
        %v2052 = vshrl.u32 %v2051, 7
        %v2053 = vsub.s32 %v2050, %v2052
        %v2054 = vrot.slane %v2040, %v2053
        %v2055 = vcombine.high %v2047, %v2047
        %v2057 = vunpack.c.l.s4 1966171168
        %v2058 = vunpack.c.0.s8 %v2057
        %v2059 = vlaneseq
        %v2060 = vshrl.u32 %v2059, 7
        %v2061 = vsub.s32 %v2058, %v2060
        %v2062 = vrot.slane %v1930, %v2061
        %v2063 = vcombine.high %v2062, %v2062
        %v2065 = vunpack.c.l.s4 1966171168
        %v2066 = vunpack.c.0.s8 %v2065
        %v2067 = vlaneseq
        %v2068 = vshrl.u32 %v2067, 7
        %v2069 = vsub.s32 %v2066, %v2068
        %v2070 = vrot.slane %v2062, %v2069
        %v2072 = vunpack.c.l.s4 1966171168
        %v2073 = vunpack.c.0.s8 %v2072
        %v2074 = vlaneseq
        %v2075 = vshrl.u32 %v2074, 7
        %v2076 = vsub.s32 %v2073, %v2075
        %v2077 = vrot.slane %v2063, %v2076
        %v2078 = vcombine.high %v2070, %v2070
        %v2080 = vunpack.c.l.s4 1966171168
        %v2081 = vunpack.c.0.s8 %v2080
        %v2082 = vlaneseq
        %v2083 = vshrl.u32 %v2082, 7
        %v2084 = vsub.s32 %v2081, %v2083
        %v2085 = vrot.slane %v1931, %v2084
        %v2086 = vcombine.high %v2085, %v2085
        %v2088 = vunpack.c.l.s4 1966171168
        %v2089 = vunpack.c.0.s8 %v2088
        %v2090 = vlaneseq
        %v2091 = vshrl.u32 %v2090, 7
        %v2092 = vsub.s32 %v2089, %v2091
        %v2093 = vrot.slane %v2085, %v2092
        %v2095 = vunpack.c.l.s4 1966171168
        %v2096 = vunpack.c.0.s8 %v2095
        %v2097 = vlaneseq
        %v2098 = vshrl.u32 %v2097, 7
        %v2099 = vsub.s32 %v2096, %v2098
        %v2100 = vrot.slane %v2086, %v2099
        %v2101 = vcombine.high %v2093, %v2093
        %v2103 = vunpack.c.l.s4 1966171168
        %v2104 = vunpack.c.0.s8 %v2103
        %v2105 = vlaneseq
        %v2106 = vshrl.u32 %v2105, 7
        %v2107 = vsub.s32 %v2104, %v2106
        %v2108 = vrot.slane %v1932, %v2107
        %v2109 = vcombine.high %v2108, %v2108
        %v2111 = vunpack.c.l.s4 1966171168
        %v2112 = vunpack.c.0.s8 %v2111
        %v2113 = vlaneseq
        %v2114 = vshrl.u32 %v2113, 7
        %v2115 = vsub.s32 %v2112, %v2114
        %v2116 = vrot.slane %v2108, %v2115
        %v2118 = vunpack.c.l.s4 1966171168
        %v2119 = vunpack.c.0.s8 %v2118
        %v2120 = vlaneseq
        %v2121 = vshrl.u32 %v2120, 7
        %v2122 = vsub.s32 %v2119, %v2121
        %v2123 = vrot.slane %v2109, %v2122
        %v2124 = vcombine.high %v2116, %v2116
        %v2125 = vcombine.low %v1955, %v1962
        %v2126 = vcombine.low %v1963, %v1978
        %v2127 = vcombine.low %v1985, %v1986
        %v2128 = vcombine.low %v2001, %v2008
        %v2130 = vunpack.c.l.s4 1966171168
        %v2131 = vunpack.c.0.s8 %v2130
        %v2132 = vlaneseq
        %v2133 = vshrl.u32 %v2132, 7
        %v2134 = vsub.s32 %v2131, %v2133
        %v2135 = vrot.slane %v2125, %v2134
        %v2137 = vunpack.c.l.s4 1966171168
        %v2138 = vunpack.c.0.s8 %v2137
        %v2139 = vlaneseq
        %v2140 = vshrl.u32 %v2139, 7
        %v2141 = vsub.s32 %v2138, %v2140
        %v2142 = vrot.slane %v2126, %v2141
        %v2144 = vunpack.c.l.s4 1966171168
        %v2145 = vunpack.c.0.s8 %v2144
        %v2146 = vlaneseq
        %v2147 = vshrl.u32 %v2146, 7
        %v2148 = vsub.s32 %v2145, %v2147
        %v2149 = vrot.slane %v2127, %v2148
        %v2151 = vunpack.c.l.s4 1966171168
        %v2152 = vunpack.c.0.s8 %v2151
        %v2153 = vlaneseq
        %v2154 = vshrl.u32 %v2153, 7
        %v2155 = vsub.s32 %v2152, %v2154
        %v2156 = vrot.slane %v2128, %v2155
        %v2157 = vcombine.low %v2135, %v2142
        %v2158 = vcombine.low %v2149, %v2156
        %v2160 = vunpack.c.l.s4 1966171168
        %v2161 = vunpack.c.0.s8 %v2160
        %v2162 = vlaneseq
        %v2163 = vshrl.u32 %v2162, 7
        %v2164 = vsub.s32 %v2161, %v2163
        %v2165 = vrot.slane %v2157, %v2164
        %v2167 = vunpack.c.l.s4 1966171168
        %v2168 = vunpack.c.0.s8 %v2167
        %v2169 = vlaneseq
        %v2170 = vshrl.u32 %v2169, 7
        %v2171 = vsub.s32 %v2168, %v2170
        %v2172 = vrot.slane %v2158, %v2171
        %v2173 = vcombine.low %v2165, %v2172
        %v2174 = vcombine.low %v2009, %v2024
        %v2175 = vcombine.low %v2031, %v2032
        %v2176 = vcombine.low %v2047, %v2054
        %v2177 = vcombine.low %v2055, %v2070
        %v2179 = vunpack.c.l.s4 1966171168
        %v2180 = vunpack.c.0.s8 %v2179
        %v2181 = vlaneseq
        %v2182 = vshrl.u32 %v2181, 7
        %v2183 = vsub.s32 %v2180, %v2182
        %v2184 = vrot.slane %v2174, %v2183
        %v2186 = vunpack.c.l.s4 1966171168
        %v2187 = vunpack.c.0.s8 %v2186
        %v2188 = vlaneseq
        %v2189 = vshrl.u32 %v2188, 7
        %v2190 = vsub.s32 %v2187, %v2189
        %v2191 = vrot.slane %v2175, %v2190
        %v2193 = vunpack.c.l.s4 1966171168
        %v2194 = vunpack.c.0.s8 %v2193
        %v2195 = vlaneseq
        %v2196 = vshrl.u32 %v2195, 7
        %v2197 = vsub.s32 %v2194, %v2196
        %v2198 = vrot.slane %v2176, %v2197
        %v2200 = vunpack.c.l.s4 1966171168
        %v2201 = vunpack.c.0.s8 %v2200
        %v2202 = vlaneseq
        %v2203 = vshrl.u32 %v2202, 7
        %v2204 = vsub.s32 %v2201, %v2203
        %v2205 = vrot.slane %v2177, %v2204
        %v2206 = vcombine.low %v2184, %v2191
        %v2207 = vcombine.low %v2198, %v2205
        %v2209 = vunpack.c.l.s4 1966171168
        %v2210 = vunpack.c.0.s8 %v2209
        %v2211 = vlaneseq
        %v2212 = vshrl.u32 %v2211, 7
        %v2213 = vsub.s32 %v2210, %v2212
        %v2214 = vrot.slane %v2206, %v2213
        %v2216 = vunpack.c.l.s4 1966171168
        %v2217 = vunpack.c.0.s8 %v2216
        %v2218 = vlaneseq
        %v2219 = vshrl.u32 %v2218, 7
        %v2220 = vsub.s32 %v2217, %v2219
        %v2221 = vrot.slane %v2207, %v2220
        %v2222 = vcombine.low %v2214, %v2221
        %v2223 = vcombine.low %v2077, %v2078
        %v2224 = vcombine.low %v2093, %v2100
        %v2225 = vcombine.low %v2101, %v2116
        %v2226 = vcombine.low %v2123, %v2124
        %v2228 = vunpack.c.l.s4 1966171168
        %v2229 = vunpack.c.0.s8 %v2228
        %v2230 = vlaneseq
        %v2231 = vshrl.u32 %v2230, 7
        %v2232 = vsub.s32 %v2229, %v2231
        %v2233 = vrot.slane %v2223, %v2232
        %v2235 = vunpack.c.l.s4 1966171168
        %v2236 = vunpack.c.0.s8 %v2235
        %v2237 = vlaneseq
        %v2238 = vshrl.u32 %v2237, 7
        %v2239 = vsub.s32 %v2236, %v2238
        %v2240 = vrot.slane %v2224, %v2239
        %v2242 = vunpack.c.l.s4 1966171168
        %v2243 = vunpack.c.0.s8 %v2242
        %v2244 = vlaneseq
        %v2245 = vshrl.u32 %v2244, 7
        %v2246 = vsub.s32 %v2243, %v2245
        %v2247 = vrot.slane %v2225, %v2246
        %v2249 = vunpack.c.l.s4 1966171168
        %v2250 = vunpack.c.0.s8 %v2249
        %v2251 = vlaneseq
        %v2252 = vshrl.u32 %v2251, 7
        %v2253 = vsub.s32 %v2250, %v2252
        %v2254 = vrot.slane %v2226, %v2253
        %v2255 = vcombine.low %v2233, %v2240
        %v2256 = vcombine.low %v2247, %v2254
        %v2258 = vunpack.c.l.s4 1966171168
        %v2259 = vunpack.c.0.s8 %v2258
        %v2260 = vlaneseq
        %v2261 = vshrl.u32 %v2260, 7
        %v2262 = vsub.s32 %v2259, %v2261
        %v2263 = vrot.slane %v2255, %v2262
        %v2265 = vunpack.c.l.s4 1966171168
        %v2266 = vunpack.c.0.s8 %v2265
        %v2267 = vlaneseq
        %v2268 = vshrl.u32 %v2267, 7
        %v2269 = vsub.s32 %v2266, %v2268
        %v2270 = vrot.slane %v2256, %v2269
        %v2271 = vcombine.low %v2263, %v2270
        %v2275 = vpack.c.bf16 %v2222, %v2173
        %v2276 = vpack.c.bf16 %v2271, %v2271
        %v2277 = vld [vmem:[%s12] sm:$0xf]
        %v2278 = vld [vmem:[%s12 + $0x4] sm:$0xf]
        %v2279 = vld [vmem:[%s12 + $0x8] sm:$0xf]
        %v2280 = vld [vmem:[%s12 + $0xc] sm:$0xf]
        %v2281 = vld [vmem:[%s13] sm:$0x1]
        %v2283 = vlaneseq
        %v2284 = vshrl.u32 %v2283, 7
        %v2285 = vsub.s32 0, %v2284
        %v2286 = vrot.slane %v2281, %v2285
        %v2292 = vunpack.c.l.b16 %v2277
        %v2293 = vunpack.c.l.b16 %v2278
        %v2294 = vunpack.c.l.b16 %v2279
        %v2295 = vunpack.c.l.b16 %v2280
        %v2296 = vpack.c.b16 %v2293, %v2292
        %v2297 = vpack.c.b16 %v2295, %v2294
        %v2301 = vsel %vm880, %v2275, 0
        %v2304 = vsel %vm880, %v2276, 0
        %2306 = vmatprep.subr.bf16.mxu0 0
        %2307 = vmatpush1.bf16.msra.mxu0 %v2296
        %2308 = vmatprep.subr.bf16.mxu0 0
        %2309 = vmatpush1.bf16.msra.mxu0 %v2297
        %2310 = vmatprep.subr.bf16.mxu0 0
        %2311 = vmatpush1.bf16.msra.mxu0 0
        %2312 = vmatprep.subr.bf16.mxu0 0
        %2313 = vmatpush1.bf16.msra.mxu0 0
        %2314 = vmatprep.subr.bf16.mxu0 0
        %2315 = vmatpush1.bf16.msra.mxu0 0
        %2316 = vmatprep.subr.bf16.mxu0 0
        %2317 = vmatpush1.bf16.msra.mxu0 0
        %2318 = vmatprep.subr.bf16.mxu0 0
        %2319 = vmatpush1.bf16.msra.mxu0 0
        %2320 = vmatprep.subr.bf16.mxu0 0
        %2321 = vmatpush1.bf16.msra.mxu0 0
        %2322 = vmatprep.subr.bf16.mxu0 0
        %2323 = vmatpush1.bf16.msra.mxu0 0
        %2324 = vmatprep.subr.bf16.mxu0 0
        %2325 = vmatpush1.bf16.msra.mxu0 0
        %2326 = vmatprep.subr.bf16.mxu0 0
        %2327 = vmatpush1.bf16.msra.mxu0 0
        %2328 = vmatprep.subr.bf16.mxu0 0
        %2329 = vmatpush1.bf16.msra.mxu0 0
        %2330 = vmatprep.subr.bf16.mxu0 0
        %2331 = vmatpush1.bf16.msra.mxu0 0
        %2332 = vmatprep.subr.bf16.mxu0 0
        %2333 = vmatpush1.bf16.msra.mxu0 0
        %2334 = vmatprep.subr.bf16.mxu0 0
        %2335 = vmatpush1.bf16.msra.mxu0 0
        %2336 = vmatprep.subr.bf16.mxu0 0
        %2337 = vmatpush1.bf16.msra.mxu0 0
        %2338 = vmatprep.mubr.bf16.mxu0 0
        %2339 = vmatmul.mubr.bf16.gmra.mrb[0].mxu0 %v2301
        %v2340 = vpop.f32.mrb[0].mxu0
        %v2341 = vadd.f32 %v2286, %v2340
        %v2342 = vpop.f32.mrb[0].mxu0
        %v2343 = vpop.f32.mrb[0].mxu0
        %v2344 = vadd.f32 %v2286, %v2343
        %v2345 = vpop.f32.mrb[0].mxu0
        %2346 = vmatprep.mubr.bf16.mxu0 0
        %2347 = vmatmul.mubr.bf16.gmra.mrb[0].mxu0 %v2304
        %v2348 = vpop.f32.mrb[0].mxu0
        %v2349 = vadd.f32 %v2286, %v2348
        %v2350 = vpop.f32.mrb[0].mxu0
        %v2351 = vpop.f32.mrb[0].mxu0
        %v2352 = vpop.f32.mrb[0].mxu0
        %2353 = vdwg.mxu0
        %v2357 = vcombine.high %v2341, %v2341
        %v2359 = vunpack.c.l.s4 1966171168
        %v2360 = vunpack.c.0.s8 %v2359
        %v2361 = vlaneseq
        %v2362 = vshrl.u32 %v2361, 7
        %v2363 = vsub.s32 %v2360, %v2362
        %v2364 = vrot.slane %v2341, %v2363
        %v2366 = vunpack.c.l.s4 1966171168
        %v2367 = vunpack.c.0.s8 %v2366
        %v2368 = vlaneseq
        %v2369 = vshrl.u32 %v2368, 7
        %v2370 = vsub.s32 %v2367, %v2369
        %v2371 = vrot.slane %v2357, %v2370
        %v2372 = vcombine.high %v2364, %v2364
        %v2373 = vcombine.high %v2371, %v2371
        %v2375 = vunpack.c.l.s4 1966171168
        %v2376 = vunpack.c.0.s8 %v2375
        %v2377 = vlaneseq
        %v2378 = vshrl.u32 %v2377, 7
        %v2379 = vsub.s32 %v2376, %v2378
        %v2380 = vrot.slane %v2364, %v2379
        %v2382 = vunpack.c.l.s4 1966171168
        %v2383 = vunpack.c.0.s8 %v2382
        %v2384 = vlaneseq
        %v2385 = vshrl.u32 %v2384, 7
        %v2386 = vsub.s32 %v2383, %v2385
        %v2387 = vrot.slane %v2371, %v2386
        %v2389 = vunpack.c.l.s4 1966171168
        %v2390 = vunpack.c.0.s8 %v2389
        %v2391 = vlaneseq
        %v2392 = vshrl.u32 %v2391, 7
        %v2393 = vsub.s32 %v2390, %v2392
        %v2394 = vrot.slane %v2372, %v2393
        %v2396 = vunpack.c.l.s4 1966171168
        %v2397 = vunpack.c.0.s8 %v2396
        %v2398 = vlaneseq
        %v2399 = vshrl.u32 %v2398, 7
        %v2400 = vsub.s32 %v2397, %v2399
        %v2401 = vrot.slane %v2373, %v2400
        %v2402 = vcombine.high %v2380, %v2380
        %v2403 = vcombine.high %v2387, %v2387
        %v2404 = vcombine.high %v2394, %v2394
        %v2405 = vcombine.high %v2401, %v2401
        %v2406 = vcombine.high %v2344, %v2344
        %v2408 = vunpack.c.l.s4 1966171168
        %v2409 = vunpack.c.0.s8 %v2408
        %v2410 = vlaneseq
        %v2411 = vshrl.u32 %v2410, 7
        %v2412 = vsub.s32 %v2409, %v2411
        %v2413 = vrot.slane %v2344, %v2412
        %v2415 = vunpack.c.l.s4 1966171168
        %v2416 = vunpack.c.0.s8 %v2415
        %v2417 = vlaneseq
        %v2418 = vshrl.u32 %v2417, 7
        %v2419 = vsub.s32 %v2416, %v2418
        %v2420 = vrot.slane %v2406, %v2419
        %v2421 = vcombine.high %v2413, %v2413
        %v2422 = vcombine.high %v2420, %v2420
        %v2424 = vunpack.c.l.s4 1966171168
        %v2425 = vunpack.c.0.s8 %v2424
        %v2426 = vlaneseq
        %v2427 = vshrl.u32 %v2426, 7
        %v2428 = vsub.s32 %v2425, %v2427
        %v2429 = vrot.slane %v2413, %v2428
        %v2431 = vunpack.c.l.s4 1966171168
        %v2432 = vunpack.c.0.s8 %v2431
        %v2433 = vlaneseq
        %v2434 = vshrl.u32 %v2433, 7
        %v2435 = vsub.s32 %v2432, %v2434
        %v2436 = vrot.slane %v2420, %v2435
        %v2438 = vunpack.c.l.s4 1966171168
        %v2439 = vunpack.c.0.s8 %v2438
        %v2440 = vlaneseq
        %v2441 = vshrl.u32 %v2440, 7
        %v2442 = vsub.s32 %v2439, %v2441
        %v2443 = vrot.slane %v2421, %v2442
        %v2445 = vunpack.c.l.s4 1966171168
        %v2446 = vunpack.c.0.s8 %v2445
        %v2447 = vlaneseq
        %v2448 = vshrl.u32 %v2447, 7
        %v2449 = vsub.s32 %v2446, %v2448
        %v2450 = vrot.slane %v2422, %v2449
        %v2451 = vcombine.high %v2429, %v2429
        %v2452 = vcombine.high %v2436, %v2436
        %v2453 = vcombine.high %v2443, %v2443
        %v2454 = vcombine.high %v2450, %v2450
        %v2455 = vcombine.high %v2349, %v2349
        %v2457 = vunpack.c.l.s4 1966171168
        %v2458 = vunpack.c.0.s8 %v2457
        %v2459 = vlaneseq
        %v2460 = vshrl.u32 %v2459, 7
        %v2461 = vsub.s32 %v2458, %v2460
        %v2462 = vrot.slane %v2349, %v2461
        %v2464 = vunpack.c.l.s4 1966171168
        %v2465 = vunpack.c.0.s8 %v2464
        %v2466 = vlaneseq
        %v2467 = vshrl.u32 %v2466, 7
        %v2468 = vsub.s32 %v2465, %v2467
        %v2469 = vrot.slane %v2455, %v2468
        %v2470 = vcombine.high %v2462, %v2462
        %v2471 = vcombine.high %v2469, %v2469
        %v2473 = vunpack.c.l.s4 1966171168
        %v2474 = vunpack.c.0.s8 %v2473
        %v2475 = vlaneseq
        %v2476 = vshrl.u32 %v2475, 7
        %v2477 = vsub.s32 %v2474, %v2476
        %v2478 = vrot.slane %v2462, %v2477
        %v2480 = vunpack.c.l.s4 1966171168
        %v2481 = vunpack.c.0.s8 %v2480
        %v2482 = vlaneseq
        %v2483 = vshrl.u32 %v2482, 7
        %v2484 = vsub.s32 %v2481, %v2483
        %v2485 = vrot.slane %v2469, %v2484
        %v2487 = vunpack.c.l.s4 1966171168
        %v2488 = vunpack.c.0.s8 %v2487
        %v2489 = vlaneseq
        %v2490 = vshrl.u32 %v2489, 7
        %v2491 = vsub.s32 %v2488, %v2490
        %v2492 = vrot.slane %v2470, %v2491
        %v2494 = vunpack.c.l.s4 1966171168
        %v2495 = vunpack.c.0.s8 %v2494
        %v2496 = vlaneseq
        %v2497 = vshrl.u32 %v2496, 7
        %v2498 = vsub.s32 %v2495, %v2497
        %v2499 = vrot.slane %v2471, %v2498
        %v2500 = vcombine.high %v2478, %v2478
        %v2501 = vcombine.high %v2485, %v2485
        %v2502 = vcombine.high %v2492, %v2492
        %v2503 = vcombine.high %v2499, %v2499
        %2528 = vrot.lane.b32.xlu0 %v2380, 96
        %v2529 = vpop.permute.xlu0 %2528
        %2530 = vrot.lane.b32.xlu0 %v2394, 96
        %v2531 = vpop.permute.xlu0 %2530
        %2532 = vrot.lane.b32.xlu0 %v2402, 96
        %v2533 = vpop.permute.xlu0 %2532
        %2534 = vrot.lane.b32.xlu0 %v2404, 96
        %v2535 = vpop.permute.xlu0 %2534
        %2536 = vrot.lane.b32.xlu0 %v2387, 96
        %v2537 = vpop.permute.xlu0 %2536
        %2538 = vrot.lane.b32.xlu0 %v2401, 96
        %v2539 = vpop.permute.xlu0 %2538
        %2540 = vrot.lane.b32.xlu0 %v2403, 96
        %v2541 = vpop.permute.xlu0 %2540
        %2542 = vrot.lane.b32.xlu0 %v2405, 96
        %v2543 = vpop.permute.xlu0 %2542
        %2544 = vrot.lane.b32.xlu0 %v2429, 96
        %v2545 = vpop.permute.xlu0 %2544
        %2546 = vrot.lane.b32.xlu0 %v2443, 96
        %v2547 = vpop.permute.xlu0 %2546
        %2548 = vrot.lane.b32.xlu0 %v2451, 96
        %v2549 = vpop.permute.xlu0 %2548
        %2550 = vrot.lane.b32.xlu0 %v2453, 96
        %v2551 = vpop.permute.xlu0 %2550
        %2552 = vrot.lane.b32.xlu0 %v2436, 96
        %v2553 = vpop.permute.xlu0 %2552
        %2554 = vrot.lane.b32.xlu0 %v2450, 96
        %v2555 = vpop.permute.xlu0 %2554
        %2556 = vrot.lane.b32.xlu0 %v2452, 96
        %v2557 = vpop.permute.xlu0 %2556
        %2558 = vrot.lane.b32.xlu0 %v2454, 96
        %v2559 = vpop.permute.xlu0 %2558
        %2560 = vrot.lane.b32.xlu0 %v2478, 96
        %v2561 = vpop.permute.xlu0 %2560
        %2562 = vrot.lane.b32.xlu0 %v2492, 96
        %v2563 = vpop.permute.xlu0 %2562
        %2564 = vrot.lane.b32.xlu0 %v2500, 96
        %v2565 = vpop.permute.xlu0 %2564
        %2566 = vrot.lane.b32.xlu0 %v2502, 96
        %v2567 = vpop.permute.xlu0 %2566
        %2568 = vrot.lane.b32.xlu0 %v2485, 96
        %v2569 = vpop.permute.xlu0 %2568
        %2570 = vrot.lane.b32.xlu0 %v2499, 96
        %v2571 = vpop.permute.xlu0 %2570
        %2572 = vrot.lane.b32.xlu0 %v2501, 96
        %v2573 = vpop.permute.xlu0 %2572
        %2574 = vrot.lane.b32.xlu0 %v2503, 96
        %v2575 = vpop.permute.xlu0 %2574
        %v2600 = vmul.f32 %v2380, %v2529
        %v2601 = vmul.f32 %v2394, %v2531
        %v2602 = vmul.f32 %v2402, %v2533
        %v2603 = vmul.f32 %v2404, %v2535
        %v2604 = vmul.f32 %v2387, %v2537
        %v2605 = vmul.f32 %v2401, %v2539
        %v2606 = vmul.f32 %v2403, %v2541
        %v2607 = vmul.f32 %v2405, %v2543
        %v2608 = vmul.f32 %v2429, %v2545
        %v2609 = vmul.f32 %v2443, %v2547
        %v2610 = vmul.f32 %v2451, %v2549
        %v2611 = vmul.f32 %v2453, %v2551
        %v2612 = vmul.f32 %v2436, %v2553
        %v2613 = vmul.f32 %v2450, %v2555
        %v2614 = vmul.f32 %v2452, %v2557
        %v2615 = vmul.f32 %v2454, %v2559
        %v2616 = vmul.f32 %v2478, %v2561
        %v2617 = vmul.f32 %v2492, %v2563
        %v2618 = vmul.f32 %v2500, %v2565
        %v2619 = vmul.f32 %v2502, %v2567
        %v2620 = vmul.f32 %v2485, %v2569
        %v2621 = vmul.f32 %v2499, %v2571
        %v2622 = vmul.f32 %v2501, %v2573
        %v2623 = vmul.f32 %v2503, %v2575
        %v2648 = vcombine.low %v2600, %v2601
        %v2650 = vunpack.c.l.s4 1966171168
        %v2651 = vunpack.c.0.s8 %v2650
        %v2652 = vlaneseq
        %v2653 = vshrl.u32 %v2652, 7
        %v2654 = vsub.s32 %v2651, %v2653
        %v2655 = vrot.slane %v2648, %v2654
        %v2657 = vunpack.c.l.s4 1966171168
        %v2658 = vunpack.c.0.s8 %v2657
        %v2659 = vlaneseq
        %v2660 = vshrl.u32 %v2659, 7
        %v2661 = vsub.s32 %v2658, %v2660
        %v2662 = vrot.slane %v2602, %v2661
        %v2663 = vcombine.low %v2655, %v2662
        %v2665 = vunpack.c.l.s4 1966171168
        %v2666 = vunpack.c.0.s8 %v2665
        %v2667 = vlaneseq
        %v2668 = vshrl.u32 %v2667, 7
        %v2669 = vsub.s32 %v2666, %v2668
        %v2670 = vrot.slane %v2663, %v2669
        %v2671 = vcombine.low %v2603, %v2604
        %v2673 = vunpack.c.l.s4 1966171168
        %v2674 = vunpack.c.0.s8 %v2673
        %v2675 = vlaneseq
        %v2676 = vshrl.u32 %v2675, 7
        %v2677 = vsub.s32 %v2674, %v2676
        %v2678 = vrot.slane %v2671, %v2677
        %v2680 = vunpack.c.l.s4 1966171168
        %v2681 = vunpack.c.0.s8 %v2680
        %v2682 = vlaneseq
        %v2683 = vshrl.u32 %v2682, 7
        %v2684 = vsub.s32 %v2681, %v2683
        %v2685 = vrot.slane %v2605, %v2684
        %v2686 = vcombine.low %v2678, %v2685
        %v2688 = vunpack.c.l.s4 1966171168
        %v2689 = vunpack.c.0.s8 %v2688
        %v2690 = vlaneseq
        %v2691 = vshrl.u32 %v2690, 7
        %v2692 = vsub.s32 %v2689, %v2691
        %v2693 = vrot.slane %v2686, %v2692
        %v2694 = vcombine.low %v2606, %v2607
        %v2696 = vunpack.c.l.s4 1966171168
        %v2697 = vunpack.c.0.s8 %v2696
        %v2698 = vlaneseq
        %v2699 = vshrl.u32 %v2698, 7
        %v2700 = vsub.s32 %v2697, %v2699
        %v2701 = vrot.slane %v2694, %v2700
        %v2703 = vunpack.c.l.s4 1966171168
        %v2704 = vunpack.c.0.s8 %v2703
        %v2705 = vlaneseq
        %v2706 = vshrl.u32 %v2705, 7
        %v2707 = vsub.s32 %v2704, %v2706
        %v2708 = vrot.slane %v2608, %v2707
        %v2709 = vcombine.low %v2701, %v2708
        %v2711 = vunpack.c.l.s4 1966171168
        %v2712 = vunpack.c.0.s8 %v2711
        %v2713 = vlaneseq
        %v2714 = vshrl.u32 %v2713, 7
        %v2715 = vsub.s32 %v2712, %v2714
        %v2716 = vrot.slane %v2709, %v2715
        %v2717 = vcombine.low %v2609, %v2610
        %v2719 = vunpack.c.l.s4 1966171168
        %v2720 = vunpack.c.0.s8 %v2719
        %v2721 = vlaneseq
        %v2722 = vshrl.u32 %v2721, 7
        %v2723 = vsub.s32 %v2720, %v2722
        %v2724 = vrot.slane %v2717, %v2723
        %v2726 = vunpack.c.l.s4 1966171168
        %v2727 = vunpack.c.0.s8 %v2726
        %v2728 = vlaneseq
        %v2729 = vshrl.u32 %v2728, 7
        %v2730 = vsub.s32 %v2727, %v2729
        %v2731 = vrot.slane %v2611, %v2730
        %v2732 = vcombine.low %v2724, %v2731
        %v2734 = vunpack.c.l.s4 1966171168
        %v2735 = vunpack.c.0.s8 %v2734
        %v2736 = vlaneseq
        %v2737 = vshrl.u32 %v2736, 7
        %v2738 = vsub.s32 %v2735, %v2737
        %v2739 = vrot.slane %v2732, %v2738
        %v2740 = vcombine.low %v2612, %v2613
        %v2742 = vunpack.c.l.s4 1966171168
        %v2743 = vunpack.c.0.s8 %v2742
        %v2744 = vlaneseq
        %v2745 = vshrl.u32 %v2744, 7
        %v2746 = vsub.s32 %v2743, %v2745
        %v2747 = vrot.slane %v2740, %v2746
        %v2749 = vunpack.c.l.s4 1966171168
        %v2750 = vunpack.c.0.s8 %v2749
        %v2751 = vlaneseq
        %v2752 = vshrl.u32 %v2751, 7
        %v2753 = vsub.s32 %v2750, %v2752
        %v2754 = vrot.slane %v2614, %v2753
        %v2755 = vcombine.low %v2747, %v2754
        %v2757 = vunpack.c.l.s4 1966171168
        %v2758 = vunpack.c.0.s8 %v2757
        %v2759 = vlaneseq
        %v2760 = vshrl.u32 %v2759, 7
        %v2761 = vsub.s32 %v2758, %v2760
        %v2762 = vrot.slane %v2755, %v2761
        %v2763 = vcombine.low %v2615, %v2616
        %v2765 = vunpack.c.l.s4 1966171168
        %v2766 = vunpack.c.0.s8 %v2765
        %v2767 = vlaneseq
        %v2768 = vshrl.u32 %v2767, 7
        %v2769 = vsub.s32 %v2766, %v2768
        %v2770 = vrot.slane %v2763, %v2769
        %v2772 = vunpack.c.l.s4 1966171168
        %v2773 = vunpack.c.0.s8 %v2772
        %v2774 = vlaneseq
        %v2775 = vshrl.u32 %v2774, 7
        %v2776 = vsub.s32 %v2773, %v2775
        %v2777 = vrot.slane %v2617, %v2776
        %v2778 = vcombine.low %v2770, %v2777
        %v2780 = vunpack.c.l.s4 1966171168
        %v2781 = vunpack.c.0.s8 %v2780
        %v2782 = vlaneseq
        %v2783 = vshrl.u32 %v2782, 7
        %v2784 = vsub.s32 %v2781, %v2783
        %v2785 = vrot.slane %v2778, %v2784
        %v2786 = vcombine.low %v2618, %v2619
        %v2788 = vunpack.c.l.s4 1966171168
        %v2789 = vunpack.c.0.s8 %v2788
        %v2790 = vlaneseq
        %v2791 = vshrl.u32 %v2790, 7
        %v2792 = vsub.s32 %v2789, %v2791
        %v2793 = vrot.slane %v2786, %v2792
        %v2795 = vunpack.c.l.s4 1966171168
        %v2796 = vunpack.c.0.s8 %v2795
        %v2797 = vlaneseq
        %v2798 = vshrl.u32 %v2797, 7
        %v2799 = vsub.s32 %v2796, %v2798
        %v2800 = vrot.slane %v2620, %v2799
        %v2801 = vcombine.low %v2793, %v2800
        %v2803 = vunpack.c.l.s4 1966171168
        %v2804 = vunpack.c.0.s8 %v2803
        %v2805 = vlaneseq
        %v2806 = vshrl.u32 %v2805, 7
        %v2807 = vsub.s32 %v2804, %v2806
        %v2808 = vrot.slane %v2801, %v2807
        %v2809 = vcombine.low %v2621, %v2622
        %v2811 = vunpack.c.l.s4 1966171168
        %v2812 = vunpack.c.0.s8 %v2811
        %v2813 = vlaneseq
        %v2814 = vshrl.u32 %v2813, 7
        %v2815 = vsub.s32 %v2812, %v2814
        %v2816 = vrot.slane %v2809, %v2815
        %v2818 = vunpack.c.l.s4 1966171168
        %v2819 = vunpack.c.0.s8 %v2818
        %v2820 = vlaneseq
        %v2821 = vshrl.u32 %v2820, 7
        %v2822 = vsub.s32 %v2819, %v2821
        %v2823 = vrot.slane %v2623, %v2822
        %v2824 = vcombine.low %v2816, %v2823
        %v2826 = vunpack.c.l.s4 1966171168
        %v2827 = vunpack.c.0.s8 %v2826
        %v2828 = vlaneseq
        %v2829 = vshrl.u32 %v2828, 7
        %v2830 = vsub.s32 %v2827, %v2829
        %v2831 = vrot.slane %v2824, %v2830
        %vm2840 = vcmask 256000
        %v2841 = vsel %vm2840, %v2670, 0.0
        %v2842 = vrot.slane %v2841, 4
        %v2843 = vadd.f32 %v2841, %v2842
        %v2844 = vrot.slane %v2843, 2
        %v2845 = vadd.f32 %v2843, %v2844
        %v2846 = vrot.slane %v2845, 1
        %v2847 = vadd.f32 %v2845, %v2846
        %v2848 = vsel %vm2840, %v2693, 0.0
        %v2849 = vrot.slane %v2848, 4
        %v2850 = vadd.f32 %v2848, %v2849
        %v2851 = vrot.slane %v2850, 2
        %v2852 = vadd.f32 %v2850, %v2851
        %v2853 = vrot.slane %v2852, 1
        %v2854 = vadd.f32 %v2852, %v2853
        %v2855 = vsel %vm2840, %v2716, 0.0
        %v2856 = vrot.slane %v2855, 4
        %v2857 = vadd.f32 %v2855, %v2856
        %v2858 = vrot.slane %v2857, 2
        %v2859 = vadd.f32 %v2857, %v2858
        %v2860 = vrot.slane %v2859, 1
        %v2861 = vadd.f32 %v2859, %v2860
        %v2862 = vsel %vm2840, %v2739, 0.0
        %v2863 = vrot.slane %v2862, 4
        %v2864 = vadd.f32 %v2862, %v2863
        %v2865 = vrot.slane %v2864, 2
        %v2866 = vadd.f32 %v2864, %v2865
        %v2867 = vrot.slane %v2866, 1
        %v2868 = vadd.f32 %v2866, %v2867
        %v2869 = vsel %vm2840, %v2762, 0.0
        %v2870 = vrot.slane %v2869, 4
        %v2871 = vadd.f32 %v2869, %v2870
        %v2872 = vrot.slane %v2871, 2
        %v2873 = vadd.f32 %v2871, %v2872
        %v2874 = vrot.slane %v2873, 1
        %v2875 = vadd.f32 %v2873, %v2874
        %v2876 = vsel %vm2840, %v2785, 0.0
        %v2877 = vrot.slane %v2876, 4
        %v2878 = vadd.f32 %v2876, %v2877
        %v2879 = vrot.slane %v2878, 2
        %v2880 = vadd.f32 %v2878, %v2879
        %v2881 = vrot.slane %v2880, 1
        %v2882 = vadd.f32 %v2880, %v2881
        %v2883 = vsel %vm2840, %v2808, 0.0
        %v2884 = vrot.slane %v2883, 4
        %v2885 = vadd.f32 %v2883, %v2884
        %v2886 = vrot.slane %v2885, 2
        %v2887 = vadd.f32 %v2885, %v2886
        %v2888 = vrot.slane %v2887, 1
        %v2889 = vadd.f32 %v2887, %v2888
        %v2890 = vsel %vm2840, %v2831, 0.0
        %v2891 = vrot.slane %v2890, 4
        %v2892 = vadd.f32 %v2890, %v2891
        %v2893 = vrot.slane %v2892, 2
        %v2894 = vadd.f32 %v2892, %v2893
        %v2895 = vrot.slane %v2894, 1
        %v2896 = vadd.f32 %v2894, %v2895
        %v2898 = vrot.slane %v1920, 1
        %v2899 = vrot.slane %v1920, 2
        %v2900 = vrot.slane %v1920, 3
        %v2901 = vrot.slane %v1920, 4
        %v2902 = vrot.slane %v1920, 5
        %v2903 = vrot.slane %v1920, 6
        %v2904 = vrot.slane %v1920, 7
        %2905 = vrot.lane.b32.xlu0 %v1920, 96
        %v2906 = vpop.permute.xlu0 %2905
        %2907 = vrot.lane.b32.xlu0 %v2898, 96
        %v2908 = vpop.permute.xlu0 %2907
        %2909 = vrot.lane.b32.xlu0 %v2899, 96
        %v2910 = vpop.permute.xlu0 %2909
        %2911 = vrot.lane.b32.xlu0 %v2900, 96
        %v2912 = vpop.permute.xlu0 %2911
        %2913 = vrot.lane.b32.xlu0 %v2901, 96
        %v2914 = vpop.permute.xlu0 %2913
        %2915 = vrot.lane.b32.xlu0 %v2902, 96
        %v2916 = vpop.permute.xlu0 %2915
        %2917 = vrot.lane.b32.xlu0 %v2903, 96
        %v2918 = vpop.permute.xlu0 %2917
        %2919 = vrot.lane.b32.xlu0 %v2904, 96
        %v2920 = vpop.permute.xlu0 %2919
        %v2929 = vmul.f32 %v2847, %v2906
        %v2930 = vmul.f32 %v2854, %v2908
        %v2931 = vmul.f32 %v2861, %v2910
        %v2932 = vmul.f32 %v2868, %v2912
        %v2933 = vmul.f32 %v2875, %v2914
        %v2934 = vmul.f32 %v2882, %v2916
        %v2935 = vmul.f32 %v2889, %v2918
        %v2936 = vmul.f32 %v2896, %v2920
        %2937 = vrot.lane.b32.xlu0 %v1920, 64
        %v2938 = vpop.permute.xlu0 %2937
        %2939 = vrot.lane.b32.xlu0 %v2898, 64
        %v2940 = vpop.permute.xlu0 %2939
        %2941 = vrot.lane.b32.xlu0 %v2899, 64
        %v2942 = vpop.permute.xlu0 %2941
        %2943 = vrot.lane.b32.xlu0 %v2900, 64
        %v2944 = vpop.permute.xlu0 %2943
        %2945 = vrot.lane.b32.xlu0 %v2901, 64
        %v2946 = vpop.permute.xlu0 %2945
        %2947 = vrot.lane.b32.xlu0 %v2902, 64
        %v2948 = vpop.permute.xlu0 %2947
        %2949 = vrot.lane.b32.xlu0 %v2903, 64
        %v2950 = vpop.permute.xlu0 %2949
        %2951 = vrot.lane.b32.xlu0 %v2904, 64
        %v2952 = vpop.permute.xlu0 %2951
        %v2961 = vadd.f32 %v2929, %v2938
        %v2962 = vadd.f32 %v2930, %v2940
        %v2963 = vadd.f32 %v2931, %v2942
        %v2964 = vadd.f32 %v2932, %v2944
        %v2965 = vadd.f32 %v2933, %v2946
        %v2966 = vadd.f32 %v2934, %v2948
        %v2967 = vadd.f32 %v2935, %v2950
        %v2968 = vadd.f32 %v2936, %v2952
        %v2977 = vrot.slane %v2962, 7
        %v2978 = vsel %vm1855, %v2977, %v2961
        %v2979 = vrot.slane %v2963, 6
        %v2980 = vsel %vm1857, %v2979, %v2978
        %v2981 = vrot.slane %v2964, 5
        %v2982 = vsel %vm1859, %v2981, %v2980
        %v2983 = vrot.slane %v2965, 4
        %v2984 = vsel %vm1861, %v2983, %v2982
        %v2985 = vrot.slane %v2966, 3
        %v2986 = vsel %vm1863, %v2985, %v2984
        %v2987 = vrot.slane %v2967, 2
        %v2988 = vsel %vm1865, %v2987, %v2986
        %v2989 = vrot.slane %v2968, 1
        %v2990 = vsel %vm1867, %v2989, %v2988
        %2992 = vst.msk [vmem:[%s659] sm:$0xff] %vm880, %v2990
        %vm2993 = vcmp.ne.f32.partialorder %v1476, 0.0
        %vm2994 = vcmp.ne.f32.partialorder %v1477, 0.0
        %vm2995 = vcmp.ne.f32.partialorder %v1478, 0.0
        %vm2996 = vcmp.ne.f32.partialorder %v1479, 0.0
        %vm2997 = vcmp.ne.f32.partialorder %v1480, 0.0
        %vm2998 = vcmp.ne.f32.partialorder %v1481, 0.0
        %vm2999 = vcmp.ne.f32.partialorder %v1482, 0.0
        %vm3000 = vcmp.ne.f32.partialorder %v1483, 0.0
        %vm3001 = vcmp.ne.f32.partialorder %v1484, 0.0
        %vm3002 = vcmp.ne.f32.partialorder %v1485, 0.0
        %vm3003 = vcmp.ne.f32.partialorder %v1486, 0.0
        %vm3004 = vcmp.ne.f32.partialorder %v1487, 0.0
        %vm3005 = vcmp.ne.f32.partialorder %v1488, 0.0
        %vm3006 = vcmp.ne.f32.partialorder %v1489, 0.0
        %vm3007 = vcmp.ne.f32.partialorder %v1490, 0.0
        %vm3008 = vcmp.ne.f32.partialorder %v1491, 0.0
        %v3009 = vsel %vm2993, 1, 0
        %v3010 = vsel %vm2994, 1, 0
        %v3011 = vsel %vm2995, 1, 0
        %v3012 = vsel %vm2996, 1, 0
        %v3013 = vsel %vm2997, 1, 0
        %v3014 = vsel %vm2998, 1, 0
        %v3015 = vsel %vm2999, 1, 0
        %v3016 = vsel %vm3000, 1, 0
        %v3017 = vsel %vm3001, 1, 0
        %v3018 = vsel %vm3002, 1, 0
        %v3019 = vsel %vm3003, 1, 0
        %v3020 = vsel %vm3004, 1, 0
        %v3021 = vsel %vm3005, 1, 0
        %v3022 = vsel %vm3006, 1, 0
        %v3023 = vsel %vm3007, 1, 0
        %v3024 = vsel %vm3008, 1, 0
        %v3025 = vcvt.s32.f32 %v3009
        %v3026 = vcvt.s32.f32 %v3010
        %v3027 = vcvt.s32.f32 %v3011
        %v3028 = vcvt.s32.f32 %v3012
        %v3029 = vcvt.s32.f32 %v3013
        %v3030 = vcvt.s32.f32 %v3014
        %v3031 = vcvt.s32.f32 %v3015
        %v3032 = vcvt.s32.f32 %v3016
        %v3033 = vcvt.s32.f32 %v3017
        %v3034 = vcvt.s32.f32 %v3018
        %v3035 = vcvt.s32.f32 %v3019
        %v3036 = vcvt.s32.f32 %v3020
        %v3037 = vcvt.s32.f32 %v3021
        %v3038 = vcvt.s32.f32 %v3022
        %v3039 = vcvt.s32.f32 %v3023
        %v3040 = vcvt.s32.f32 %v3024
        %3042 = vset.pattern.permute.xlu0 0
        %3043 = vperm.xlu0 %3042, %v3025
        %v3044 = vpop.permute.xlu0 %3043
        %3047 = vset.pattern.permute.xlu0 0
        %3048 = vperm.xlu0 %3047, %v3026
        %v3049 = vpop.permute.xlu0 %3048
        %3052 = vset.pattern.permute.xlu0 0
        %3053 = vperm.xlu0 %3052, %v3027
        %v3054 = vpop.permute.xlu0 %3053
        %3057 = vset.pattern.permute.xlu0 0
        %3058 = vperm.xlu0 %3057, %v3028
        %v3059 = vpop.permute.xlu0 %3058
        %3062 = vset.pattern.permute.xlu0 0
        %3063 = vperm.xlu0 %3062, %v3029
        %v3064 = vpop.permute.xlu0 %3063
        %3067 = vset.pattern.permute.xlu0 0
        %3068 = vperm.xlu0 %3067, %v3030
        %v3069 = vpop.permute.xlu0 %3068
        %3072 = vset.pattern.permute.xlu0 0
        %3073 = vperm.xlu0 %3072, %v3031
        %v3074 = vpop.permute.xlu0 %3073
        %3077 = vset.pattern.permute.xlu0 0
        %3078 = vperm.xlu0 %3077, %v3032
        %v3079 = vpop.permute.xlu0 %3078
        %3082 = vset.pattern.permute.xlu0 0
        %3083 = vperm.xlu0 %3082, %v3033
        %v3084 = vpop.permute.xlu0 %3083
        %3087 = vset.pattern.permute.xlu0 0
        %3088 = vperm.xlu0 %3087, %v3034
        %v3089 = vpop.permute.xlu0 %3088
        %3092 = vset.pattern.permute.xlu0 0
        %3093 = vperm.xlu0 %3092, %v3035
        %v3094 = vpop.permute.xlu0 %3093
        %3097 = vset.pattern.permute.xlu0 0
        %3098 = vperm.xlu0 %3097, %v3036
        %v3099 = vpop.permute.xlu0 %3098
        %3102 = vset.pattern.permute.xlu0 0
        %3103 = vperm.xlu0 %3102, %v3037
        %v3104 = vpop.permute.xlu0 %3103
        %3107 = vset.pattern.permute.xlu0 0
        %3108 = vperm.xlu0 %3107, %v3038
        %v3109 = vpop.permute.xlu0 %3108
        %3112 = vset.pattern.permute.xlu0 0
        %3113 = vperm.xlu0 %3112, %v3039
        %v3114 = vpop.permute.xlu0 %3113
        %3117 = vset.pattern.permute.xlu0 0
        %3118 = vperm.xlu0 %3117, %v3040
        %v3119 = vpop.permute.xlu0 %3118
        %v3121 = vmul.f32 %v1556, %v3044
        %v3122 = vmul.f32 %v1557, %v3049
        %v3123 = vmul.f32 %v1558, %v3054
        %v3124 = vmul.f32 %v1559, %v3059
        %v3125 = vmul.f32 %v1560, %v3064
        %v3126 = vmul.f32 %v1561, %v3069
        %v3127 = vmul.f32 %v1562, %v3074
        %v3128 = vmul.f32 %v1563, %v3079
        %v3129 = vmul.f32 %v1564, %v3084
        %v3130 = vmul.f32 %v1565, %v3089
        %v3131 = vmul.f32 %v1566, %v3094
        %v3132 = vmul.f32 %v1567, %v3099
        %v3133 = vmul.f32 %v1568, %v3104
        %v3134 = vmul.f32 %v1569, %v3109
        %v3135 = vmul.f32 %v1570, %v3114
        %v3136 = vmul.f32 %v1571, %v3119
        %v3137 = vmul.f32 %v831, %v1509
        %v3138 = vmul.f32 %v832, %v1511
        %v3139 = vmul.f32 %v831, %v1513
        %v3140 = vmul.f32 %v832, %v1515
        %v3141 = vmul.f32 %v831, %v1517
        %v3142 = vmul.f32 %v832, %v1519
        %v3143 = vmul.f32 %v831, %v1521
        %v3144 = vmul.f32 %v832, %v1523
        %v3145 = vmul.f32 %v831, %v1525
        %v3146 = vmul.f32 %v832, %v1527
        %v3147 = vmul.f32 %v831, %v1529
        %v3148 = vmul.f32 %v832, %v1531
        %v3149 = vmul.f32 %v831, %v1533
        %v3150 = vmul.f32 %v832, %v1535
        %v3151 = vmul.f32 %v831, %v1537
        %v3152 = vmul.f32 %v832, %v1539
        %v3153 = vmul.f32 %v3137, %v3044
        %v3154 = vmul.f32 %v3138, %v3049
        %v3155 = vmul.f32 %v3139, %v3054
        %v3156 = vmul.f32 %v3140, %v3059
        %v3157 = vmul.f32 %v3141, %v3064
        %v3158 = vmul.f32 %v3142, %v3069
        %v3159 = vmul.f32 %v3143, %v3074
        %v3160 = vmul.f32 %v3144, %v3079
        %v3161 = vmul.f32 %v3145, %v3084
        %v3162 = vmul.f32 %v3146, %v3089
        %v3163 = vmul.f32 %v3147, %v3094
        %v3164 = vmul.f32 %v3148, %v3099
        %v3165 = vmul.f32 %v3149, %v3104
        %v3166 = vmul.f32 %v3150, %v3109
        %v3167 = vmul.f32 %v3151, %v3114
        %v3168 = vmul.f32 %v3152, %v3119
        %v3169 = vld [vmem:[%s713] sm:$0xff]
        %v3170 = vld [vmem:[%s713 + $0x8] sm:$0xff]
        %v3171 = vld [vmem:[%s713 + $0x10] sm:$0xff]
        %v3172 = vld [vmem:[%s713 + $0x18] sm:$0xff]
        %v3173 = vld [vmem:[%s713 + $0x20] sm:$0xff]
        %v3174 = vld [vmem:[%s713 + $0x28] sm:$0xff]
        %v3175 = vld [vmem:[%s713 + $0x30] sm:$0xff]
        %v3176 = vld [vmem:[%s713 + $0x38] sm:$0xff]
        %v3177 = vld [vmem:[%s713 + $0x40] sm:$0xff]
        %v3178 = vld [vmem:[%s713 + $0x48] sm:$0xff]
        %v3179 = vld [vmem:[%s713 + $0x50] sm:$0xff]
        %v3180 = vld [vmem:[%s713 + $0x58] sm:$0xff]
        %v3181 = vld [vmem:[%s713 + $0x60] sm:$0xff]
        %v3182 = vld [vmem:[%s713 + $0x68] sm:$0xff]
        %v3183 = vld [vmem:[%s713 + $0x70] sm:$0xff]
        %v3184 = vld [vmem:[%s713 + $0x78] sm:$0xff]
        %v3185 = vld [vmem:[%s693] sm:$0xff]
        %v3186 = vld [vmem:[%s693 + $0x8] sm:$0xff]
        %3189 = vrot.lane.b32.xlu0 %v3185, 96
        %v3190 = vpop.permute.xlu0 %3189
        %3191 = vrot.lane.b32.xlu0 %v3186, 96
        %v3192 = vpop.permute.xlu0 %3191
        %v3195 = vmul.f32 %v3121, %v3190
        %v3196 = vmul.f32 %v3122, %v3192
        %v3197 = vmul.f32 %v3123, %v3190
        %v3198 = vmul.f32 %v3124, %v3192
        %v3199 = vmul.f32 %v3125, %v3190
        %v3200 = vmul.f32 %v3126, %v3192
        %v3201 = vmul.f32 %v3127, %v3190
        %v3202 = vmul.f32 %v3128, %v3192
        %v3203 = vmul.f32 %v3129, %v3190
        %v3204 = vmul.f32 %v3130, %v3192
        %v3205 = vmul.f32 %v3131, %v3190
        %v3206 = vmul.f32 %v3132, %v3192
        %v3207 = vmul.f32 %v3133, %v3190
        %v3208 = vmul.f32 %v3134, %v3192
        %v3209 = vmul.f32 %v3135, %v3190
        %v3210 = vmul.f32 %v3136, %v3192
        %vm3211 = vcmask 1048320
        %v3212 = vsel %vm3211, %v3195, 0.0
        %v3213 = vsel %vm3211, %v3196, 0.0
        %v3214 = vadd.f32 %v3212, %v3213
        %v3215 = vrot.slane %v3214, 4
        %v3216 = vadd.f32 %v3214, %v3215
        %v3217 = vrot.slane %v3216, 2
        %v3218 = vadd.f32 %v3216, %v3217
        %v3219 = vrot.slane %v3218, 1
        %v3220 = vadd.f32 %v3218, %v3219
        %v3221 = vsel %vm3211, %v3197, 0.0
        %v3222 = vsel %vm3211, %v3198, 0.0
        %v3223 = vadd.f32 %v3221, %v3222
        %v3224 = vrot.slane %v3223, 4
        %v3225 = vadd.f32 %v3223, %v3224
        %v3226 = vrot.slane %v3225, 2
        %v3227 = vadd.f32 %v3225, %v3226
        %v3228 = vrot.slane %v3227, 1
        %v3229 = vadd.f32 %v3227, %v3228
        %v3230 = vsel %vm3211, %v3199, 0.0
        %v3231 = vsel %vm3211, %v3200, 0.0
        %v3232 = vadd.f32 %v3230, %v3231
        %v3233 = vrot.slane %v3232, 4
        %v3234 = vadd.f32 %v3232, %v3233
        %v3235 = vrot.slane %v3234, 2
        %v3236 = vadd.f32 %v3234, %v3235
        %v3237 = vrot.slane %v3236, 1
        %v3238 = vadd.f32 %v3236, %v3237
        %v3239 = vsel %vm3211, %v3201, 0.0
        %v3240 = vsel %vm3211, %v3202, 0.0
        %v3241 = vadd.f32 %v3239, %v3240
        %v3242 = vrot.slane %v3241, 4
        %v3243 = vadd.f32 %v3241, %v3242
        %v3244 = vrot.slane %v3243, 2
        %v3245 = vadd.f32 %v3243, %v3244
        %v3246 = vrot.slane %v3245, 1
        %v3247 = vadd.f32 %v3245, %v3246
        %v3248 = vsel %vm3211, %v3203, 0.0
        %v3249 = vsel %vm3211, %v3204, 0.0
        %v3250 = vadd.f32 %v3248, %v3249
        %v3251 = vrot.slane %v3250, 4
        %v3252 = vadd.f32 %v3250, %v3251
        %v3253 = vrot.slane %v3252, 2
        %v3254 = vadd.f32 %v3252, %v3253
        %v3255 = vrot.slane %v3254, 1
        %v3256 = vadd.f32 %v3254, %v3255
        %v3257 = vsel %vm3211, %v3205, 0.0
        %v3258 = vsel %vm3211, %v3206, 0.0
        %v3259 = vadd.f32 %v3257, %v3258
        %v3260 = vrot.slane %v3259, 4
        %v3261 = vadd.f32 %v3259, %v3260
        %v3262 = vrot.slane %v3261, 2
        %v3263 = vadd.f32 %v3261, %v3262
        %v3264 = vrot.slane %v3263, 1
        %v3265 = vadd.f32 %v3263, %v3264
        %v3266 = vsel %vm3211, %v3207, 0.0
        %v3267 = vsel %vm3211, %v3208, 0.0
        %v3268 = vadd.f32 %v3266, %v3267
        %v3269 = vrot.slane %v3268, 4
        %v3270 = vadd.f32 %v3268, %v3269
        %v3271 = vrot.slane %v3270, 2
        %v3272 = vadd.f32 %v3270, %v3271
        %v3273 = vrot.slane %v3272, 1
        %v3274 = vadd.f32 %v3272, %v3273
        %v3275 = vsel %vm3211, %v3209, 0.0
        %v3276 = vsel %vm3211, %v3210, 0.0
        %v3277 = vadd.f32 %v3275, %v3276
        %v3278 = vrot.slane %v3277, 4
        %v3279 = vadd.f32 %v3277, %v3278
        %v3280 = vrot.slane %v3279, 2
        %v3281 = vadd.f32 %v3279, %v3280
        %v3282 = vrot.slane %v3281, 1
        %v3283 = vadd.f32 %v3281, %v3282
        %3285 = vset.pattern.permute.xlu0 0
        %3286 = vperm.xlu0 %3285, %v3169
        %v3287 = vpop.permute.xlu0 %3286
        %3290 = vset.pattern.permute.xlu0 0
        %3291 = vperm.xlu0 %3290, %v3170
        %v3292 = vpop.permute.xlu0 %3291
        %3295 = vset.pattern.permute.xlu0 0
        %3296 = vperm.xlu0 %3295, %v3171
        %v3297 = vpop.permute.xlu0 %3296
        %3300 = vset.pattern.permute.xlu0 0
        %3301 = vperm.xlu0 %3300, %v3172
        %v3302 = vpop.permute.xlu0 %3301
        %3305 = vset.pattern.permute.xlu0 0
        %3306 = vperm.xlu0 %3305, %v3173
        %v3307 = vpop.permute.xlu0 %3306
        %3310 = vset.pattern.permute.xlu0 0
        %3311 = vperm.xlu0 %3310, %v3174
        %v3312 = vpop.permute.xlu0 %3311
        %3315 = vset.pattern.permute.xlu0 0
        %3316 = vperm.xlu0 %3315, %v3175
        %v3317 = vpop.permute.xlu0 %3316
        %3320 = vset.pattern.permute.xlu0 0
        %3321 = vperm.xlu0 %3320, %v3176
        %v3322 = vpop.permute.xlu0 %3321
        %3325 = vset.pattern.permute.xlu0 0
        %3326 = vperm.xlu0 %3325, %v3177
        %v3327 = vpop.permute.xlu0 %3326
        %3330 = vset.pattern.permute.xlu0 0
        %3331 = vperm.xlu0 %3330, %v3178
        %v3332 = vpop.permute.xlu0 %3331
        %3335 = vset.pattern.permute.xlu0 0
        %3336 = vperm.xlu0 %3335, %v3179
        %v3337 = vpop.permute.xlu0 %3336
        %3340 = vset.pattern.permute.xlu0 0
        %3341 = vperm.xlu0 %3340, %v3180
        %v3342 = vpop.permute.xlu0 %3341
        %3345 = vset.pattern.permute.xlu0 0
        %3346 = vperm.xlu0 %3345, %v3181
        %v3347 = vpop.permute.xlu0 %3346
        %3350 = vset.pattern.permute.xlu0 0
        %3351 = vperm.xlu0 %3350, %v3182
        %v3352 = vpop.permute.xlu0 %3351
        %3355 = vset.pattern.permute.xlu0 0
        %3356 = vperm.xlu0 %3355, %v3183
        %v3357 = vpop.permute.xlu0 %3356
        %3360 = vset.pattern.permute.xlu0 0
        %3361 = vperm.xlu0 %3360, %v3184
        %v3362 = vpop.permute.xlu0 %3361
        %v3364 = vmul.f32 %v3153, %v3287
        %v3365 = vmul.f32 %v3154, %v3292
        %v3366 = vmul.f32 %v3155, %v3297
        %v3367 = vmul.f32 %v3156, %v3302
        %v3368 = vmul.f32 %v3157, %v3307
        %v3369 = vmul.f32 %v3158, %v3312
        %v3370 = vmul.f32 %v3159, %v3317
        %v3371 = vmul.f32 %v3160, %v3322
        %v3372 = vmul.f32 %v3161, %v3327
        %v3373 = vmul.f32 %v3162, %v3332
        %v3374 = vmul.f32 %v3163, %v3337
        %v3375 = vmul.f32 %v3164, %v3342
        %v3376 = vmul.f32 %v3165, %v3347
        %v3377 = vmul.f32 %v3166, %v3352
        %v3378 = vmul.f32 %v3167, %v3357
        %v3379 = vmul.f32 %v3168, %v3362
        %v3380 = vsel %vm880, %v3364, 0.0
        %v3381 = vsel %vm880, %v3365, 0.0
        %v3382 = vadd.f32 %v3380, %v3381
        %v3383 = vrot.slane %v3382, 4
        %v3384 = vadd.f32 %v3382, %v3383
        %v3385 = vrot.slane %v3384, 2
        %v3386 = vadd.f32 %v3384, %v3385
        %v3387 = vrot.slane %v3386, 1
        %v3388 = vadd.f32 %v3386, %v3387
        %v3389 = vsel %vm880, %v3366, 0.0
        %v3390 = vsel %vm880, %v3367, 0.0
        %v3391 = vadd.f32 %v3389, %v3390
        %v3392 = vrot.slane %v3391, 4
        %v3393 = vadd.f32 %v3391, %v3392
        %v3394 = vrot.slane %v3393, 2
        %v3395 = vadd.f32 %v3393, %v3394
        %v3396 = vrot.slane %v3395, 1
        %v3397 = vadd.f32 %v3395, %v3396
        %v3398 = vsel %vm880, %v3368, 0.0
        %v3399 = vsel %vm880, %v3369, 0.0
        %v3400 = vadd.f32 %v3398, %v3399
        %v3401 = vrot.slane %v3400, 4
        %v3402 = vadd.f32 %v3400, %v3401
        %v3403 = vrot.slane %v3402, 2
        %v3404 = vadd.f32 %v3402, %v3403
        %v3405 = vrot.slane %v3404, 1
        %v3406 = vadd.f32 %v3404, %v3405
        %v3407 = vsel %vm880, %v3370, 0.0
        %v3408 = vsel %vm880, %v3371, 0.0
        %v3409 = vadd.f32 %v3407, %v3408
        %v3410 = vrot.slane %v3409, 4
        %v3411 = vadd.f32 %v3409, %v3410
        %v3412 = vrot.slane %v3411, 2
        %v3413 = vadd.f32 %v3411, %v3412
        %v3414 = vrot.slane %v3413, 1
        %v3415 = vadd.f32 %v3413, %v3414
        %v3416 = vsel %vm880, %v3372, 0.0
        %v3417 = vsel %vm880, %v3373, 0.0
        %v3418 = vadd.f32 %v3416, %v3417
        %v3419 = vrot.slane %v3418, 4
        %v3420 = vadd.f32 %v3418, %v3419
        %v3421 = vrot.slane %v3420, 2
        %v3422 = vadd.f32 %v3420, %v3421
        %v3423 = vrot.slane %v3422, 1
        %v3424 = vadd.f32 %v3422, %v3423
        %v3425 = vsel %vm880, %v3374, 0.0
        %v3426 = vsel %vm880, %v3375, 0.0
        %v3427 = vadd.f32 %v3425, %v3426
        %v3428 = vrot.slane %v3427, 4
        %v3429 = vadd.f32 %v3427, %v3428
        %v3430 = vrot.slane %v3429, 2
        %v3431 = vadd.f32 %v3429, %v3430
        %v3432 = vrot.slane %v3431, 1
        %v3433 = vadd.f32 %v3431, %v3432
        %v3434 = vsel %vm880, %v3376, 0.0
        %v3435 = vsel %vm880, %v3377, 0.0
        %v3436 = vadd.f32 %v3434, %v3435
        %v3437 = vrot.slane %v3436, 4
        %v3438 = vadd.f32 %v3436, %v3437
        %v3439 = vrot.slane %v3438, 2
        %v3440 = vadd.f32 %v3438, %v3439
        %v3441 = vrot.slane %v3440, 1
        %v3442 = vadd.f32 %v3440, %v3441
        %v3443 = vsel %vm880, %v3378, 0.0
        %v3444 = vsel %vm880, %v3379, 0.0
        %v3445 = vadd.f32 %v3443, %v3444
        %v3446 = vrot.slane %v3445, 4
        %v3447 = vadd.f32 %v3445, %v3446
        %v3448 = vrot.slane %v3447, 2
        %v3449 = vadd.f32 %v3447, %v3448
        %v3450 = vrot.slane %v3449, 1
        %v3451 = vadd.f32 %v3449, %v3450
        %3460 = vrot.lane.b32.xlu0 %v3388, 96
        %v3461 = vpop.permute.xlu0 %3460
        %3462 = vrot.lane.b32.xlu0 %v3397, 96
        %v3463 = vpop.permute.xlu0 %3462
        %3464 = vrot.lane.b32.xlu0 %v3406, 96
        %v3465 = vpop.permute.xlu0 %3464
        %3466 = vrot.lane.b32.xlu0 %v3415, 96
        %v3467 = vpop.permute.xlu0 %3466
        %3468 = vrot.lane.b32.xlu0 %v3424, 96
        %v3469 = vpop.permute.xlu0 %3468
        %3470 = vrot.lane.b32.xlu0 %v3433, 96
        %v3471 = vpop.permute.xlu0 %3470
        %3472 = vrot.lane.b32.xlu0 %v3442, 96
        %v3473 = vpop.permute.xlu0 %3472
        %3474 = vrot.lane.b32.xlu0 %v3451, 96
        %v3475 = vpop.permute.xlu0 %3474
        %v3484 = vadd.f32 %v3220, %v3461
        %v3485 = vadd.f32 %v3229, %v3463
        %v3486 = vadd.f32 %v3238, %v3465
        %v3487 = vadd.f32 %v3247, %v3467
        %v3488 = vadd.f32 %v3256, %v3469
        %v3489 = vadd.f32 %v3265, %v3471
        %v3490 = vadd.f32 %v3274, %v3473
        %v3491 = vadd.f32 %v3283, %v3475
        %v3492 = vcombine.high %v1920, %v1920
        %v3494 = vunpack.c.l.s4 1966171168
        %v3495 = vunpack.c.0.s8 %v3494
        %v3496 = vlaneseq
        %v3497 = vshrl.u32 %v3496, 7
        %v3498 = vsub.s32 %v3495, %v3497
        %v3499 = vrot.slane %v1920, %v3498
        %v3501 = vunpack.c.l.s4 1966171168
        %v3502 = vunpack.c.0.s8 %v3501
        %v3503 = vlaneseq
        %v3504 = vshrl.u32 %v3503, 7
        %v3505 = vsub.s32 %v3502, %v3504
        %v3506 = vrot.slane %v3492, %v3505
        %v3507 = vcombine.high %v3499, %v3499
        %v3508 = vcombine.high %v3506, %v3506
        %v3510 = vunpack.c.l.s4 1966171168
        %v3511 = vunpack.c.0.s8 %v3510
        %v3512 = vlaneseq
        %v3513 = vshrl.u32 %v3512, 7
        %v3514 = vsub.s32 %v3511, %v3513
        %v3515 = vrot.slane %v3499, %v3514
        %v3517 = vunpack.c.l.s4 1966171168
        %v3518 = vunpack.c.0.s8 %v3517
        %v3519 = vlaneseq
        %v3520 = vshrl.u32 %v3519, 7
        %v3521 = vsub.s32 %v3518, %v3520
        %v3522 = vrot.slane %v3506, %v3521
        %v3524 = vunpack.c.l.s4 1966171168
        %v3525 = vunpack.c.0.s8 %v3524
        %v3526 = vlaneseq
        %v3527 = vshrl.u32 %v3526, 7
        %v3528 = vsub.s32 %v3525, %v3527
        %v3529 = vrot.slane %v3507, %v3528
        %v3531 = vunpack.c.l.s4 1966171168
        %v3532 = vunpack.c.0.s8 %v3531
        %v3533 = vlaneseq
        %v3534 = vshrl.u32 %v3533, 7
        %v3535 = vsub.s32 %v3532, %v3534
        %v3536 = vrot.slane %v3508, %v3535
        %v3537 = vcombine.high %v3515, %v3515
        %v3538 = vcombine.high %v3522, %v3522
        %v3539 = vcombine.high %v3529, %v3529
        %v3540 = vcombine.high %v3536, %v3536
        %3541 = vrot.lane.b32.xlu0 %v3515, 64
        %v3542 = vpop.permute.xlu0 %3541
        %3543 = vrot.lane.b32.xlu0 %v3529, 64
        %v3544 = vpop.permute.xlu0 %3543
        %3545 = vrot.lane.b32.xlu0 %v3537, 64
        %v3546 = vpop.permute.xlu0 %3545
        %3547 = vrot.lane.b32.xlu0 %v3539, 64
        %v3548 = vpop.permute.xlu0 %3547
        %3549 = vrot.lane.b32.xlu0 %v3522, 64
        %v3550 = vpop.permute.xlu0 %3549
        %3551 = vrot.lane.b32.xlu0 %v3536, 64
        %v3552 = vpop.permute.xlu0 %3551
        %3553 = vrot.lane.b32.xlu0 %v3538, 64
        %v3554 = vpop.permute.xlu0 %3553
        %3555 = vrot.lane.b32.xlu0 %v3540, 64
        %v3556 = vpop.permute.xlu0 %3555
        %v3565 = vmul.f32 %v2380, %v3542
        %v3566 = vmul.f32 %v2404, %v3544
        %v3567 = vmul.f32 %v2403, %v3546
        %v3568 = vmul.f32 %v2443, %v3548
        %v3569 = vmul.f32 %v2436, %v3550
        %v3570 = vmul.f32 %v2454, %v3552
        %v3571 = vmul.f32 %v2500, %v3554
        %v3572 = vmul.f32 %v2499, %v3556
        %v3582 = vunpack.c.l.s4 1966171168
        %v3583 = vunpack.c.0.s8 %v3582
        %v3584 = vlaneseq
        %v3585 = vshrl.u32 %v3584, 7
        %v3586 = vsub.s32 %v3583, %v3585
        %v3587 = vrot.slane %v3484, %v3586
        %v3589 = vunpack.c.l.s4 1966171168
        %v3590 = vunpack.c.0.s8 %v3589
        %v3591 = vlaneseq
        %v3592 = vshrl.u32 %v3591, 7
        %v3593 = vsub.s32 %v3590, %v3592
        %v3594 = vrot.slane %v3587, %v3593
        %v3596 = vunpack.c.l.s4 1966171168
        %v3597 = vunpack.c.0.s8 %v3596
        %v3598 = vlaneseq
        %v3599 = vshrl.u32 %v3598, 7
        %v3600 = vsub.s32 %v3597, %v3599
        %v3601 = vrot.slane %v3485, %v3600
        %v3603 = vunpack.c.l.s4 1966171168
        %v3604 = vunpack.c.0.s8 %v3603
        %v3605 = vlaneseq
        %v3606 = vshrl.u32 %v3605, 7
        %v3607 = vsub.s32 %v3604, %v3606
        %v3608 = vrot.slane %v3601, %v3607
        %v3610 = vunpack.c.l.s4 1966171168
        %v3611 = vunpack.c.0.s8 %v3610
        %v3612 = vlaneseq
        %v3613 = vshrl.u32 %v3612, 7
        %v3614 = vsub.s32 %v3611, %v3613
        %v3615 = vrot.slane %v3486, %v3614
        %v3617 = vunpack.c.l.s4 1966171168
        %v3618 = vunpack.c.0.s8 %v3617
        %v3619 = vlaneseq
        %v3620 = vshrl.u32 %v3619, 7
        %v3621 = vsub.s32 %v3618, %v3620
        %v3622 = vrot.slane %v3615, %v3621
        %v3624 = vunpack.c.l.s4 1966171168
        %v3625 = vunpack.c.0.s8 %v3624
        %v3626 = vlaneseq
        %v3627 = vshrl.u32 %v3626, 7
        %v3628 = vsub.s32 %v3625, %v3627
        %v3629 = vrot.slane %v3487, %v3628
        %v3631 = vunpack.c.l.s4 1966171168
        %v3632 = vunpack.c.0.s8 %v3631
        %v3633 = vlaneseq
        %v3634 = vshrl.u32 %v3633, 7
        %v3635 = vsub.s32 %v3632, %v3634
        %v3636 = vrot.slane %v3629, %v3635
        %v3638 = vunpack.c.l.s4 1966171168
        %v3639 = vunpack.c.0.s8 %v3638
        %v3640 = vlaneseq
        %v3641 = vshrl.u32 %v3640, 7
        %v3642 = vsub.s32 %v3639, %v3641
        %v3643 = vrot.slane %v3488, %v3642
        %v3645 = vunpack.c.l.s4 1966171168
        %v3646 = vunpack.c.0.s8 %v3645
        %v3647 = vlaneseq
        %v3648 = vshrl.u32 %v3647, 7
        %v3649 = vsub.s32 %v3646, %v3648
        %v3650 = vrot.slane %v3643, %v3649
        %v3652 = vunpack.c.l.s4 1966171168
        %v3653 = vunpack.c.0.s8 %v3652
        %v3654 = vlaneseq
        %v3655 = vshrl.u32 %v3654, 7
        %v3656 = vsub.s32 %v3653, %v3655
        %v3657 = vrot.slane %v3489, %v3656
        %v3659 = vunpack.c.l.s4 1966171168
        %v3660 = vunpack.c.0.s8 %v3659
        %v3661 = vlaneseq
        %v3662 = vshrl.u32 %v3661, 7
        %v3663 = vsub.s32 %v3660, %v3662
        %v3664 = vrot.slane %v3657, %v3663
        %v3666 = vunpack.c.l.s4 1966171168
        %v3667 = vunpack.c.0.s8 %v3666
        %v3668 = vlaneseq
        %v3669 = vshrl.u32 %v3668, 7
        %v3670 = vsub.s32 %v3667, %v3669
        %v3671 = vrot.slane %v3490, %v3670
        %v3673 = vunpack.c.l.s4 1966171168
        %v3674 = vunpack.c.0.s8 %v3673
        %v3675 = vlaneseq
        %v3676 = vshrl.u32 %v3675, 7
        %v3677 = vsub.s32 %v3674, %v3676
        %v3678 = vrot.slane %v3671, %v3677
        %v3680 = vunpack.c.l.s4 1966171168
        %v3681 = vunpack.c.0.s8 %v3680
        %v3682 = vlaneseq
        %v3683 = vshrl.u32 %v3682, 7
        %v3684 = vsub.s32 %v3681, %v3683
        %v3685 = vrot.slane %v3491, %v3684
        %v3687 = vunpack.c.l.s4 1966171168
        %v3688 = vunpack.c.0.s8 %v3687
        %v3689 = vlaneseq
        %v3690 = vshrl.u32 %v3689, 7
        %v3691 = vsub.s32 %v3688, %v3690
        %v3692 = vrot.slane %v3685, %v3691
        %3693 = vrot.lane.b32.xlu0 %v3594, 96
        %v3694 = vpop.permute.xlu0 %3693
        %3695 = vrot.lane.b32.xlu0 %v3608, 96
        %v3696 = vpop.permute.xlu0 %3695
        %3697 = vrot.lane.b32.xlu0 %v3622, 96
        %v3698 = vpop.permute.xlu0 %3697
        %3699 = vrot.lane.b32.xlu0 %v3636, 96
        %v3700 = vpop.permute.xlu0 %3699
        %3701 = vrot.lane.b32.xlu0 %v3650, 96
        %v3702 = vpop.permute.xlu0 %3701
        %3703 = vrot.lane.b32.xlu0 %v3664, 96
        %v3704 = vpop.permute.xlu0 %3703
        %3705 = vrot.lane.b32.xlu0 %v3678, 96
        %v3706 = vpop.permute.xlu0 %3705
        %3707 = vrot.lane.b32.xlu0 %v3692, 96
        %v3708 = vpop.permute.xlu0 %3707
        %v3717 = vadd.f32 %v3565, %v3694
        %v3718 = vadd.f32 %v3566, %v3696
        %v3719 = vadd.f32 %v3567, %v3698
        %v3720 = vadd.f32 %v3568, %v3700
        %v3721 = vadd.f32 %v3569, %v3702
        %v3722 = vadd.f32 %v3570, %v3704
        %v3723 = vadd.f32 %v3571, %v3706
        %v3724 = vadd.f32 %v3572, %v3708
        %s3725 = scalar_lea.vmem %s693, 16
        %v3726 = vld [vmem:[%s3725] sm:$0xff]
        %v3727 = vld [vmem:[%s3725 + $0x8] sm:$0xff]
        %3730 = vrot.lane.b32.xlu0 %v3726, 96
        %v3731 = vpop.permute.xlu0 %3730
        %3732 = vrot.lane.b32.xlu0 %v3727, 96
        %v3733 = vpop.permute.xlu0 %3732
        %v3736 = vmul.f32 %v3121, %v3731
        %v3737 = vmul.f32 %v3122, %v3733
        %v3738 = vmul.f32 %v3123, %v3731
        %v3739 = vmul.f32 %v3124, %v3733
        %v3740 = vmul.f32 %v3125, %v3731
        %v3741 = vmul.f32 %v3126, %v3733
        %v3742 = vmul.f32 %v3127, %v3731
        %v3743 = vmul.f32 %v3128, %v3733
        %v3744 = vmul.f32 %v3129, %v3731
        %v3745 = vmul.f32 %v3130, %v3733
        %v3746 = vmul.f32 %v3131, %v3731
        %v3747 = vmul.f32 %v3132, %v3733
        %v3748 = vmul.f32 %v3133, %v3731
        %v3749 = vmul.f32 %v3134, %v3733
        %v3750 = vmul.f32 %v3135, %v3731
        %v3751 = vmul.f32 %v3136, %v3733
        %v3752 = vsel %vm3211, %v3736, 0.0
        %v3753 = vsel %vm3211, %v3737, 0.0
        %v3754 = vadd.f32 %v3752, %v3753
        %v3755 = vrot.slane %v3754, 4
        %v3756 = vadd.f32 %v3754, %v3755
        %v3757 = vrot.slane %v3756, 2
        %v3758 = vadd.f32 %v3756, %v3757
        %v3759 = vrot.slane %v3758, 1
        %v3760 = vadd.f32 %v3758, %v3759
        %v3761 = vsel %vm3211, %v3738, 0.0
        %v3762 = vsel %vm3211, %v3739, 0.0
        %v3763 = vadd.f32 %v3761, %v3762
        %v3764 = vrot.slane %v3763, 4
        %v3765 = vadd.f32 %v3763, %v3764
        %v3766 = vrot.slane %v3765, 2
        %v3767 = vadd.f32 %v3765, %v3766
        %v3768 = vrot.slane %v3767, 1
        %v3769 = vadd.f32 %v3767, %v3768
        %v3770 = vsel %vm3211, %v3740, 0.0
        %v3771 = vsel %vm3211, %v3741, 0.0
        %v3772 = vadd.f32 %v3770, %v3771
        %v3773 = vrot.slane %v3772, 4
        %v3774 = vadd.f32 %v3772, %v3773
        %v3775 = vrot.slane %v3774, 2
        %v3776 = vadd.f32 %v3774, %v3775
        %v3777 = vrot.slane %v3776, 1
        %v3778 = vadd.f32 %v3776, %v3777
        %v3779 = vsel %vm3211, %v3742, 0.0
        %v3780 = vsel %vm3211, %v3743, 0.0
        %v3781 = vadd.f32 %v3779, %v3780
        %v3782 = vrot.slane %v3781, 4
        %v3783 = vadd.f32 %v3781, %v3782
        %v3784 = vrot.slane %v3783, 2
        %v3785 = vadd.f32 %v3783, %v3784
        %v3786 = vrot.slane %v3785, 1
        %v3787 = vadd.f32 %v3785, %v3786
        %v3788 = vsel %vm3211, %v3744, 0.0
        %v3789 = vsel %vm3211, %v3745, 0.0
        %v3790 = vadd.f32 %v3788, %v3789
        %v3791 = vrot.slane %v3790, 4
        %v3792 = vadd.f32 %v3790, %v3791
        %v3793 = vrot.slane %v3792, 2
        %v3794 = vadd.f32 %v3792, %v3793
        %v3795 = vrot.slane %v3794, 1
        %v3796 = vadd.f32 %v3794, %v3795
        %v3797 = vsel %vm3211, %v3746, 0.0
        %v3798 = vsel %vm3211, %v3747, 0.0
        %v3799 = vadd.f32 %v3797, %v3798
        %v3800 = vrot.slane %v3799, 4
        %v3801 = vadd.f32 %v3799, %v3800
        %v3802 = vrot.slane %v3801, 2
        %v3803 = vadd.f32 %v3801, %v3802
        %v3804 = vrot.slane %v3803, 1
        %v3805 = vadd.f32 %v3803, %v3804
        %v3806 = vsel %vm3211, %v3748, 0.0
        %v3807 = vsel %vm3211, %v3749, 0.0
        %v3808 = vadd.f32 %v3806, %v3807
        %v3809 = vrot.slane %v3808, 4
        %v3810 = vadd.f32 %v3808, %v3809
        %v3811 = vrot.slane %v3810, 2
        %v3812 = vadd.f32 %v3810, %v3811
        %v3813 = vrot.slane %v3812, 1
        %v3814 = vadd.f32 %v3812, %v3813
        %v3815 = vsel %vm3211, %v3750, 0.0
        %v3816 = vsel %vm3211, %v3751, 0.0
        %v3817 = vadd.f32 %v3815, %v3816
        %v3818 = vrot.slane %v3817, 4
        %v3819 = vadd.f32 %v3817, %v3818
        %v3820 = vrot.slane %v3819, 2
        %v3821 = vadd.f32 %v3819, %v3820
        %v3822 = vrot.slane %v3821, 1
        %v3823 = vadd.f32 %v3821, %v3822
        %3824 = vset.pattern.permute.xlu0 1
        %3825 = vperm.xlu0 %3824, %v3169
        %v3826 = vpop.permute.xlu0 %3825
        %3828 = vset.pattern.permute.xlu0 1
        %3829 = vperm.xlu0 %3828, %v3170
        %v3830 = vpop.permute.xlu0 %3829
        %3832 = vset.pattern.permute.xlu0 1
        %3833 = vperm.xlu0 %3832, %v3171
        %v3834 = vpop.permute.xlu0 %3833
        %3836 = vset.pattern.permute.xlu0 1
        %3837 = vperm.xlu0 %3836, %v3172
        %v3838 = vpop.permute.xlu0 %3837
        %3840 = vset.pattern.permute.xlu0 1
        %3841 = vperm.xlu0 %3840, %v3173
        %v3842 = vpop.permute.xlu0 %3841
        %3844 = vset.pattern.permute.xlu0 1
        %3845 = vperm.xlu0 %3844, %v3174
        %v3846 = vpop.permute.xlu0 %3845
        %3848 = vset.pattern.permute.xlu0 1
        %3849 = vperm.xlu0 %3848, %v3175
        %v3850 = vpop.permute.xlu0 %3849
        %3852 = vset.pattern.permute.xlu0 1
        %3853 = vperm.xlu0 %3852, %v3176
        %v3854 = vpop.permute.xlu0 %3853
        %3856 = vset.pattern.permute.xlu0 1
        %3857 = vperm.xlu0 %3856, %v3177
        %v3858 = vpop.permute.xlu0 %3857
        %3860 = vset.pattern.permute.xlu0 1
        %3861 = vperm.xlu0 %3860, %v3178
        %v3862 = vpop.permute.xlu0 %3861
        %3864 = vset.pattern.permute.xlu0 1
        %3865 = vperm.xlu0 %3864, %v3179
        %v3866 = vpop.permute.xlu0 %3865
        %3868 = vset.pattern.permute.xlu0 1
        %3869 = vperm.xlu0 %3868, %v3180
        %v3870 = vpop.permute.xlu0 %3869
        %3872 = vset.pattern.permute.xlu0 1
        %3873 = vperm.xlu0 %3872, %v3181
        %v3874 = vpop.permute.xlu0 %3873
        %3876 = vset.pattern.permute.xlu0 1
        %3877 = vperm.xlu0 %3876, %v3182
        %v3878 = vpop.permute.xlu0 %3877
        %3880 = vset.pattern.permute.xlu0 1
        %3881 = vperm.xlu0 %3880, %v3183
        %v3882 = vpop.permute.xlu0 %3881
        %3884 = vset.pattern.permute.xlu0 1
        %3885 = vperm.xlu0 %3884, %v3184
        %v3886 = vpop.permute.xlu0 %3885
        %v3888 = vmul.f32 %v3153, %v3826
        %v3889 = vmul.f32 %v3154, %v3830
        %v3890 = vmul.f32 %v3155, %v3834
        %v3891 = vmul.f32 %v3156, %v3838
        %v3892 = vmul.f32 %v3157, %v3842
        %v3893 = vmul.f32 %v3158, %v3846
        %v3894 = vmul.f32 %v3159, %v3850
        %v3895 = vmul.f32 %v3160, %v3854
        %v3896 = vmul.f32 %v3161, %v3858
        %v3897 = vmul.f32 %v3162, %v3862
        %v3898 = vmul.f32 %v3163, %v3866
        %v3899 = vmul.f32 %v3164, %v3870
        %v3900 = vmul.f32 %v3165, %v3874
        %v3901 = vmul.f32 %v3166, %v3878
        %v3902 = vmul.f32 %v3167, %v3882
        %v3903 = vmul.f32 %v3168, %v3886
        %v3904 = vsel %vm880, %v3888, 0.0
        %v3905 = vsel %vm880, %v3889, 0.0
        %v3906 = vadd.f32 %v3904, %v3905
        %v3907 = vrot.slane %v3906, 4
        %v3908 = vadd.f32 %v3906, %v3907
        %v3909 = vrot.slane %v3908, 2
        %v3910 = vadd.f32 %v3908, %v3909
        %v3911 = vrot.slane %v3910, 1
        %v3912 = vadd.f32 %v3910, %v3911
        %v3913 = vsel %vm880, %v3890, 0.0
        %v3914 = vsel %vm880, %v3891, 0.0
        %v3915 = vadd.f32 %v3913, %v3914
        %v3916 = vrot.slane %v3915, 4
        %v3917 = vadd.f32 %v3915, %v3916
        %v3918 = vrot.slane %v3917, 2
        %v3919 = vadd.f32 %v3917, %v3918
        %v3920 = vrot.slane %v3919, 1
        %v3921 = vadd.f32 %v3919, %v3920
        %v3922 = vsel %vm880, %v3892, 0.0
        %v3923 = vsel %vm880, %v3893, 0.0
        %v3924 = vadd.f32 %v3922, %v3923
        %v3925 = vrot.slane %v3924, 4
        %v3926 = vadd.f32 %v3924, %v3925
        %v3927 = vrot.slane %v3926, 2
        %v3928 = vadd.f32 %v3926, %v3927
        %v3929 = vrot.slane %v3928, 1
        %v3930 = vadd.f32 %v3928, %v3929
        %v3931 = vsel %vm880, %v3894, 0.0
        %v3932 = vsel %vm880, %v3895, 0.0
        %v3933 = vadd.f32 %v3931, %v3932
        %v3934 = vrot.slane %v3933, 4
        %v3935 = vadd.f32 %v3933, %v3934
        %v3936 = vrot.slane %v3935, 2
        %v3937 = vadd.f32 %v3935, %v3936
        %v3938 = vrot.slane %v3937, 1
        %v3939 = vadd.f32 %v3937, %v3938
        %v3940 = vsel %vm880, %v3896, 0.0
        %v3941 = vsel %vm880, %v3897, 0.0
        %v3942 = vadd.f32 %v3940, %v3941
        %v3943 = vrot.slane %v3942, 4
        %v3944 = vadd.f32 %v3942, %v3943
        %v3945 = vrot.slane %v3944, 2
        %v3946 = vadd.f32 %v3944, %v3945
        %v3947 = vrot.slane %v3946, 1
        %v3948 = vadd.f32 %v3946, %v3947
        %v3949 = vsel %vm880, %v3898, 0.0
        %v3950 = vsel %vm880, %v3899, 0.0
        %v3951 = vadd.f32 %v3949, %v3950
        %v3952 = vrot.slane %v3951, 4
        %v3953 = vadd.f32 %v3951, %v3952
        %v3954 = vrot.slane %v3953, 2
        %v3955 = vadd.f32 %v3953, %v3954
        %v3956 = vrot.slane %v3955, 1
        %v3957 = vadd.f32 %v3955, %v3956
        %v3958 = vsel %vm880, %v3900, 0.0
        %v3959 = vsel %vm880, %v3901, 0.0
        %v3960 = vadd.f32 %v3958, %v3959
        %v3961 = vrot.slane %v3960, 4
        %v3962 = vadd.f32 %v3960, %v3961
        %v3963 = vrot.slane %v3962, 2
        %v3964 = vadd.f32 %v3962, %v3963
        %v3965 = vrot.slane %v3964, 1
        %v3966 = vadd.f32 %v3964, %v3965
        %v3967 = vsel %vm880, %v3902, 0.0
        %v3968 = vsel %vm880, %v3903, 0.0
        %v3969 = vadd.f32 %v3967, %v3968
        %v3970 = vrot.slane %v3969, 4
        %v3971 = vadd.f32 %v3969, %v3970
        %v3972 = vrot.slane %v3971, 2
        %v3973 = vadd.f32 %v3971, %v3972
        %v3974 = vrot.slane %v3973, 1
        %v3975 = vadd.f32 %v3973, %v3974
        %3984 = vrot.lane.b32.xlu0 %v3912, 96
        %v3985 = vpop.permute.xlu0 %3984
        %3986 = vrot.lane.b32.xlu0 %v3921, 96
        %v3987 = vpop.permute.xlu0 %3986
        %3988 = vrot.lane.b32.xlu0 %v3930, 96
        %v3989 = vpop.permute.xlu0 %3988
        %3990 = vrot.lane.b32.xlu0 %v3939, 96
        %v3991 = vpop.permute.xlu0 %3990
        %3992 = vrot.lane.b32.xlu0 %v3948, 96
        %v3993 = vpop.permute.xlu0 %3992
        %3994 = vrot.lane.b32.xlu0 %v3957, 96
        %v3995 = vpop.permute.xlu0 %3994
        %3996 = vrot.lane.b32.xlu0 %v3966, 96
        %v3997 = vpop.permute.xlu0 %3996
        %3998 = vrot.lane.b32.xlu0 %v3975, 96
        %v3999 = vpop.permute.xlu0 %3998
        %v4008 = vadd.f32 %v3760, %v3985
        %v4009 = vadd.f32 %v3769, %v3987
        %v4010 = vadd.f32 %v3778, %v3989
        %v4011 = vadd.f32 %v3787, %v3991
        %v4012 = vadd.f32 %v3796, %v3993
        %v4013 = vadd.f32 %v3805, %v3995
        %v4014 = vadd.f32 %v3814, %v3997
        %v4015 = vadd.f32 %v3823, %v3999
        %v4016 = vmul.f32 %v2394, %v3542
        %v4017 = vmul.f32 %v2387, %v3544
        %v4018 = vmul.f32 %v2405, %v3546
        %v4019 = vmul.f32 %v2451, %v3548
        %v4020 = vmul.f32 %v2450, %v3550
        %v4021 = vmul.f32 %v2478, %v3552
        %v4022 = vmul.f32 %v2502, %v3554
        %v4023 = vmul.f32 %v2501, %v3556
        %v4033 = vunpack.c.l.s4 1966171168
        %v4034 = vunpack.c.0.s8 %v4033
        %v4035 = vlaneseq
        %v4036 = vshrl.u32 %v4035, 7
        %v4037 = vsub.s32 %v4034, %v4036
        %v4038 = vrot.slane %v4008, %v4037
        %v4040 = vunpack.c.l.s4 1966171168
        %v4041 = vunpack.c.0.s8 %v4040
        %v4042 = vlaneseq
        %v4043 = vshrl.u32 %v4042, 7
        %v4044 = vsub.s32 %v4041, %v4043
        %v4045 = vrot.slane %v4038, %v4044
        %v4047 = vunpack.c.l.s4 1966171168
        %v4048 = vunpack.c.0.s8 %v4047
        %v4049 = vlaneseq
        %v4050 = vshrl.u32 %v4049, 7
        %v4051 = vsub.s32 %v4048, %v4050
        %v4052 = vrot.slane %v4009, %v4051
        %v4054 = vunpack.c.l.s4 1966171168
        %v4055 = vunpack.c.0.s8 %v4054
        %v4056 = vlaneseq
        %v4057 = vshrl.u32 %v4056, 7
        %v4058 = vsub.s32 %v4055, %v4057
        %v4059 = vrot.slane %v4052, %v4058
        %v4061 = vunpack.c.l.s4 1966171168
        %v4062 = vunpack.c.0.s8 %v4061
        %v4063 = vlaneseq
        %v4064 = vshrl.u32 %v4063, 7
        %v4065 = vsub.s32 %v4062, %v4064
        %v4066 = vrot.slane %v4010, %v4065
        %v4068 = vunpack.c.l.s4 1966171168
        %v4069 = vunpack.c.0.s8 %v4068
        %v4070 = vlaneseq
        %v4071 = vshrl.u32 %v4070, 7
        %v4072 = vsub.s32 %v4069, %v4071
        %v4073 = vrot.slane %v4066, %v4072
        %v4075 = vunpack.c.l.s4 1966171168
        %v4076 = vunpack.c.0.s8 %v4075
        %v4077 = vlaneseq
        %v4078 = vshrl.u32 %v4077, 7
        %v4079 = vsub.s32 %v4076, %v4078
        %v4080 = vrot.slane %v4011, %v4079
        %v4082 = vunpack.c.l.s4 1966171168
        %v4083 = vunpack.c.0.s8 %v4082
        %v4084 = vlaneseq
        %v4085 = vshrl.u32 %v4084, 7
        %v4086 = vsub.s32 %v4083, %v4085
        %v4087 = vrot.slane %v4080, %v4086
        %v4089 = vunpack.c.l.s4 1966171168
        %v4090 = vunpack.c.0.s8 %v4089
        %v4091 = vlaneseq
        %v4092 = vshrl.u32 %v4091, 7
        %v4093 = vsub.s32 %v4090, %v4092
        %v4094 = vrot.slane %v4012, %v4093
        %v4096 = vunpack.c.l.s4 1966171168
        %v4097 = vunpack.c.0.s8 %v4096
        %v4098 = vlaneseq
        %v4099 = vshrl.u32 %v4098, 7
        %v4100 = vsub.s32 %v4097, %v4099
        %v4101 = vrot.slane %v4094, %v4100
        %v4103 = vunpack.c.l.s4 1966171168
        %v4104 = vunpack.c.0.s8 %v4103
        %v4105 = vlaneseq
        %v4106 = vshrl.u32 %v4105, 7
        %v4107 = vsub.s32 %v4104, %v4106
        %v4108 = vrot.slane %v4013, %v4107
        %v4110 = vunpack.c.l.s4 1966171168
        %v4111 = vunpack.c.0.s8 %v4110
        %v4112 = vlaneseq
        %v4113 = vshrl.u32 %v4112, 7
        %v4114 = vsub.s32 %v4111, %v4113
        %v4115 = vrot.slane %v4108, %v4114
        %v4117 = vunpack.c.l.s4 1966171168
        %v4118 = vunpack.c.0.s8 %v4117
        %v4119 = vlaneseq
        %v4120 = vshrl.u32 %v4119, 7
        %v4121 = vsub.s32 %v4118, %v4120
        %v4122 = vrot.slane %v4014, %v4121
        %v4124 = vunpack.c.l.s4 1966171168
        %v4125 = vunpack.c.0.s8 %v4124
        %v4126 = vlaneseq
        %v4127 = vshrl.u32 %v4126, 7
        %v4128 = vsub.s32 %v4125, %v4127
        %v4129 = vrot.slane %v4122, %v4128
        %v4131 = vunpack.c.l.s4 1966171168
        %v4132 = vunpack.c.0.s8 %v4131
        %v4133 = vlaneseq
        %v4134 = vshrl.u32 %v4133, 7
        %v4135 = vsub.s32 %v4132, %v4134
        %v4136 = vrot.slane %v4015, %v4135
        %v4138 = vunpack.c.l.s4 1966171168
        %v4139 = vunpack.c.0.s8 %v4138
        %v4140 = vlaneseq
        %v4141 = vshrl.u32 %v4140, 7
        %v4142 = vsub.s32 %v4139, %v4141
        %v4143 = vrot.slane %v4136, %v4142
        %4144 = vrot.lane.b32.xlu0 %v4045, 96
        %v4145 = vpop.permute.xlu0 %4144
        %4146 = vrot.lane.b32.xlu0 %v4059, 96
        %v4147 = vpop.permute.xlu0 %4146
        %4148 = vrot.lane.b32.xlu0 %v4073, 96
        %v4149 = vpop.permute.xlu0 %4148
        %4150 = vrot.lane.b32.xlu0 %v4087, 96
        %v4151 = vpop.permute.xlu0 %4150
        %4152 = vrot.lane.b32.xlu0 %v4101, 96
        %v4153 = vpop.permute.xlu0 %4152
        %4154 = vrot.lane.b32.xlu0 %v4115, 96
        %v4155 = vpop.permute.xlu0 %4154
        %4156 = vrot.lane.b32.xlu0 %v4129, 96
        %v4157 = vpop.permute.xlu0 %4156
        %4158 = vrot.lane.b32.xlu0 %v4143, 96
        %v4159 = vpop.permute.xlu0 %4158
        %v4168 = vadd.f32 %v4016, %v4145
        %v4169 = vadd.f32 %v4017, %v4147
        %v4170 = vadd.f32 %v4018, %v4149
        %v4171 = vadd.f32 %v4019, %v4151
        %v4172 = vadd.f32 %v4020, %v4153
        %v4173 = vadd.f32 %v4021, %v4155
        %v4174 = vadd.f32 %v4022, %v4157
        %v4175 = vadd.f32 %v4023, %v4159
        %s4176 = scalar_lea.vmem %s693, 32
        %v4177 = vld [vmem:[%s4176] sm:$0xff]
        %v4178 = vld [vmem:[%s4176 + $0x8] sm:$0xff]
        %4181 = vrot.lane.b32.xlu0 %v4177, 96
        %v4182 = vpop.permute.xlu0 %4181
        %4183 = vrot.lane.b32.xlu0 %v4178, 96
        %v4184 = vpop.permute.xlu0 %4183
        %v4187 = vmul.f32 %v3121, %v4182
        %v4188 = vmul.f32 %v3122, %v4184
        %v4189 = vmul.f32 %v3123, %v4182
        %v4190 = vmul.f32 %v3124, %v4184
        %v4191 = vmul.f32 %v3125, %v4182
        %v4192 = vmul.f32 %v3126, %v4184
        %v4193 = vmul.f32 %v3127, %v4182
        %v4194 = vmul.f32 %v3128, %v4184
        %v4195 = vmul.f32 %v3129, %v4182
        %v4196 = vmul.f32 %v3130, %v4184
        %v4197 = vmul.f32 %v3131, %v4182
        %v4198 = vmul.f32 %v3132, %v4184
        %v4199 = vmul.f32 %v3133, %v4182
        %v4200 = vmul.f32 %v3134, %v4184
        %v4201 = vmul.f32 %v3135, %v4182
        %v4202 = vmul.f32 %v3136, %v4184
        %v4203 = vsel %vm3211, %v4187, 0.0
        %v4204 = vsel %vm3211, %v4188, 0.0
        %v4205 = vadd.f32 %v4203, %v4204
        %v4206 = vrot.slane %v4205, 4
        %v4207 = vadd.f32 %v4205, %v4206
        %v4208 = vrot.slane %v4207, 2
        %v4209 = vadd.f32 %v4207, %v4208
        %v4210 = vrot.slane %v4209, 1
        %v4211 = vadd.f32 %v4209, %v4210
        %v4212 = vsel %vm3211, %v4189, 0.0
        %v4213 = vsel %vm3211, %v4190, 0.0
        %v4214 = vadd.f32 %v4212, %v4213
        %v4215 = vrot.slane %v4214, 4
        %v4216 = vadd.f32 %v4214, %v4215
        %v4217 = vrot.slane %v4216, 2
        %v4218 = vadd.f32 %v4216, %v4217
        %v4219 = vrot.slane %v4218, 1
        %v4220 = vadd.f32 %v4218, %v4219
        %v4221 = vsel %vm3211, %v4191, 0.0
        %v4222 = vsel %vm3211, %v4192, 0.0
        %v4223 = vadd.f32 %v4221, %v4222
        %v4224 = vrot.slane %v4223, 4
        %v4225 = vadd.f32 %v4223, %v4224
        %v4226 = vrot.slane %v4225, 2
        %v4227 = vadd.f32 %v4225, %v4226
        %v4228 = vrot.slane %v4227, 1
        %v4229 = vadd.f32 %v4227, %v4228
        %v4230 = vsel %vm3211, %v4193, 0.0
        %v4231 = vsel %vm3211, %v4194, 0.0
        %v4232 = vadd.f32 %v4230, %v4231
        %v4233 = vrot.slane %v4232, 4
        %v4234 = vadd.f32 %v4232, %v4233
        %v4235 = vrot.slane %v4234, 2
        %v4236 = vadd.f32 %v4234, %v4235
        %v4237 = vrot.slane %v4236, 1
        %v4238 = vadd.f32 %v4236, %v4237
        %v4239 = vsel %vm3211, %v4195, 0.0
        %v4240 = vsel %vm3211, %v4196, 0.0
        %v4241 = vadd.f32 %v4239, %v4240
        %v4242 = vrot.slane %v4241, 4
        %v4243 = vadd.f32 %v4241, %v4242
        %v4244 = vrot.slane %v4243, 2
        %v4245 = vadd.f32 %v4243, %v4244
        %v4246 = vrot.slane %v4245, 1
        %v4247 = vadd.f32 %v4245, %v4246
        %v4248 = vsel %vm3211, %v4197, 0.0
        %v4249 = vsel %vm3211, %v4198, 0.0
        %v4250 = vadd.f32 %v4248, %v4249
        %v4251 = vrot.slane %v4250, 4
        %v4252 = vadd.f32 %v4250, %v4251
        %v4253 = vrot.slane %v4252, 2
        %v4254 = vadd.f32 %v4252, %v4253
        %v4255 = vrot.slane %v4254, 1
        %v4256 = vadd.f32 %v4254, %v4255
        %v4257 = vsel %vm3211, %v4199, 0.0
        %v4258 = vsel %vm3211, %v4200, 0.0
        %v4259 = vadd.f32 %v4257, %v4258
        %v4260 = vrot.slane %v4259, 4
        %v4261 = vadd.f32 %v4259, %v4260
        %v4262 = vrot.slane %v4261, 2
        %v4263 = vadd.f32 %v4261, %v4262
        %v4264 = vrot.slane %v4263, 1
        %v4265 = vadd.f32 %v4263, %v4264
        %v4266 = vsel %vm3211, %v4201, 0.0
        %v4267 = vsel %vm3211, %v4202, 0.0
        %v4268 = vadd.f32 %v4266, %v4267
        %v4269 = vrot.slane %v4268, 4
        %v4270 = vadd.f32 %v4268, %v4269
        %v4271 = vrot.slane %v4270, 2
        %v4272 = vadd.f32 %v4270, %v4271
        %v4273 = vrot.slane %v4272, 1
        %v4274 = vadd.f32 %v4272, %v4273
        %4275 = vset.pattern.permute.xlu0 2
        %4276 = vperm.xlu0 %4275, %v3169
        %v4277 = vpop.permute.xlu0 %4276
        %4279 = vset.pattern.permute.xlu0 2
        %4280 = vperm.xlu0 %4279, %v3170
        %v4281 = vpop.permute.xlu0 %4280
        %4283 = vset.pattern.permute.xlu0 2
        %4284 = vperm.xlu0 %4283, %v3171
        %v4285 = vpop.permute.xlu0 %4284
        %4287 = vset.pattern.permute.xlu0 2
        %4288 = vperm.xlu0 %4287, %v3172
        %v4289 = vpop.permute.xlu0 %4288
        %4291 = vset.pattern.permute.xlu0 2
        %4292 = vperm.xlu0 %4291, %v3173
        %v4293 = vpop.permute.xlu0 %4292
        %4295 = vset.pattern.permute.xlu0 2
        %4296 = vperm.xlu0 %4295, %v3174
        %v4297 = vpop.permute.xlu0 %4296
        %4299 = vset.pattern.permute.xlu0 2
        %4300 = vperm.xlu0 %4299, %v3175
        %v4301 = vpop.permute.xlu0 %4300
        %4303 = vset.pattern.permute.xlu0 2
        %4304 = vperm.xlu0 %4303, %v3176
        %v4305 = vpop.permute.xlu0 %4304
        %4307 = vset.pattern.permute.xlu0 2
        %4308 = vperm.xlu0 %4307, %v3177
        %v4309 = vpop.permute.xlu0 %4308
        %4311 = vset.pattern.permute.xlu0 2
        %4312 = vperm.xlu0 %4311, %v3178
        %v4313 = vpop.permute.xlu0 %4312
        %4315 = vset.pattern.permute.xlu0 2
        %4316 = vperm.xlu0 %4315, %v3179
        %v4317 = vpop.permute.xlu0 %4316
        %4319 = vset.pattern.permute.xlu0 2
        %4320 = vperm.xlu0 %4319, %v3180
        %v4321 = vpop.permute.xlu0 %4320
        %4323 = vset.pattern.permute.xlu0 2
        %4324 = vperm.xlu0 %4323, %v3181
        %v4325 = vpop.permute.xlu0 %4324
        %4327 = vset.pattern.permute.xlu0 2
        %4328 = vperm.xlu0 %4327, %v3182
        %v4329 = vpop.permute.xlu0 %4328
        %4331 = vset.pattern.permute.xlu0 2
        %4332 = vperm.xlu0 %4331, %v3183
        %v4333 = vpop.permute.xlu0 %4332
        %4335 = vset.pattern.permute.xlu0 2
        %4336 = vperm.xlu0 %4335, %v3184
        %v4337 = vpop.permute.xlu0 %4336
        %v4339 = vmul.f32 %v3153, %v4277
        %v4340 = vmul.f32 %v3154, %v4281
        %v4341 = vmul.f32 %v3155, %v4285
        %v4342 = vmul.f32 %v3156, %v4289
        %v4343 = vmul.f32 %v3157, %v4293
        %v4344 = vmul.f32 %v3158, %v4297
        %v4345 = vmul.f32 %v3159, %v4301
        %v4346 = vmul.f32 %v3160, %v4305
        %v4347 = vmul.f32 %v3161, %v4309
        %v4348 = vmul.f32 %v3162, %v4313
        %v4349 = vmul.f32 %v3163, %v4317
        %v4350 = vmul.f32 %v3164, %v4321
        %v4351 = vmul.f32 %v3165, %v4325
        %v4352 = vmul.f32 %v3166, %v4329
        %v4353 = vmul.f32 %v3167, %v4333
        %v4354 = vmul.f32 %v3168, %v4337
        %v4355 = vsel %vm880, %v4339, 0.0
        %v4356 = vsel %vm880, %v4340, 0.0
        %v4357 = vadd.f32 %v4355, %v4356
        %v4358 = vrot.slane %v4357, 4
        %v4359 = vadd.f32 %v4357, %v4358
        %v4360 = vrot.slane %v4359, 2
        %v4361 = vadd.f32 %v4359, %v4360
        %v4362 = vrot.slane %v4361, 1
        %v4363 = vadd.f32 %v4361, %v4362
        %v4364 = vsel %vm880, %v4341, 0.0
        %v4365 = vsel %vm880, %v4342, 0.0
        %v4366 = vadd.f32 %v4364, %v4365
        %v4367 = vrot.slane %v4366, 4
        %v4368 = vadd.f32 %v4366, %v4367
        %v4369 = vrot.slane %v4368, 2
        %v4370 = vadd.f32 %v4368, %v4369
        %v4371 = vrot.slane %v4370, 1
        %v4372 = vadd.f32 %v4370, %v4371
        %v4373 = vsel %vm880, %v4343, 0.0
        %v4374 = vsel %vm880, %v4344, 0.0
        %v4375 = vadd.f32 %v4373, %v4374
        %v4376 = vrot.slane %v4375, 4
        %v4377 = vadd.f32 %v4375, %v4376
        %v4378 = vrot.slane %v4377, 2
        %v4379 = vadd.f32 %v4377, %v4378
        %v4380 = vrot.slane %v4379, 1
        %v4381 = vadd.f32 %v4379, %v4380
        %v4382 = vsel %vm880, %v4345, 0.0
        %v4383 = vsel %vm880, %v4346, 0.0
        %v4384 = vadd.f32 %v4382, %v4383
        %v4385 = vrot.slane %v4384, 4
        %v4386 = vadd.f32 %v4384, %v4385
        %v4387 = vrot.slane %v4386, 2
        %v4388 = vadd.f32 %v4386, %v4387
        %v4389 = vrot.slane %v4388, 1
        %v4390 = vadd.f32 %v4388, %v4389
        %v4391 = vsel %vm880, %v4347, 0.0
        %v4392 = vsel %vm880, %v4348, 0.0
        %v4393 = vadd.f32 %v4391, %v4392
        %v4394 = vrot.slane %v4393, 4
        %v4395 = vadd.f32 %v4393, %v4394
        %v4396 = vrot.slane %v4395, 2
        %v4397 = vadd.f32 %v4395, %v4396
        %v4398 = vrot.slane %v4397, 1
        %v4399 = vadd.f32 %v4397, %v4398
        %v4400 = vsel %vm880, %v4349, 0.0
        %v4401 = vsel %vm880, %v4350, 0.0
        %v4402 = vadd.f32 %v4400, %v4401
        %v4403 = vrot.slane %v4402, 4
        %v4404 = vadd.f32 %v4402, %v4403
        %v4405 = vrot.slane %v4404, 2
        %v4406 = vadd.f32 %v4404, %v4405
        %v4407 = vrot.slane %v4406, 1
        %v4408 = vadd.f32 %v4406, %v4407
        %v4409 = vsel %vm880, %v4351, 0.0
        %v4410 = vsel %vm880, %v4352, 0.0
        %v4411 = vadd.f32 %v4409, %v4410
        %v4412 = vrot.slane %v4411, 4
        %v4413 = vadd.f32 %v4411, %v4412
        %v4414 = vrot.slane %v4413, 2
        %v4415 = vadd.f32 %v4413, %v4414
        %v4416 = vrot.slane %v4415, 1
        %v4417 = vadd.f32 %v4415, %v4416
        %v4418 = vsel %vm880, %v4353, 0.0
        %v4419 = vsel %vm880, %v4354, 0.0
        %v4420 = vadd.f32 %v4418, %v4419
        %v4421 = vrot.slane %v4420, 4
        %v4422 = vadd.f32 %v4420, %v4421
        %v4423 = vrot.slane %v4422, 2
        %v4424 = vadd.f32 %v4422, %v4423
        %v4425 = vrot.slane %v4424, 1
        %v4426 = vadd.f32 %v4424, %v4425
        %4435 = vrot.lane.b32.xlu0 %v4363, 96
        %v4436 = vpop.permute.xlu0 %4435
        %4437 = vrot.lane.b32.xlu0 %v4372, 96
        %v4438 = vpop.permute.xlu0 %4437
        %4439 = vrot.lane.b32.xlu0 %v4381, 96
        %v4440 = vpop.permute.xlu0 %4439
        %4441 = vrot.lane.b32.xlu0 %v4390, 96
        %v4442 = vpop.permute.xlu0 %4441
        %4443 = vrot.lane.b32.xlu0 %v4399, 96
        %v4444 = vpop.permute.xlu0 %4443
        %4445 = vrot.lane.b32.xlu0 %v4408, 96
        %v4446 = vpop.permute.xlu0 %4445
        %4447 = vrot.lane.b32.xlu0 %v4417, 96
        %v4448 = vpop.permute.xlu0 %4447
        %4449 = vrot.lane.b32.xlu0 %v4426, 96
        %v4450 = vpop.permute.xlu0 %4449
        %v4459 = vadd.f32 %v4211, %v4436
        %v4460 = vadd.f32 %v4220, %v4438
        %v4461 = vadd.f32 %v4229, %v4440
        %v4462 = vadd.f32 %v4238, %v4442
        %v4463 = vadd.f32 %v4247, %v4444
        %v4464 = vadd.f32 %v4256, %v4446
        %v4465 = vadd.f32 %v4265, %v4448
        %v4466 = vadd.f32 %v4274, %v4450
        %v4467 = vmul.f32 %v2402, %v3542
        %v4468 = vmul.f32 %v2401, %v3544
        %v4469 = vmul.f32 %v2429, %v3546
        %v4470 = vmul.f32 %v2453, %v3548
        %v4471 = vmul.f32 %v2452, %v3550
        %v4472 = vmul.f32 %v2492, %v3552
        %v4473 = vmul.f32 %v2485, %v3554
        %v4474 = vmul.f32 %v2503, %v3556
        %v4484 = vunpack.c.l.s4 1966171168
        %v4485 = vunpack.c.0.s8 %v4484
        %v4486 = vlaneseq
        %v4487 = vshrl.u32 %v4486, 7
        %v4488 = vsub.s32 %v4485, %v4487
        %v4489 = vrot.slane %v4459, %v4488
        %v4491 = vunpack.c.l.s4 1966171168
        %v4492 = vunpack.c.0.s8 %v4491
        %v4493 = vlaneseq
        %v4494 = vshrl.u32 %v4493, 7
        %v4495 = vsub.s32 %v4492, %v4494
        %v4496 = vrot.slane %v4489, %v4495
        %v4498 = vunpack.c.l.s4 1966171168
        %v4499 = vunpack.c.0.s8 %v4498
        %v4500 = vlaneseq
        %v4501 = vshrl.u32 %v4500, 7
        %v4502 = vsub.s32 %v4499, %v4501
        %v4503 = vrot.slane %v4460, %v4502
        %v4505 = vunpack.c.l.s4 1966171168
        %v4506 = vunpack.c.0.s8 %v4505
        %v4507 = vlaneseq
        %v4508 = vshrl.u32 %v4507, 7
        %v4509 = vsub.s32 %v4506, %v4508
        %v4510 = vrot.slane %v4503, %v4509
        %v4512 = vunpack.c.l.s4 1966171168
        %v4513 = vunpack.c.0.s8 %v4512
        %v4514 = vlaneseq
        %v4515 = vshrl.u32 %v4514, 7
        %v4516 = vsub.s32 %v4513, %v4515
        %v4517 = vrot.slane %v4461, %v4516
        %v4519 = vunpack.c.l.s4 1966171168
        %v4520 = vunpack.c.0.s8 %v4519
        %v4521 = vlaneseq
        %v4522 = vshrl.u32 %v4521, 7
        %v4523 = vsub.s32 %v4520, %v4522
        %v4524 = vrot.slane %v4517, %v4523
        %v4526 = vunpack.c.l.s4 1966171168
        %v4527 = vunpack.c.0.s8 %v4526
        %v4528 = vlaneseq
        %v4529 = vshrl.u32 %v4528, 7
        %v4530 = vsub.s32 %v4527, %v4529
        %v4531 = vrot.slane %v4462, %v4530
        %v4533 = vunpack.c.l.s4 1966171168
        %v4534 = vunpack.c.0.s8 %v4533
        %v4535 = vlaneseq
        %v4536 = vshrl.u32 %v4535, 7
        %v4537 = vsub.s32 %v4534, %v4536
        %v4538 = vrot.slane %v4531, %v4537
        %v4540 = vunpack.c.l.s4 1966171168
        %v4541 = vunpack.c.0.s8 %v4540
        %v4542 = vlaneseq
        %v4543 = vshrl.u32 %v4542, 7
        %v4544 = vsub.s32 %v4541, %v4543
        %v4545 = vrot.slane %v4463, %v4544
        %v4547 = vunpack.c.l.s4 1966171168
        %v4548 = vunpack.c.0.s8 %v4547
        %v4549 = vlaneseq
        %v4550 = vshrl.u32 %v4549, 7
        %v4551 = vsub.s32 %v4548, %v4550
        %v4552 = vrot.slane %v4545, %v4551
        %v4554 = vunpack.c.l.s4 1966171168
        %v4555 = vunpack.c.0.s8 %v4554
        %v4556 = vlaneseq
        %v4557 = vshrl.u32 %v4556, 7
        %v4558 = vsub.s32 %v4555, %v4557
        %v4559 = vrot.slane %v4464, %v4558
        %v4561 = vunpack.c.l.s4 1966171168
        %v4562 = vunpack.c.0.s8 %v4561
        %v4563 = vlaneseq
        %v4564 = vshrl.u32 %v4563, 7
        %v4565 = vsub.s32 %v4562, %v4564
        %v4566 = vrot.slane %v4559, %v4565
        %v4568 = vunpack.c.l.s4 1966171168
        %v4569 = vunpack.c.0.s8 %v4568
        %v4570 = vlaneseq
        %v4571 = vshrl.u32 %v4570, 7
        %v4572 = vsub.s32 %v4569, %v4571
        %v4573 = vrot.slane %v4465, %v4572
        %v4575 = vunpack.c.l.s4 1966171168
        %v4576 = vunpack.c.0.s8 %v4575
        %v4577 = vlaneseq
        %v4578 = vshrl.u32 %v4577, 7
        %v4579 = vsub.s32 %v4576, %v4578
        %v4580 = vrot.slane %v4573, %v4579
        %v4582 = vunpack.c.l.s4 1966171168
        %v4583 = vunpack.c.0.s8 %v4582
        %v4584 = vlaneseq
        %v4585 = vshrl.u32 %v4584, 7
        %v4586 = vsub.s32 %v4583, %v4585
        %v4587 = vrot.slane %v4466, %v4586
        %v4589 = vunpack.c.l.s4 1966171168
        %v4590 = vunpack.c.0.s8 %v4589
        %v4591 = vlaneseq
        %v4592 = vshrl.u32 %v4591, 7
        %v4593 = vsub.s32 %v4590, %v4592
        %v4594 = vrot.slane %v4587, %v4593
        %4595 = vrot.lane.b32.xlu0 %v4496, 96
        %v4596 = vpop.permute.xlu0 %4595
        %4597 = vrot.lane.b32.xlu0 %v4510, 96
        %v4598 = vpop.permute.xlu0 %4597
        %4599 = vrot.lane.b32.xlu0 %v4524, 96
        %v4600 = vpop.permute.xlu0 %4599
        %4601 = vrot.lane.b32.xlu0 %v4538, 96
        %v4602 = vpop.permute.xlu0 %4601
        %4603 = vrot.lane.b32.xlu0 %v4552, 96
        %v4604 = vpop.permute.xlu0 %4603
        %4605 = vrot.lane.b32.xlu0 %v4566, 96
        %v4606 = vpop.permute.xlu0 %4605
        %4607 = vrot.lane.b32.xlu0 %v4580, 96
        %v4608 = vpop.permute.xlu0 %4607
        %4609 = vrot.lane.b32.xlu0 %v4594, 96
        %v4610 = vpop.permute.xlu0 %4609
        %v4619 = vadd.f32 %v4467, %v4596
        %v4620 = vadd.f32 %v4468, %v4598
        %v4621 = vadd.f32 %v4469, %v4600
        %v4622 = vadd.f32 %v4470, %v4602
        %v4623 = vadd.f32 %v4471, %v4604
        %v4624 = vadd.f32 %v4472, %v4606
        %v4625 = vadd.f32 %v4473, %v4608
        %v4626 = vadd.f32 %v4474, %v4610
        %v4635 = vcombine.low %v3717, %v3718
        %v4636 = vcombine.low %v3719, %v3720
        %v4637 = vcombine.low %v3721, %v3722
        %v4638 = vcombine.low %v3723, %v3724
        %v4640 = vunpack.c.l.s4 1966171168
        %v4641 = vunpack.c.0.s8 %v4640
        %v4642 = vlaneseq
        %v4643 = vshrl.u32 %v4642, 7
        %v4644 = vsub.s32 %v4641, %v4643
        %v4645 = vrot.slane %v4635, %v4644
        %v4647 = vunpack.c.l.s4 1966171168
        %v4648 = vunpack.c.0.s8 %v4647
        %v4649 = vlaneseq
        %v4650 = vshrl.u32 %v4649, 7
        %v4651 = vsub.s32 %v4648, %v4650
        %v4652 = vrot.slane %v4636, %v4651
        %v4654 = vunpack.c.l.s4 1966171168
        %v4655 = vunpack.c.0.s8 %v4654
        %v4656 = vlaneseq
        %v4657 = vshrl.u32 %v4656, 7
        %v4658 = vsub.s32 %v4655, %v4657
        %v4659 = vrot.slane %v4637, %v4658
        %v4661 = vunpack.c.l.s4 1966171168
        %v4662 = vunpack.c.0.s8 %v4661
        %v4663 = vlaneseq
        %v4664 = vshrl.u32 %v4663, 7
        %v4665 = vsub.s32 %v4662, %v4664
        %v4666 = vrot.slane %v4638, %v4665
        %v4667 = vcombine.low %v4645, %v4652
        %v4668 = vcombine.low %v4659, %v4666
        %v4670 = vunpack.c.l.s4 1966171168
        %v4671 = vunpack.c.0.s8 %v4670
        %v4672 = vlaneseq
        %v4673 = vshrl.u32 %v4672, 7
        %v4674 = vsub.s32 %v4671, %v4673
        %v4675 = vrot.slane %v4667, %v4674
        %v4677 = vunpack.c.l.s4 1966171168
        %v4678 = vunpack.c.0.s8 %v4677
        %v4679 = vlaneseq
        %v4680 = vshrl.u32 %v4679, 7
        %v4681 = vsub.s32 %v4678, %v4680
        %v4682 = vrot.slane %v4668, %v4681
        %v4683 = vcombine.low %v4675, %v4682
        %4684 = vrot.lane.b32.xlu0 %v4683, 64
        %v4685 = vpop.permute.xlu0 %4684
        %v4695 = vcombine.low %v4168, %v4169
        %v4696 = vcombine.low %v4170, %v4171
        %v4697 = vcombine.low %v4172, %v4173
        %v4698 = vcombine.low %v4174, %v4175
        %v4700 = vunpack.c.l.s4 1966171168
        %v4701 = vunpack.c.0.s8 %v4700
        %v4702 = vlaneseq
        %v4703 = vshrl.u32 %v4702, 7
        %v4704 = vsub.s32 %v4701, %v4703
        %v4705 = vrot.slane %v4695, %v4704
        %v4707 = vunpack.c.l.s4 1966171168
        %v4708 = vunpack.c.0.s8 %v4707
        %v4709 = vlaneseq
        %v4710 = vshrl.u32 %v4709, 7
        %v4711 = vsub.s32 %v4708, %v4710
        %v4712 = vrot.slane %v4696, %v4711
        %v4714 = vunpack.c.l.s4 1966171168
        %v4715 = vunpack.c.0.s8 %v4714
        %v4716 = vlaneseq
        %v4717 = vshrl.u32 %v4716, 7
        %v4718 = vsub.s32 %v4715, %v4717
        %v4719 = vrot.slane %v4697, %v4718
        %v4721 = vunpack.c.l.s4 1966171168
        %v4722 = vunpack.c.0.s8 %v4721
        %v4723 = vlaneseq
        %v4724 = vshrl.u32 %v4723, 7
        %v4725 = vsub.s32 %v4722, %v4724
        %v4726 = vrot.slane %v4698, %v4725
        %v4727 = vcombine.low %v4705, %v4712
        %v4728 = vcombine.low %v4719, %v4726
        %v4730 = vunpack.c.l.s4 1966171168
        %v4731 = vunpack.c.0.s8 %v4730
        %v4732 = vlaneseq
        %v4733 = vshrl.u32 %v4732, 7
        %v4734 = vsub.s32 %v4731, %v4733
        %v4735 = vrot.slane %v4727, %v4734
        %v4737 = vunpack.c.l.s4 1966171168
        %v4738 = vunpack.c.0.s8 %v4737
        %v4739 = vlaneseq
        %v4740 = vshrl.u32 %v4739, 7
        %v4741 = vsub.s32 %v4738, %v4740
        %v4742 = vrot.slane %v4728, %v4741
        %v4743 = vcombine.low %v4735, %v4742
        %4744 = vrot.lane.b32.xlu0 %v4743, 96
        %v4745 = vpop.permute.xlu0 %4744
        %v4755 = vcombine.low %v4619, %v4620
        %v4756 = vcombine.low %v4621, %v4622
        %v4757 = vcombine.low %v4623, %v4624
        %v4758 = vcombine.low %v4625, %v4626
        %v4760 = vunpack.c.l.s4 1966171168
        %v4761 = vunpack.c.0.s8 %v4760
        %v4762 = vlaneseq
        %v4763 = vshrl.u32 %v4762, 7
        %v4764 = vsub.s32 %v4761, %v4763
        %v4765 = vrot.slane %v4755, %v4764
        %v4767 = vunpack.c.l.s4 1966171168
        %v4768 = vunpack.c.0.s8 %v4767
        %v4769 = vlaneseq
        %v4770 = vshrl.u32 %v4769, 7
        %v4771 = vsub.s32 %v4768, %v4770
        %v4772 = vrot.slane %v4756, %v4771
        %v4774 = vunpack.c.l.s4 1966171168
        %v4775 = vunpack.c.0.s8 %v4774
        %v4776 = vlaneseq
        %v4777 = vshrl.u32 %v4776, 7
        %v4778 = vsub.s32 %v4775, %v4777
        %v4779 = vrot.slane %v4757, %v4778
        %v4781 = vunpack.c.l.s4 1966171168
        %v4782 = vunpack.c.0.s8 %v4781
        %v4783 = vlaneseq
        %v4784 = vshrl.u32 %v4783, 7
        %v4785 = vsub.s32 %v4782, %v4784
        %v4786 = vrot.slane %v4758, %v4785
        %v4787 = vcombine.low %v4765, %v4772
        %v4788 = vcombine.low %v4779, %v4786
        %v4790 = vunpack.c.l.s4 1966171168
        %v4791 = vunpack.c.0.s8 %v4790
        %v4792 = vlaneseq
        %v4793 = vshrl.u32 %v4792, 7
        %v4794 = vsub.s32 %v4791, %v4793
        %v4795 = vrot.slane %v4787, %v4794
        %v4797 = vunpack.c.l.s4 1966171168
        %v4798 = vunpack.c.0.s8 %v4797
        %v4799 = vlaneseq
        %v4800 = vshrl.u32 %v4799, 7
        %v4801 = vsub.s32 %v4798, %v4800
        %v4802 = vrot.slane %v4788, %v4801
        %v4803 = vcombine.low %v4795, %v4802
        %v4805 = vsel %vm880, %v4685, %v4745
        %vm4806 = vcmask 523264
        %v4807 = vsel %vm4806, %v4805, %v4803
        %vm4808 = vcmask 785408
        %4809 = vst.msk [vmem:[%s666] sm:$0xff] %vm4808, %v4807
        %s4810 = sand.u32 %s388, 1
        %s4811 = scalar_lea.sflag [#allocation4], %s4810
        %s4812 = sand.u32 %s388, 1
        %s4813 = smul.addr %s4812, 8
        %s4814 = scalar_lea.vmem [#allocation3], %s4813
        %s4815 = sand.u32 %s34, 1
        %s4816 = scalar_lea.sflag [#allocation6], %s4815
        %s4817 = sand.u32 %s416, 1
        %s4818 = smul.addr %s4817, 8
        %s4819 = scalar_lea.vmem [#allocation5], %s4818
        %s4820 = sand.u32 %s34, 1
        %s4821 = scalar_lea.sflag [#allocation6], %s4820
        %s4822 = sand.u32 %s444, 1
        %s4823 = smul.addr %s4822, 128
        %s4824 = scalar_lea.vmem [#allocation7], %s4823
        // Predicated region
        $region81: #{tpu_custom_call.1} parent=75 // pred_check
          %p4825 = pneg %p398
        $region82: #{tpu_custom_call.1} parent=75 // pred_check_branch
          %4827 = sbr.rel (%p4825) target = $region84
        $region83: #{tpu_custom_call.1} parent=75 // pred_region
          %s4829 = ssub.s32 128, 128
          %4830 = vsyncadd %s4811, %s4829
          %s4831 = smul.addr %s38, 2
          %s4832 = sadd.s32 %s39, %s4831
          %s4833 = smul.addr %s4832, 128
          %s4834 = scalar_lea.hbm %s14, %s4833
          %s4836 = sshll.u32 %s4814, 4
          %s4837 = int_to_ptr.vmem [resolvable:$true] %s4836
          %4839 = dma.vmem_to_hbm [thread:$0]  %s4837, 128, %s4834, %s4811
        $region84: #{tpu_custom_call.1} parent=75 // pred_fallthru
          _
        // Predicated region
        $region85: #{tpu_custom_call.1} parent=75 // pred_check
          %p4840 = pneg %p426
        $region86: #{tpu_custom_call.1} parent=75 // pred_check_branch
          %4842 = sbr.rel (%p4840) target = $region88
        $region87: #{tpu_custom_call.1} parent=75 // pred_region
          %s4844 = ssub.s32 128, 128
          %4845 = vsyncadd %s4816, %s4844
          %s4846 = smul.addr %s38, 2
          %s4847 = sadd.s32 %s39, %s4846
          %s4848 = smul.addr %s4847, 128
          %s4849 = scalar_lea.hbm %s15, %s4848
          %s4851 = sshll.u32 %s4819, 4
          %s4852 = int_to_ptr.vmem [resolvable:$true] %s4851
          %4854 = dma.vmem_to_hbm [thread:$0]  %s4852, 128, %s4849, %s4816
        $region88: #{tpu_custom_call.1} parent=75 // pred_fallthru
          _
        // Predicated region
        $region89: #{tpu_custom_call.1} parent=75 // pred_check
          %p4855 = pneg %p454
        $region90: #{tpu_custom_call.1} parent=75 // pred_check_branch
          %4857 = sbr.rel (%p4855) target = $region92
        $region91: #{tpu_custom_call.1} parent=75 // pred_region
          %s4858 = smul.u32 8, %s39
          %s4860 = ssub.s32 2048, 2048
          %4861 = vsyncadd %s4821, %s4860
          %s4862 = smul.addr %s4858, 2
          %s4863 = smul.addr %s38, 32
          %s4864 = sadd.s32 %s4862, %s4863
          %s4865 = smul.addr %s4864, 128
          %s4866 = scalar_lea.hbm %s16, %s4865
          %s4867 = sshll.u32 %s4824, 4
          %s4868 = int_to_ptr.vmem [resolvable:$true] %s4867
          %4873 = dma.vmem_to_hbm [thread:$0]  %s4868, 2048, %s4866, %s4821, 128, 128, 8
        $region92: #{tpu_custom_call.1} parent=75 // pred_fallthru
          _
      $region76: #{tpu_custom_call.1} parent=5 // pred_fallthru
        _
      %p4874 = scmp.le.s32.totalorder 2, %s29
      // Predicated region
      $region93: #{tpu_custom_call.1} parent=5 // pred_check
        %p4875 = pneg %p4874
      $region94: #{tpu_custom_call.1} parent=5 // pred_check_branch
        %4877 = sbr.rel (%p4875) target = $region96
      $region95: #{tpu_custom_call.1} parent=5 // pred_region
        %s4878 = ssub.s32 %s29, 2
        // Predicated region
        $region97: #{tpu_custom_call.1} parent=95 // pred_check
          %p4879 = pneg %p404
        $region98: #{tpu_custom_call.1} parent=95 // pred_check_branch
          %4881 = sbr.rel (%p4879) target = $region100
        $region99: #{tpu_custom_call.1} parent=95 // pred_region
          %s4882 = sand.u32 %s389, 1
          %s4883 = scalar_lea.sflag [#allocation4], %s4882
          %s4884 = sand.u32 %s389, 1
          %s4885 = smul.addr %s4884, 8
          %s4886 = scalar_lea.vmem [#allocation3], %s4885
          %4887 = dma.done %s4883, 128
        $region100: #{tpu_custom_call.1} parent=95 // pred_fallthru
          _
        // Predicated region
        $region101: #{tpu_custom_call.1} parent=95 // pred_check
          %p4888 = pneg %p432
        $region102: #{tpu_custom_call.1} parent=95 // pred_check_branch
          %4890 = sbr.rel (%p4888) target = $region104
        $region103: #{tpu_custom_call.1} parent=95 // pred_region
          %s4891 = sand.u32 %s35, 1
          %s4892 = scalar_lea.sflag [#allocation6], %s4891
          %s4893 = sand.u32 %s417, 1
          %s4894 = smul.addr %s4893, 8
          %s4895 = scalar_lea.vmem [#allocation5], %s4894
          %4896 = dma.done %s4892, 128
        $region104: #{tpu_custom_call.1} parent=95 // pred_fallthru
          _
        // Predicated region
        $region105: #{tpu_custom_call.1} parent=95 // pred_check
          %p4897 = pneg %p460
        $region106: #{tpu_custom_call.1} parent=95 // pred_check_branch
          %4899 = sbr.rel (%p4897) target = $region108
        $region107: #{tpu_custom_call.1} parent=95 // pred_region
          %s4900 = sand.u32 %s35, 1
          %s4901 = scalar_lea.sflag [#allocation6], %s4900
          %s4902 = sand.u32 %s445, 1
          %s4903 = smul.addr %s4902, 128
          %s4904 = scalar_lea.vmem [#allocation7], %s4903
          %4905 = dma.done %s4901, 2048
        $region108: #{tpu_custom_call.1} parent=95 // pred_fallthru
          _
      $region96: #{tpu_custom_call.1} parent=5 // pred_fallthru
        _
    $region6: #{tpu_custom_call.1} parent=1 // loop_footer
      %s33 = sadd.s32 1, %s29
    $region7: #{tpu_custom_call.1} parent=1 // loop_footer_branch
      %28 = sbr.rel target = $region3
    $region8: #{tpu_custom_call.1} parent=1 // loop_exit
      _
    %4906 = vsyncpa [#allocation4], 1
    %s4907 = scalar_lea.sflag [#allocation4], 1
    %4908 = vsyncpa %s4907, 1
    %4909 = vsyncpa [#allocation6], 1
    %s4910 = scalar_lea.sflag [#allocation6], 1
    %4911 = vsyncpa %s4910, 1

</llo_original>
